<compile_context>
chip_gen: v6e
topology: v6e:2x2x1
jax: 0.10.0
libtpu: 0.0.40
codegen_flags: <defaults>
</compile_context>

<pallas_src>
import functools

import jax
import jax.numpy as jnp
from jax.experimental import pallas as pl
from jax.experimental.pallas import tpu as pltpu

NEG_SLOPE = 0.33
P1, P2 = 32, 64          # E2E-1 / E2E-2 channel counts
CPAD = 128               # lane-dense padded logits width


def _lrelu(v):
    return jnp.where(v > 0, v, NEG_SLOPE * v)


def brainnetcnn_kernel(x_ref, xt_ref, xf_ref, xtf_ref, oh_ref,
                       w1a_t_ref, b1a_t_ref, w1b_t_ref, b1b_t_ref,
                       w1a_bd_ref, w1b_bd_ref,
                       w2a_ref, b2a_ref, w2b_ref, b2b_ref,
                       we2n_ref, be2n_ref, wn2g_ref, bn2g_ref,
                       wd1_ref, bd1_ref, wd2_ref, bd2_ref, wd3_ref, bd3_ref,
                       logits_ref, loss_ref, *, num_classes):
    TB, d, _ = x_ref.shape
    p2 = w2a_ref.shape[1]

    x2 = x_ref[...].reshape(TB * d, d)              # rows (b, i)
    xt2 = xt_ref[...].reshape(TB * d, d)            # rows (b, j)
    xf = xf_ref[0]                                  # (TB, d*d), cols (i, k)
    xtf = xtf_ref[0]                                # (TB, d*d), cols (j, i)

    # ---- E2E block 1 -------------------------------------------------------
    # Row terms (vary with the slab row, constant over the lane group): the
    # lane-tiled weights make the matmul emit the value already replicated at
    # every (group, channel) lane position, so no in-kernel tiling is needed.
    a1_row = jnp.dot(x2, w1a_t_ref[...],
                     preferred_element_type=jnp.float32) + b1a_t_ref[...]
    r1_row = jnp.dot(xt2, w1b_t_ref[...],
                     preferred_element_type=jnp.float32) + b1b_t_ref[...]
    # Lane terms (vary with the lane group, constant over rows): the
    # block-diagonal weights land each group's 32 channels at its own 32-lane
    # offset, avoiding sub-128-lane shuffles / minor-dim reshapes in-kernel.
    a1_lane = jnp.dot(xf, w1a_bd_ref[...],
                      preferred_element_type=jnp.float32) + b1a_t_ref[...]
    r1_lane = jnp.dot(xtf, w1b_bd_ref[...],
                      preferred_element_type=jnp.float32) + b1b_t_ref[...]

    def rows_bcast(v):                              # (TB, N) -> (TB*d, N)
        return jnp.broadcast_to(v[:, None, :],
                                (TB, d, v.shape[-1])).reshape(TB * d, v.shape[-1])

    # Slabs: rows (b, i) x lanes (j, p)   and   rows (b, j) x lanes (i, p).
    e1_ij = _lrelu(a1_row + rows_bcast(r1_lane)).astype(jnp.bfloat16)
    e1_ji = _lrelu(r1_row + rows_bcast(a1_lane)).astype(jnp.bfloat16)

    # ---- E2E block 2: single K = d*32 MXU contraction per direction --------
    a2 = jnp.dot(e1_ij, w2a_ref[...],
                 preferred_element_type=jnp.float32) + b2a_ref[...]   # rows (b, i)
    r2 = jnp.dot(e1_ji, w2b_ref[...],
                 preferred_element_type=jnp.float32) + b2b_ref[...]   # rows (b, j)

    # ---- E2N: VPU multiply + reduction over (j, q); no padded matmul -------
    r2_b = jnp.broadcast_to(r2.reshape(TB, d, p2)[:, None, :, :],
                            (TB, d, d, p2)).reshape(TB * d, d, p2)
    e2 = _lrelu(a2[:, None, :] + r2_b)              # (TB*d, d_j, q), f32
    n = jnp.sum(jnp.sum(e2 * we2n_ref[...], axis=2), axis=1, keepdims=True)
    n = _lrelu(n + be2n_ref[...]).reshape(TB, d)

    # ---- N2G + dense head (tiny, f32, lane-dense via zero-padded weights) --
    g = _lrelu(jnp.dot(n, wn2g_ref[...],
                       preferred_element_type=jnp.float32) + bn2g_ref[...])
    # TODO(synk): F.dropout (PyTorch train-mode RNG) is applied as identity (eval semantics).
    h1 = _lrelu(jnp.dot(g, wd1_ref[...],
                        preferred_element_type=jnp.float32) + bd1_ref[...])
    h2 = _lrelu(jnp.dot(h1, wd2_ref[...],
                        preferred_element_type=jnp.float32) + bd2_ref[...])
    logits = _lrelu(jnp.dot(h2, wd3_ref[...],
                            preferred_element_type=jnp.float32) + bd3_ref[...])
    logits_ref[0] = logits                          # lane-dense (TB, 128) store

    # ---- CrossEntropyLoss over the first num_classes columns ---------------
    col = jax.lax.broadcasted_iota(jnp.int32, logits.shape, 1)
    masked = jnp.where(col < num_classes, logits, jnp.float32(-1e30))
    m = jnp.max(masked, axis=1, keepdims=True)
    lse = jnp.log(jnp.sum(jnp.exp(masked - m), axis=1, keepdims=True)) + m
    picked = jnp.sum(logits * oh_ref[0], axis=1, keepdims=True)
    loss_ref[0] = jnp.sum(lse - picked, axis=0, keepdims=True)


def brainnetcnn_forward(x, labels, params, *, tb=None):
    """x: (B, d, d) float32 connectivity matrices; labels: (B,) int labels."""
    B, d, _ = x.shape
    C = params['d3_w'].shape[0]
    if tb is None:
        divisors = [t for t in range(1, B + 1) if B % t == 0]
        full = [t for t in divisors if t * d >= 256]
        tb = min(full) if full else B       # fill MXU M; toy batches -> one grid step
    assert B % tb == 0, "batch must be divisible by the batch tile"
    nblk = B // tb

    f32, bf16 = jnp.float32, jnp.bfloat16

    # ---- E2E-1 weights in slab-lane layouts (see kernel) --------------------
    w1a = params['e1c1_w'].reshape(P1, d).T.astype(f32)     # (d, 32)  [k, p]
    w1b = params['e1c2_w'].reshape(P1, d).T.astype(f32)     # (d, 32)  [i, p]
    b1a = params['e1c1_b'].reshape(1, P1).astype(f32)
    b1b = params['e1c2_b'].reshape(1, P1).astype(f32)

    def lane_tiled(w):        # (d, 32) -> (d, d*32): value repeated in every j-group
        return jnp.tile(w, (1, d))

    def lane_blockdiag(w):    # (d, 32) -> (d*d, d*32): group g reads K rows g*d:(g+1)*d
        # NOTE: dense block-diagonal form is fine at d=16 (512 KB); for large d
        # build it in groups of 128//32 lanes instead (linear in d).
        return jnp.einsum('ab,cp->acbp', jnp.eye(d, dtype=f32), w).reshape(d * d, d * P1)

    w1a_t, w1b_t = lane_tiled(w1a), lane_tiled(w1b)
    b1a_t, b1b_t = jnp.tile(b1a, (1, d)), jnp.tile(b1b, (1, d))
    w1a_bd, w1b_bd = lane_blockdiag(w1a), lane_blockdiag(w1b)

    # ---- E2E-2 weights flattened to the slab's (group, channel) K layout ----
    w2a = params['e2c1_w'].reshape(P2, P1, d).transpose(2, 1, 0).reshape(d * P1, P2).astype(bf16)
    w2b = params['e2c2_w'].reshape(P2, P1, d).transpose(2, 1, 0).reshape(d * P1, P2).astype(bf16)
    b2a = params['e2c1_b'].reshape(1, P2).astype(f32)
    b2b = params['e2c2_b'].reshape(1, P2).astype(f32)

    # ---- E2N weight in (1, j-sublane, q-lane) layout (f32 VPU path) ---------
    we2n = params['e2n_w'].reshape(P2, d).T.reshape(1, d, P2).astype(f32)
    be2n = params['e2n_b'].reshape(1, 1).astype(f32)

    # ---- N2G + dense head; dense-2/3 zero-padded to 128 lanes ---------------
    h2_dim = params['d2_w'].shape[0]                         # 30
    wn2g = params['n2g_w'].reshape(256, d).T.astype(f32)
    bn2g = params['n2g_b'].reshape(1, 256).astype(f32)
    wd1 = params['d1_w'].T.astype(f32)
    bd1 = params['d1_b'].reshape(1, -1).astype(f32)
    wd2 = jnp.zeros((wd1.shape[1], CPAD), f32).at[:, :h2_dim].set(params['d2_w'].T)
    bd2 = jnp.zeros((1, CPAD), f32).at[:, :h2_dim].set(params['d2_b'].reshape(1, -1))
    wd3 = jnp.zeros((CPAD, CPAD), f32).at[:h2_dim, :C].set(params['d3_w'].T)
    bd3 = jnp.zeros((1, CPAD), f32).at[:, :C].set(params['d3_b'].reshape(1, -1))

    weights = (w1a_t, b1a_t, w1b_t, b1b_t, w1a_bd, w1b_bd,
               w2a, b2a, w2b, b2b, we2n, be2n, wn2g, bn2g,
               wd1, bd1, wd2, bd2, wd3, bd3)

    x = x.astype(f32)
    xt = jnp.swapaxes(x, 1, 2)                      # x^T produced by XLA, not in-kernel
    xf3 = x.reshape(nblk, tb, d * d)                # cols (i, k)
    xtf3 = xt.reshape(nblk, tb, d * d)              # cols (j, i)
    onehot = (labels.astype(jnp.int32)[:, None] ==
              jnp.arange(CPAD, dtype=jnp.int32)[None, :]).astype(f32)
    oh3 = onehot.reshape(nblk, tb, CPAD)            # lane-dense one-hot labels

    def wspec(w):
        if w.ndim == 2:
            return pl.BlockSpec(w.shape, lambda b: (0, 0))
        return pl.BlockSpec(w.shape, lambda b: (0, 0, 0))

    in_specs = [pl.BlockSpec((tb, d, d), lambda b: (b, 0, 0)),
                pl.BlockSpec((tb, d, d), lambda b: (b, 0, 0)),
                pl.BlockSpec((1, tb, d * d), lambda b: (b, 0, 0)),
                pl.BlockSpec((1, tb, d * d), lambda b: (b, 0, 0)),
                pl.BlockSpec((1, tb, CPAD), lambda b: (b, 0, 0))]
    # Weight index maps are grid-constant, so they are DMA'd once and stay
    # VMEM-resident across the batch grid; at ~1.3 MB total the default double
    # buffering is negligible, so pl.Buffered(1) is not needed here.
    in_specs += [wspec(w) for w in weights]

    grid_spec = pltpu.PrefetchScalarGridSpec(
        num_scalar_prefetch=0,
        grid=(nblk,),
        in_specs=in_specs,
        out_specs=(pl.BlockSpec((1, tb, CPAD), lambda b: (b, 0, 0)),
                   pl.BlockSpec((1, 1, 1), lambda b: (b, 0, 0))),
    )

    mxu_flops = 2 * B * (
        2 * d * d * (d * P1)            # E2E-1 row terms (lane-tiled weights)
        + 2 * (d * d) * (d * P1)        # E2E-1 lane terms (block-diag weights)
        + 2 * d * (d * P1) * P2         # E2E-2 fused contractions
        + d * 256                        # N2G
        + 256 * wd1.shape[1] + wd1.shape[1] * CPAD + CPAD * CPAD)   # dense head
    vpu_flops = 2 * B * d * d * P2       # E2N multiply + reduce
    bytes_acc = sum(int(a.size) * a.dtype.itemsize
                    for a in (x, xt, xf3, xtf3, oh3) + weights)
    bytes_acc += B * CPAD * 4 + nblk * 4
    cost = pl.CostEstimate(flops=int(mxu_flops + vpu_flops),
                           transcendentals=int(B * CPAD),
                           bytes_accessed=int(bytes_acc))

    logits_pad, loss_parts = pl.pallas_call(
        functools.partial(brainnetcnn_kernel, num_classes=C),
        out_shape=(jax.ShapeDtypeStruct((nblk, tb, CPAD), jnp.float32),
                   jax.ShapeDtypeStruct((nblk, 1, 1), jnp.float32)),
        grid_spec=grid_spec,
        compiler_params=pltpu.CompilerParams(
            dimension_semantics=("parallel",),           # shard batch tiles across TCs (v7x)
            vmem_limit_bytes=48 * 1024 * 1024),          # explicit; below v7x's 64 MiB physical
        cost_estimate=cost,
    )(x, xt, xf3, xtf3, oh3, *weights)

    logits = logits_pad[:, :, :C].reshape(B, C)
    return logits, jnp.sum(loss_parts) / B


def init_params(key, d, num_classes):
    ks = jax.random.split(key, 18)

    def wn(k, shape, fan_in):
        return jax.random.normal(k, shape, dtype=jnp.float32) / jnp.sqrt(float(fan_in))

    return {
        'e1c1_w': wn(ks[0], (32, 1, 1, d), d),        'e1c1_b': wn(ks[1], (32,), d),
        'e1c2_w': wn(ks[2], (32, 1, d, 1), d),        'e1c2_b': wn(ks[3], (32,), d),
        'e2c1_w': wn(ks[4], (64, 32, 1, d), 32 * d),  'e2c1_b': wn(ks[5], (64,), 32 * d),
        'e2c2_w': wn(ks[6], (64, 32, d, 1), 32 * d),  'e2c2_b': wn(ks[7], (64,), 32 * d),
        'e2n_w':  wn(ks[8], (1, 64, 1, d), 64 * d),   'e2n_b':  wn(ks[9], (1,), 64 * d),
        'n2g_w':  wn(ks[10], (256, 1, d, 1), d),      'n2g_b':  wn(ks[11], (256,), d),
        'd1_w':   wn(ks[12], (128, 256), 256),        'd1_b':   wn(ks[13], (128,), 256),
        'd2_w':   wn(ks[14], (30, 128), 128),         'd2_b':   wn(ks[15], (30,), 128),
        'd3_w':   wn(ks[16], (num_classes, 30), 30),  'd3_b':   wn(ks[17], (num_classes,), 30),
    }


def reference_forward(x, labels, params):
    """Pure-JAX f32 reference replicating the PyTorch forward (eval-mode dropout)."""
    B, d, _ = x.shape

    def lr(v):
        return jnp.where(v > 0, v, NEG_SLOPE * v)

    def e2e(z, w1, b1, w2, b2):
        a = jnp.einsum('bcij,pcj->bpi', z, w1[:, :, 0, :]) + b1[None, :, None]
        r = jnp.einsum('bcij,pci->bpj', z, w2[:, :, :, 0]) + b2[None, :, None]
        return a[:, :, :, None] + r[:, :, None, :]

    z = x[:, None, :, :]                                            # (B, 1, d, d)  NCHW
    z = lr(e2e(z, params['e1c1_w'], params['e1c1_b'],
               params['e1c2_w'], params['e1c2_b']))
    z = lr(e2e(z, params['e2c1_w'], params['e2c1_b'],
               params['e2c2_w'], params['e2c2_b']))
    n = lr(jnp.einsum('bqij,qj->bi', z, params['e2n_w'].reshape(64, d))
           + params['e2n_b'])
    g = lr(n @ params['n2g_w'].reshape(256, d).T + params['n2g_b'])
    h1 = lr(g @ params['d1_w'].T + params['d1_b'])
    h2 = lr(h1 @ params['d2_w'].T + params['d2_b'])
    logits = lr(h2 @ params['d3_w'].T + params['d3_b'])
    lse = jax.scipy.special.logsumexp(logits, axis=1)
    picked = jnp.take_along_axis(logits, labels[:, None], axis=1)[:, 0]
    return logits, jnp.mean(lse - picked)


if __name__ == "__main__":
    d = 16            # node_size (number of ROIs)
    num_classes = 4
    B = 4

    key = jax.random.PRNGKey(0)
    kx, kl, kp = jax.random.split(key, 3)
    x = jax.random.normal(kx, (B, d, d), dtype=jnp.float32)
    x = 0.5 * (x + jnp.swapaxes(x, 1, 2))          # symmetric connectivity matrix
    labels = jax.random.randint(kl, (B,), 0, num_classes, dtype=jnp.int32)
    params = init_params(kp, d, num_classes)

    # tb defaults to B here -> a single grid step (toy batch); larger batches
    # pick tb*d >= 256 with an even number of tiles for v7x's two TensorCores.
    logits, loss = brainnetcnn_forward(x, labels, params)
    jax.block_until_ready((logits, loss))

    ref_logits, ref_loss = reference_forward(x, labels, params)
    # bf16 MXU operands (f32 accumulation) are used only in the fused E2E-2
    # contractions -> slightly looser tolerance than pure-f32.
    assert jnp.allclose(logits, ref_logits, rtol=3e-2, atol=3e-2), "logits mismatch"
    assert jnp.allclose(loss, ref_loss, rtol=3e-2, atol=3e-2), "loss mismatch"

    print("KERNEL_OK")
</pallas_src>

<mosaic_0001>
module attributes {stable_mosaic.version = 11 : i64} {
  func.func @brainnetcnn_kernel(%arg0: i32, %arg1: memref<4x16x16xf32, #tpu.memory_space<vmem>>, %arg2: memref<4x16x16xf32, #tpu.memory_space<vmem>>, %arg3: memref<1x4x256xf32, #tpu.memory_space<vmem>>, %arg4: memref<1x4x256xf32, #tpu.memory_space<vmem>>, %arg5: memref<1x4x128xf32, #tpu.memory_space<vmem>>, %arg6: memref<16x512xf32, #tpu.memory_space<vmem>>, %arg7: memref<1x512xf32, #tpu.memory_space<vmem>>, %arg8: memref<16x512xf32, #tpu.memory_space<vmem>>, %arg9: memref<1x512xf32, #tpu.memory_space<vmem>>, %arg10: memref<256x512xf32, #tpu.memory_space<vmem>>, %arg11: memref<256x512xf32, #tpu.memory_space<vmem>>, %arg12: memref<512x64xbf16, #tpu.memory_space<vmem>>, %arg13: memref<1x64xf32, #tpu.memory_space<vmem>>, %arg14: memref<512x64xbf16, #tpu.memory_space<vmem>>, %arg15: memref<1x64xf32, #tpu.memory_space<vmem>>, %arg16: memref<1x16x64xf32, #tpu.memory_space<vmem>>, %arg17: memref<1x1xf32, #tpu.memory_space<vmem>>, %arg18: memref<16x256xf32, #tpu.memory_space<vmem>>, %arg19: memref<1x256xf32, #tpu.memory_space<vmem>>, %arg20: memref<256x128xf32, #tpu.memory_space<vmem>>, %arg21: memref<1x128xf32, #tpu.memory_space<vmem>>, %arg22: memref<128x128xf32, #tpu.memory_space<vmem>>, %arg23: memref<1x128xf32, #tpu.memory_space<vmem>>, %arg24: memref<128x128xf32, #tpu.memory_space<vmem>>, %arg25: memref<1x128xf32, #tpu.memory_space<vmem>>, %arg26: memref<1x4x128xf32, #tpu.memory_space<vmem>>, %arg27: memref<1x1x1xf32, #tpu.memory_space<vmem>>) attributes {dimension_semantics = [#tpu.dimension_semantics<parallel>], iteration_bounds = array<i64: 1>, scalar_prefetch = 0 : i64, scratch_operands = 0 : i64, tpu.core_type = #tpu.core_type<tc>, window_params = [{transform_indices = @transform_0, window_bounds = array<i64: 4, 16, 16>}, {transform_indices = @transform_1, window_bounds = array<i64: 4, 16, 16>}, {transform_indices = @transform_2, window_bounds = array<i64: 1, 4, 256>}, {transform_indices = @transform_3, window_bounds = array<i64: 1, 4, 256>}, {transform_indices = @transform_4, window_bounds = array<i64: 1, 4, 128>}, {pipeline_mode = #tpu.pipeline_mode<synchronous>, transform_indices = @transform_5, window_bounds = array<i64: 16, 512>}, {pipeline_mode = #tpu.pipeline_mode<synchronous>, transform_indices = @transform_6, window_bounds = array<i64: 1, 512>}, {pipeline_mode = #tpu.pipeline_mode<synchronous>, transform_indices = @transform_7, window_bounds = array<i64: 16, 512>}, {pipeline_mode = #tpu.pipeline_mode<synchronous>, transform_indices = @transform_8, window_bounds = array<i64: 1, 512>}, {pipeline_mode = #tpu.pipeline_mode<synchronous>, transform_indices = @transform_9, window_bounds = array<i64: 256, 512>}, {pipeline_mode = #tpu.pipeline_mode<synchronous>, transform_indices = @transform_10, window_bounds = array<i64: 256, 512>}, {pipeline_mode = #tpu.pipeline_mode<synchronous>, transform_indices = @transform_11, window_bounds = array<i64: 512, 64>}, {pipeline_mode = #tpu.pipeline_mode<synchronous>, transform_indices = @transform_12, window_bounds = array<i64: 1, 64>}, {pipeline_mode = #tpu.pipeline_mode<synchronous>, transform_indices = @transform_13, window_bounds = array<i64: 512, 64>}, {pipeline_mode = #tpu.pipeline_mode<synchronous>, transform_indices = @transform_14, window_bounds = array<i64: 1, 64>}, {pipeline_mode = #tpu.pipeline_mode<synchronous>, transform_indices = @transform_15, window_bounds = array<i64: 1, 16, 64>}, {pipeline_mode = #tpu.pipeline_mode<synchronous>, transform_indices = @transform_16, window_bounds = array<i64: 1, 1>}, {pipeline_mode = #tpu.pipeline_mode<synchronous>, transform_indices = @transform_17, window_bounds = array<i64: 16, 256>}, {pipeline_mode = #tpu.pipeline_mode<synchronous>, transform_indices = @transform_18, window_bounds = array<i64: 1, 256>}, {pipeline_mode = #tpu.pipeline_mode<synchronous>, transform_indices = @transform_19, window_bounds = array<i64: 256, 128>}, {pipeline_mode = #tpu.pipeline_mode<synchronous>, transform_indices = @transform_20, window_bounds = array<i64: 1, 128>}, {pipeline_mode = #tpu.pipeline_mode<synchronous>, transform_indices = @transform_21, window_bounds = array<i64: 128, 128>}, {pipeline_mode = #tpu.pipeline_mode<synchronous>, transform_indices = @transform_22, window_bounds = array<i64: 1, 128>}, {pipeline_mode = #tpu.pipeline_mode<synchronous>, transform_indices = @transform_23, window_bounds = array<i64: 128, 128>}, {pipeline_mode = #tpu.pipeline_mode<synchronous>, transform_indices = @transform_24, window_bounds = array<i64: 1, 128>}, {transform_indices = @transform_25, window_bounds = array<i64: 1, 4, 128>}, {transform_indices = @transform_26, window_bounds = array<i64: 1, 1, 1>}]} {
    %c0 = arith.constant 0 : index
    %c0_0 = arith.constant 0 : index
    %c0_1 = arith.constant 0 : index
    %0 = vector.load %arg1[%c0, %c0_0, %c0_1] : memref<4x16x16xf32, #tpu.memory_space<vmem>>, vector<4x16x16xf32>
    %1 = vector.shape_cast %0 : vector<4x16x16xf32> to vector<64x16xf32>
    %c0_2 = arith.constant 0 : index
    %c0_3 = arith.constant 0 : index
    %c0_4 = arith.constant 0 : index
    %2 = vector.load %arg2[%c0_2, %c0_3, %c0_4] : memref<4x16x16xf32, #tpu.memory_space<vmem>>, vector<4x16x16xf32>
    %3 = vector.shape_cast %2 : vector<4x16x16xf32> to vector<64x16xf32>
    %c0_5 = arith.constant 0 : index
    %c0_6 = arith.constant 0 : index
    %c0_7 = arith.constant 0 : index
    %4 = vector.load %arg3[%c0_5, %c0_6, %c0_7] : memref<1x4x256xf32, #tpu.memory_space<vmem>>, vector<1x4x256xf32>
    %5 = vector.shape_cast %4 : vector<1x4x256xf32> to vector<4x256xf32>
    %c0_8 = arith.constant 0 : index
    %c0_9 = arith.constant 0 : index
    %c0_10 = arith.constant 0 : index
    %6 = vector.load %arg4[%c0_8, %c0_9, %c0_10] : memref<1x4x256xf32, #tpu.memory_space<vmem>>, vector<1x4x256xf32>
    %7 = vector.shape_cast %6 : vector<1x4x256xf32> to vector<4x256xf32>
    %c0_11 = arith.constant 0 : index
    %c0_12 = arith.constant 0 : index
    %8 = vector.load %arg6[%c0_11, %c0_12] : memref<16x512xf32, #tpu.memory_space<vmem>>, vector<16x512xf32>
    %cst = arith.constant dense<0.000000e+00> : vector<64x512xf32>
    %9 = tpu.matmul %1, %8, %cst {dimension_numbers = #tpu.dot_dimension_numbers<[1], [0], [0], [1], [0, 0, 1, 1], [], []>} : vector<64x16xf32>, vector<16x512xf32>, vector<64x512xf32> -> vector<64x512xf32>
    %c0_13 = arith.constant 0 : index
    %c0_14 = arith.constant 0 : index
    %10 = vector.load %arg7[%c0_13, %c0_14] : memref<1x512xf32, #tpu.memory_space<vmem>>, vector<1x512xf32>
    %11 = vector.broadcast %10 : vector<1x512xf32> to vector<64x512xf32>
    %12 = arith.addf %9, %11 : vector<64x512xf32>
    %c0_15 = arith.constant 0 : index
    %c0_16 = arith.constant 0 : index
    %13 = vector.load %arg8[%c0_15, %c0_16] : memref<16x512xf32, #tpu.memory_space<vmem>>, vector<16x512xf32>
    %cst_17 = arith.constant dense<0.000000e+00> : vector<64x512xf32>
    %14 = tpu.matmul %3, %13, %cst_17 {dimension_numbers = #tpu.dot_dimension_numbers<[1], [0], [0], [1], [0, 0, 1, 1], [], []>} : vector<64x16xf32>, vector<16x512xf32>, vector<64x512xf32> -> vector<64x512xf32>
    %c0_18 = arith.constant 0 : index
    %c0_19 = arith.constant 0 : index
    %15 = vector.load %arg9[%c0_18, %c0_19] : memref<1x512xf32, #tpu.memory_space<vmem>>, vector<1x512xf32>
    %16 = vector.broadcast %15 : vector<1x512xf32> to vector<64x512xf32>
    %17 = arith.addf %14, %16 : vector<64x512xf32>
    %c0_20 = arith.constant 0 : index
    %c0_21 = arith.constant 0 : index
    %18 = vector.load %arg10[%c0_20, %c0_21] : memref<256x512xf32, #tpu.memory_space<vmem>>, vector<256x512xf32>
    %cst_22 = arith.constant dense<0.000000e+00> : vector<4x512xf32>
    %19 = tpu.matmul %5, %18, %cst_22 {dimension_numbers = #tpu.dot_dimension_numbers<[1], [0], [0], [1], [0, 0, 1, 1], [], []>} : vector<4x256xf32>, vector<256x512xf32>, vector<4x512xf32> -> vector<4x512xf32>
    %c0_23 = arith.constant 0 : index
    %c0_24 = arith.constant 0 : index
    %20 = vector.load %arg7[%c0_23, %c0_24] : memref<1x512xf32, #tpu.memory_space<vmem>>, vector<1x512xf32>
    %21 = vector.broadcast %20 : vector<1x512xf32> to vector<4x512xf32>
    %22 = arith.addf %19, %21 : vector<4x512xf32>
    %c0_25 = arith.constant 0 : index
    %c0_26 = arith.constant 0 : index
    %23 = vector.load %arg11[%c0_25, %c0_26] : memref<256x512xf32, #tpu.memory_space<vmem>>, vector<256x512xf32>
    %cst_27 = arith.constant dense<0.000000e+00> : vector<4x512xf32>
    %24 = tpu.matmul %7, %23, %cst_27 {dimension_numbers = #tpu.dot_dimension_numbers<[1], [0], [0], [1], [0, 0, 1, 1], [], []>} : vector<4x256xf32>, vector<256x512xf32>, vector<4x512xf32> -> vector<4x512xf32>
    %c0_28 = arith.constant 0 : index
    %c0_29 = arith.constant 0 : index
    %25 = vector.load %arg9[%c0_28, %c0_29] : memref<1x512xf32, #tpu.memory_space<vmem>>, vector<1x512xf32>
    %26 = vector.broadcast %25 : vector<1x512xf32> to vector<4x512xf32>
    %27 = arith.addf %24, %26 : vector<4x512xf32>
    %28 = vector.shape_cast %27 : vector<4x512xf32> to vector<4x1x512xf32>
    %29 = vector.shape_cast %28 : vector<4x1x512xf32> to vector<4x1x512xf32>
    %30 = vector.broadcast %29 : vector<4x1x512xf32> to vector<4x16x512xf32>
    %31 = vector.shape_cast %30 : vector<4x16x512xf32> to vector<64x512xf32>
    %32 = arith.addf %12, %31 : vector<64x512xf32>
    %cst_30 = arith.constant 0.000000e+00 : f32
    %33 = vector.broadcast %cst_30 : f32 to vector<64x512xf32>
    %34 = arith.cmpf ogt, %32, %33 : vector<64x512xf32>
    %cst_31 = arith.constant 3.300000e-01 : f32
    %35 = vector.broadcast %cst_31 : f32 to vector<64x512xf32>
    %36 = arith.mulf %35, %32 : vector<64x512xf32>
    %37 = arith.select %34, %32, %36 : vector<64x512xi1>, vector<64x512xf32>
    %38 = arith.truncf %37 : vector<64x512xf32> to vector<64x512xbf16>
    %39 = vector.shape_cast %22 : vector<4x512xf32> to vector<4x1x512xf32>
    %40 = vector.shape_cast %39 : vector<4x1x512xf32> to vector<4x1x512xf32>
    %41 = vector.broadcast %40 : vector<4x1x512xf32> to vector<4x16x512xf32>
    %42 = vector.shape_cast %41 : vector<4x16x512xf32> to vector<64x512xf32>
    %43 = arith.addf %17, %42 : vector<64x512xf32>
    %cst_32 = arith.constant 0.000000e+00 : f32
    %44 = vector.broadcast %cst_32 : f32 to vector<64x512xf32>
    %45 = arith.cmpf ogt, %43, %44 : vector<64x512xf32>
    %cst_33 = arith.constant 3.300000e-01 : f32
    %46 = vector.broadcast %cst_33 : f32 to vector<64x512xf32>
    %47 = arith.mulf %46, %43 : vector<64x512xf32>
    %48 = arith.select %45, %43, %47 : vector<64x512xi1>, vector<64x512xf32>
    %49 = arith.truncf %48 : vector<64x512xf32> to vector<64x512xbf16>
    %c0_34 = arith.constant 0 : index
    %c0_35 = arith.constant 0 : index
    %50 = vector.load %arg12[%c0_34, %c0_35] : memref<512x64xbf16, #tpu.memory_space<vmem>>, vector<512x64xbf16>
    %cst_36 = arith.constant dense<0.000000e+00> : vector<64x64xf32>
    %51 = tpu.matmul %38, %50, %cst_36 {dimension_numbers = #tpu.dot_dimension_numbers<[1], [0], [0], [1], [0, 0, 1, 1], [], []>} : vector<64x512xbf16>, vector<512x64xbf16>, vector<64x64xf32> -> vector<64x64xf32>
    %c0_37 = arith.constant 0 : index
    %c0_38 = arith.constant 0 : index
    %52 = vector.load %arg13[%c0_37, %c0_38] : memref<1x64xf32, #tpu.memory_space<vmem>>, vector<1x64xf32>
    %53 = vector.broadcast %52 : vector<1x64xf32> to vector<64x64xf32>
    %54 = arith.addf %51, %53 : vector<64x64xf32>
    %c0_39 = arith.constant 0 : index
    %c0_40 = arith.constant 0 : index
    %55 = vector.load %arg14[%c0_39, %c0_40] : memref<512x64xbf16, #tpu.memory_space<vmem>>, vector<512x64xbf16>
    %cst_41 = arith.constant dense<0.000000e+00> : vector<64x64xf32>
    %56 = tpu.matmul %49, %55, %cst_41 {dimension_numbers = #tpu.dot_dimension_numbers<[1], [0], [0], [1], [0, 0, 1, 1], [], []>} : vector<64x512xbf16>, vector<512x64xbf16>, vector<64x64xf32> -> vector<64x64xf32>
    %c0_42 = arith.constant 0 : index
    %c0_43 = arith.constant 0 : index
    %57 = vector.load %arg15[%c0_42, %c0_43] : memref<1x64xf32, #tpu.memory_space<vmem>>, vector<1x64xf32>
    %58 = vector.broadcast %57 : vector<1x64xf32> to vector<64x64xf32>
    %59 = arith.addf %56, %58 : vector<64x64xf32>
    %60 = vector.shape_cast %59 : vector<64x64xf32> to vector<4x16x64xf32>
    %61 = vector.shape_cast %60 : vector<4x16x64xf32> to vector<4x1x16x64xf32>
    %62 = vector.shape_cast %61 : vector<4x1x16x64xf32> to vector<4x1x16x64xf32>
    %63 = vector.broadcast %62 : vector<4x1x16x64xf32> to vector<4x16x16x64xf32>
    %64 = vector.shape_cast %63 : vector<4x16x16x64xf32> to vector<64x16x64xf32>
    %65 = vector.shape_cast %54 : vector<64x64xf32> to vector<64x1x64xf32>
    %66 = vector.broadcast %65 : vector<64x1x64xf32> to vector<64x16x64xf32>
    %67 = arith.addf %66, %64 : vector<64x16x64xf32>
    %cst_44 = arith.constant 0.000000e+00 : f32
    %68 = vector.broadcast %cst_44 : f32 to vector<64x16x64xf32>
    %69 = arith.cmpf ogt, %67, %68 : vector<64x16x64xf32>
    %cst_45 = arith.constant 3.300000e-01 : f32
    %70 = vector.broadcast %cst_45 : f32 to vector<64x16x64xf32>
    %71 = arith.mulf %70, %67 : vector<64x16x64xf32>
    %72 = arith.select %69, %67, %71 : vector<64x16x64xi1>, vector<64x16x64xf32>
    %c0_46 = arith.constant 0 : index
    %c0_47 = arith.constant 0 : index
    %c0_48 = arith.constant 0 : index
    %73 = vector.load %arg16[%c0_46, %c0_47, %c0_48] : memref<1x16x64xf32, #tpu.memory_space<vmem>>, vector<1x16x64xf32>
    %74 = vector.broadcast %73 : vector<1x16x64xf32> to vector<64x16x64xf32>
    %75 = arith.mulf %72, %74 : vector<64x16x64xf32>
    %cst_49 = arith.constant dense<0.000000e+00> : vector<64x16xf32>
    %76 = vector.multi_reduction <add>, %75, %cst_49 [2] : vector<64x16x64xf32> to vector<64x16xf32>
    %cst_50 = arith.constant dense<0.000000e+00> : vector<64xf32>
    %77 = vector.multi_reduction <add>, %76, %cst_50 [1] : vector<64x16xf32> to vector<64xf32>
    %78 = vector.shape_cast %77 : vector<64xf32> to vector<64x1xf32>
    %c0_51 = arith.constant 0 : index
    %c0_52 = arith.constant 0 : index
    %79 = vector.load %arg17[%c0_51, %c0_52] : memref<1x1xf32, #tpu.memory_space<vmem>>, vector<1x1xf32>
    %80 = vector.broadcast %79 : vector<1x1xf32> to vector<64x1xf32>
    %81 = arith.addf %78, %80 : vector<64x1xf32>
    %cst_53 = arith.constant 0.000000e+00 : f32
    %82 = vector.broadcast %cst_53 : f32 to vector<64x1xf32>
    %83 = arith.cmpf ogt, %81, %82 : vector<64x1xf32>
    %cst_54 = arith.constant 3.300000e-01 : f32
    %84 = vector.broadcast %cst_54 : f32 to vector<64x1xf32>
    %85 = arith.mulf %84, %81 : vector<64x1xf32>
    %86 = arith.select %83, %81, %85 : vector<64x1xi1>, vector<64x1xf32>
    %87 = vector.shape_cast %86 : vector<64x1xf32> to vector<4x16xf32>
    %c0_55 = arith.constant 0 : index
    %c0_56 = arith.constant 0 : index
    %88 = vector.load %arg18[%c0_55, %c0_56] : memref<16x256xf32, #tpu.memory_space<vmem>>, vector<16x256xf32>
    %cst_57 = arith.constant dense<0.000000e+00> : vector<4x256xf32>
    %89 = tpu.matmul %87, %88, %cst_57 {dimension_numbers = #tpu.dot_dimension_numbers<[1], [0], [0], [1], [0, 0, 1, 1], [], []>} : vector<4x16xf32>, vector<16x256xf32>, vector<4x256xf32> -> vector<4x256xf32>
    %c0_58 = arith.constant 0 : index
    %c0_59 = arith.constant 0 : index
    %90 = vector.load %arg19[%c0_58, %c0_59] : memref<1x256xf32, #tpu.memory_space<vmem>>, vector<1x256xf32>
    %91 = vector.broadcast %90 : vector<1x256xf32> to vector<4x256xf32>
    %92 = arith.addf %89, %91 : vector<4x256xf32>
    %cst_60 = arith.constant 0.000000e+00 : f32
    %93 = vector.broadcast %cst_60 : f32 to vector<4x256xf32>
    %94 = arith.cmpf ogt, %92, %93 : vector<4x256xf32>
    %cst_61 = arith.constant 3.300000e-01 : f32
    %95 = vector.broadcast %cst_61 : f32 to vector<4x256xf32>
    %96 = arith.mulf %95, %92 : vector<4x256xf32>
    %97 = arith.select %94, %92, %96 : vector<4x256xi1>, vector<4x256xf32>
    %c0_62 = arith.constant 0 : index
    %c0_63 = arith.constant 0 : index
    %98 = vector.load %arg20[%c0_62, %c0_63] : memref<256x128xf32, #tpu.memory_space<vmem>>, vector<256x128xf32>
    %cst_64 = arith.constant dense<0.000000e+00> : vector<4x128xf32>
    %99 = tpu.matmul %97, %98, %cst_64 {dimension_numbers = #tpu.dot_dimension_numbers<[1], [0], [0], [1], [0, 0, 1, 1], [], []>} : vector<4x256xf32>, vector<256x128xf32>, vector<4x128xf32> -> vector<4x128xf32>
    %c0_65 = arith.constant 0 : index
    %c0_66 = arith.constant 0 : index
    %100 = vector.load %arg21[%c0_65, %c0_66] : memref<1x128xf32, #tpu.memory_space<vmem>>, vector<1x128xf32>
    %101 = vector.broadcast %100 : vector<1x128xf32> to vector<4x128xf32>
    %102 = arith.addf %99, %101 : vector<4x128xf32>
    %cst_67 = arith.constant 0.000000e+00 : f32
    %103 = vector.broadcast %cst_67 : f32 to vector<4x128xf32>
    %104 = arith.cmpf ogt, %102, %103 : vector<4x128xf32>
    %cst_68 = arith.constant 3.300000e-01 : f32
    %105 = vector.broadcast %cst_68 : f32 to vector<4x128xf32>
    %106 = arith.mulf %105, %102 : vector<4x128xf32>
    %107 = arith.select %104, %102, %106 : vector<4x128xi1>, vector<4x128xf32>
    %c0_69 = arith.constant 0 : index
    %c0_70 = arith.constant 0 : index
    %108 = vector.load %arg22[%c0_69, %c0_70] : memref<128x128xf32, #tpu.memory_space<vmem>>, vector<128x128xf32>
    %cst_71 = arith.constant dense<0.000000e+00> : vector<4x128xf32>
    %109 = tpu.matmul %107, %108, %cst_71 {dimension_numbers = #tpu.dot_dimension_numbers<[1], [0], [0], [1], [0, 0, 1, 1], [], []>} : vector<4x128xf32>, vector<128x128xf32>, vector<4x128xf32> -> vector<4x128xf32>
    %c0_72 = arith.constant 0 : index
    %c0_73 = arith.constant 0 : index
    %110 = vector.load %arg23[%c0_72, %c0_73] : memref<1x128xf32, #tpu.memory_space<vmem>>, vector<1x128xf32>
    %111 = vector.broadcast %110 : vector<1x128xf32> to vector<4x128xf32>
    %112 = arith.addf %109, %111 : vector<4x128xf32>
    %cst_74 = arith.constant 0.000000e+00 : f32
    %113 = vector.broadcast %cst_74 : f32 to vector<4x128xf32>
    %114 = arith.cmpf ogt, %112, %113 : vector<4x128xf32>
    %cst_75 = arith.constant 3.300000e-01 : f32
    %115 = vector.broadcast %cst_75 : f32 to vector<4x128xf32>
    %116 = arith.mulf %115, %112 : vector<4x128xf32>
    %117 = arith.select %114, %112, %116 : vector<4x128xi1>, vector<4x128xf32>
    %c0_76 = arith.constant 0 : index
    %c0_77 = arith.constant 0 : index
    %118 = vector.load %arg24[%c0_76, %c0_77] : memref<128x128xf32, #tpu.memory_space<vmem>>, vector<128x128xf32>
    %cst_78 = arith.constant dense<0.000000e+00> : vector<4x128xf32>
    %119 = tpu.matmul %117, %118, %cst_78 {dimension_numbers = #tpu.dot_dimension_numbers<[1], [0], [0], [1], [0, 0, 1, 1], [], []>} : vector<4x128xf32>, vector<128x128xf32>, vector<4x128xf32> -> vector<4x128xf32>
    %c0_79 = arith.constant 0 : index
    %c0_80 = arith.constant 0 : index
    %120 = vector.load %arg25[%c0_79, %c0_80] : memref<1x128xf32, #tpu.memory_space<vmem>>, vector<1x128xf32>
    %121 = vector.broadcast %120 : vector<1x128xf32> to vector<4x128xf32>
    %122 = arith.addf %119, %121 : vector<4x128xf32>
    %cst_81 = arith.constant 0.000000e+00 : f32
    %123 = vector.broadcast %cst_81 : f32 to vector<4x128xf32>
    %124 = arith.cmpf ogt, %122, %123 : vector<4x128xf32>
    %cst_82 = arith.constant 3.300000e-01 : f32
    %125 = vector.broadcast %cst_82 : f32 to vector<4x128xf32>
    %126 = arith.mulf %125, %122 : vector<4x128xf32>
    %127 = arith.select %124, %122, %126 : vector<4x128xi1>, vector<4x128xf32>
    %c0_83 = arith.constant 0 : index
    %c0_84 = arith.constant 0 : index
    %c0_85 = arith.constant 0 : index
    %128 = vector.load %arg26[%c0_83, %c0_84, %c0_85] : memref<1x4x128xf32, #tpu.memory_space<vmem>>, vector<1x4x128xf32>
    %129 = vector.shape_cast %128 : vector<1x4x128xf32> to vector<4x128xf32>
    %130 = vector.shape_cast %127 : vector<4x128xf32> to vector<1x4x128xf32>
    tpu.vector_store %arg26[%c0_83, %c0_84, %c0_85], %130 {strides = array<i32>} : memref<1x4x128xf32, #tpu.memory_space<vmem>>, vector<1x4x128xf32>,
    %131 = tpu.iota {dimensions = array<i32: 1>} : vector<4x128xi32>
    %c4_i32 = arith.constant 4 : i32
    %132 = vector.broadcast %c4_i32 : i32 to vector<4x128xi32>
    %133 = arith.cmpi slt, %131, %132 : vector<4x128xi32>
    %cst_86 = arith.constant -1.000000e+30 : f32
    %134 = vector.broadcast %cst_86 : f32 to vector<4x128xf32>
    %135 = arith.select %133, %127, %134 : vector<4x128xi1>, vector<4x128xf32>
    %cst_87 = arith.constant dense<0xFF800000> : vector<4xf32>
    %136 = vector.multi_reduction <maximumf>, %135, %cst_87 [1] : vector<4x128xf32> to vector<4xf32>
    %137 = vector.shape_cast %136 : vector<4xf32> to vector<4x1xf32>
    %138 = vector.broadcast %137 : vector<4x1xf32> to vector<4x128xf32>
    %139 = arith.subf %135, %138 : vector<4x128xf32>
    %140 = math.exp %139 : vector<4x128xf32>
    %cst_88 = arith.constant dense<0.000000e+00> : vector<4xf32>
    %141 = vector.multi_reduction <add>, %140, %cst_88 [1] : vector<4x128xf32> to vector<4xf32>
    %142 = vector.shape_cast %141 : vector<4xf32> to vector<4x1xf32>
    %143 = math.log %142 : vector<4x1xf32>
    %144 = arith.addf %143, %137 : vector<4x1xf32>
    %c0_89 = arith.constant 0 : index
    %c0_90 = arith.constant 0 : index
    %c0_91 = arith.constant 0 : index
    %145 = vector.load %arg5[%c0_89, %c0_90, %c0_91] : memref<1x4x128xf32, #tpu.memory_space<vmem>>, vector<1x4x128xf32>
    %146 = vector.shape_cast %145 : vector<1x4x128xf32> to vector<4x128xf32>
    %147 = arith.mulf %127, %146 : vector<4x128xf32>
    %cst_92 = arith.constant dense<0.000000e+00> : vector<4xf32>
    %148 = vector.multi_reduction <add>, %147, %cst_92 [1] : vector<4x128xf32> to vector<4xf32>
    %149 = vector.shape_cast %148 : vector<4xf32> to vector<4x1xf32>
    %150 = arith.subf %144, %149 : vector<4x1xf32>
    %cst_93 = arith.constant dense<0.000000e+00> : vector<1xf32>
    %151 = vector.multi_reduction <add>, %150, %cst_93 [0] : vector<4x1xf32> to vector<1xf32>
    %152 = vector.shape_cast %151 : vector<1xf32> to vector<1x1xf32>
    %c0_94 = arith.constant 0 : index
    %c0_95 = arith.constant 0 : index
    %c0_96 = arith.constant 0 : index
    %153 = vector.load %arg27[%c0_94, %c0_95, %c0_96] : memref<1x1x1xf32, #tpu.memory_space<vmem>>, vector<1x1x1xf32>
    %154 = vector.shape_cast %153 : vector<1x1x1xf32> to vector<1x1xf32>
    %155 = vector.shape_cast %152 : vector<1x1xf32> to vector<1x1x1xf32>
    tpu.vector_store %arg27[%c0_94, %c0_95, %c0_96], %155 {strides = array<i32>} : memref<1x1x1xf32, #tpu.memory_space<vmem>>, vector<1x1x1xf32>,
    return
  }
  func.func @transform_0(%arg0: i32) -> (i32, i32, i32) {
    %c0_i32 = arith.constant 0 : i32
    %c0_i32_0 = arith.constant 0 : i32
    %c0_i32_1 = arith.constant 0 : i32
    return %arg0, %c0_i32, %c0_i32_0 : i32, i32, i32
  }
  func.func @transform_1(%arg0: i32) -> (i32, i32, i32) {
    %c0_i32 = arith.constant 0 : i32
    %c0_i32_0 = arith.constant 0 : i32
    %c0_i32_1 = arith.constant 0 : i32
    return %arg0, %c0_i32, %c0_i32_0 : i32, i32, i32
  }
  func.func @transform_2(%arg0: i32) -> (i32, i32, i32) {
    %c0_i32 = arith.constant 0 : i32
    %c0_i32_0 = arith.constant 0 : i32
    %c0_i32_1 = arith.constant 0 : i32
    return %arg0, %c0_i32, %c0_i32_0 : i32, i32, i32
  }
  func.func @transform_3(%arg0: i32) -> (i32, i32, i32) {
    %c0_i32 = arith.constant 0 : i32
    %c0_i32_0 = arith.constant 0 : i32
    %c0_i32_1 = arith.constant 0 : i32
    return %arg0, %c0_i32, %c0_i32_0 : i32, i32, i32
  }
  func.func @transform_4(%arg0: i32) -> (i32, i32, i32) {
    %c0_i32 = arith.constant 0 : i32
    %c0_i32_0 = arith.constant 0 : i32
    %c0_i32_1 = arith.constant 0 : i32
    return %arg0, %c0_i32, %c0_i32_0 : i32, i32, i32
  }
  func.func @transform_5(%arg0: i32) -> (i32, i32) {
    %c0_i32 = arith.constant 0 : i32
    %c0_i32_0 = arith.constant 0 : i32
    %c0_i32_1 = arith.constant 0 : i32
    return %c0_i32, %c0_i32_0 : i32, i32
  }
  func.func @transform_6(%arg0: i32) -> (i32, i32) {
    %c0_i32 = arith.constant 0 : i32
    %c0_i32_0 = arith.constant 0 : i32
    %c0_i32_1 = arith.constant 0 : i32
    return %c0_i32, %c0_i32_0 : i32, i32
  }
  func.func @transform_7(%arg0: i32) -> (i32, i32) {
    %c0_i32 = arith.constant 0 : i32
    %c0_i32_0 = arith.constant 0 : i32
    %c0_i32_1 = arith.constant 0 : i32
    return %c0_i32, %c0_i32_0 : i32, i32
  }
  func.func @transform_8(%arg0: i32) -> (i32, i32) {
    %c0_i32 = arith.constant 0 : i32
    %c0_i32_0 = arith.constant 0 : i32
    %c0_i32_1 = arith.constant 0 : i32
    return %c0_i32, %c0_i32_0 : i32, i32
  }
  func.func @transform_9(%arg0: i32) -> (i32, i32) {
    %c0_i32 = arith.constant 0 : i32
    %c0_i32_0 = arith.constant 0 : i32
    %c0_i32_1 = arith.constant 0 : i32
    return %c0_i32, %c0_i32_0 : i32, i32
  }
  func.func @transform_10(%arg0: i32) -> (i32, i32) {
    %c0_i32 = arith.constant 0 : i32
    %c0_i32_0 = arith.constant 0 : i32
    %c0_i32_1 = arith.constant 0 : i32
    return %c0_i32, %c0_i32_0 : i32, i32
  }
  func.func @transform_11(%arg0: i32) -> (i32, i32) {
    %c0_i32 = arith.constant 0 : i32
    %c0_i32_0 = arith.constant 0 : i32
    %c0_i32_1 = arith.constant 0 : i32
    return %c0_i32, %c0_i32_0 : i32, i32
  }
  func.func @transform_12(%arg0: i32) -> (i32, i32) {
    %c0_i32 = arith.constant 0 : i32
    %c0_i32_0 = arith.constant 0 : i32
    %c0_i32_1 = arith.constant 0 : i32
    return %c0_i32, %c0_i32_0 : i32, i32
  }
  func.func @transform_13(%arg0: i32) -> (i32, i32) {
    %c0_i32 = arith.constant 0 : i32
    %c0_i32_0 = arith.constant 0 : i32
    %c0_i32_1 = arith.constant 0 : i32
    return %c0_i32, %c0_i32_0 : i32, i32
  }
  func.func @transform_14(%arg0: i32) -> (i32, i32) {
    %c0_i32 = arith.constant 0 : i32
    %c0_i32_0 = arith.constant 0 : i32
    %c0_i32_1 = arith.constant 0 : i32
    return %c0_i32, %c0_i32_0 : i32, i32
  }
  func.func @transform_15(%arg0: i32) -> (i32, i32, i32) {
    %c0_i32 = arith.constant 0 : i32
    %c0_i32_0 = arith.constant 0 : i32
    %c0_i32_1 = arith.constant 0 : i32
    %c0_i32_2 = arith.constant 0 : i32
    return %c0_i32, %c0_i32_0, %c0_i32_1 : i32, i32, i32
  }
  func.func @transform_16(%arg0: i32) -> (i32, i32) {
    %c0_i32 = arith.constant 0 : i32
    %c0_i32_0 = arith.constant 0 : i32
    %c0_i32_1 = arith.constant 0 : i32
    return %c0_i32, %c0_i32_0 : i32, i32
  }
  func.func @transform_17(%arg0: i32) -> (i32, i32) {
    %c0_i32 = arith.constant 0 : i32
    %c0_i32_0 = arith.constant 0 : i32
    %c0_i32_1 = arith.constant 0 : i32
    return %c0_i32, %c0_i32_0 : i32, i32
  }
  func.func @transform_18(%arg0: i32) -> (i32, i32) {
    %c0_i32 = arith.constant 0 : i32
    %c0_i32_0 = arith.constant 0 : i32
    %c0_i32_1 = arith.constant 0 : i32
    return %c0_i32, %c0_i32_0 : i32, i32
  }
  func.func @transform_19(%arg0: i32) -> (i32, i32) {
    %c0_i32 = arith.constant 0 : i32
    %c0_i32_0 = arith.constant 0 : i32
    %c0_i32_1 = arith.constant 0 : i32
    return %c0_i32, %c0_i32_0 : i32, i32
  }
  func.func @transform_20(%arg0: i32) -> (i32, i32) {
    %c0_i32 = arith.constant 0 : i32
    %c0_i32_0 = arith.constant 0 : i32
    %c0_i32_1 = arith.constant 0 : i32
    return %c0_i32, %c0_i32_0 : i32, i32
  }
  func.func @transform_21(%arg0: i32) -> (i32, i32) {
    %c0_i32 = arith.constant 0 : i32
    %c0_i32_0 = arith.constant 0 : i32
    %c0_i32_1 = arith.constant 0 : i32
    return %c0_i32, %c0_i32_0 : i32, i32
  }
  func.func @transform_22(%arg0: i32) -> (i32, i32) {
    %c0_i32 = arith.constant 0 : i32
    %c0_i32_0 = arith.constant 0 : i32
    %c0_i32_1 = arith.constant 0 : i32
    return %c0_i32, %c0_i32_0 : i32, i32
  }
  func.func @transform_23(%arg0: i32) -> (i32, i32) {
    %c0_i32 = arith.constant 0 : i32
    %c0_i32_0 = arith.constant 0 : i32
    %c0_i32_1 = arith.constant 0 : i32
    return %c0_i32, %c0_i32_0 : i32, i32
  }
  func.func @transform_24(%arg0: i32) -> (i32, i32) {
    %c0_i32 = arith.constant 0 : i32
    %c0_i32_0 = arith.constant 0 : i32
    %c0_i32_1 = arith.constant 0 : i32
    return %c0_i32, %c0_i32_0 : i32, i32
  }
  func.func @transform_25(%arg0: i32) -> (i32, i32, i32) {
    %c0_i32 = arith.constant 0 : i32
    %c0_i32_0 = arith.constant 0 : i32
    %c0_i32_1 = arith.constant 0 : i32
    return %arg0, %c0_i32, %c0_i32_0 : i32, i32, i32
  }
  func.func @transform_26(%arg0: i32) -> (i32, i32, i32) {
    %c0_i32 = arith.constant 0 : i32
    %c0_i32_0 = arith.constant 0 : i32
    %c0_i32_1 = arith.constant 0 : i32
    return %arg0, %c0_i32, %c0_i32_0 : i32, i32, i32
  }
}

</mosaic_0001>

<llo_original>
// kernel: tpu_custom_call.1
$region0: #{tpu_custom_call.1}
  #allocation0 [shape = 'u32[]', space=smem, size = 0x4, offset = 0x4, fixed_abs, tag = 'smem constant byte address 0x4 - core index']
  #allocation1 [shape = 'u32[144,128]{1,0:T(1,128)}', space=vmem, size = 0x12000, scoped, tag = 'internal scratch']
  #allocation2 [shape = 'f32[1,1]{1,0:T(1,128)S(1)}', space=vmem, size = 0x200, scoped, tag = 'scoped memory for tpu_custom_call.1']
  %s0 = inlined_call_operand.vmem [shape: f32[4,16,16], index: 0, kind: input, shape index: {}]
  %s1 = inlined_call_operand.vmem [shape: f32[4,16,16], index: 1, kind: input, shape index: {}]
  %s2 = inlined_call_operand.hbm [shape: f32[1,4,256], index: 2, kind: input, shape index: {}]
  %s3 = inlined_call_operand.hbm [shape: f32[1,4,256], index: 3, kind: input, shape index: {}]
  %s4 = inlined_call_operand.hbm [shape: f32[1,4,128], index: 4, kind: input, shape index: {}]
  %s5 = inlined_call_operand.hbm [shape: f32[16,512], index: 5, kind: input, shape index: {}]
  %s6 = inlined_call_operand.hbm [shape: f32[1,512], index: 6, kind: input, shape index: {}]
  %s7 = inlined_call_operand.hbm [shape: f32[16,512], index: 7, kind: input, shape index: {}]
  %s8 = inlined_call_operand.hbm [shape: f32[1,512], index: 8, kind: input, shape index: {}]
  %s9 = inlined_call_operand.hbm [shape: f32[256,512], index: 9, kind: input, shape index: {}]
  %s10 = inlined_call_operand.hbm [shape: f32[256,512], index: 10, kind: input, shape index: {}]
  %s11 = inlined_call_operand.vmem [shape: bf16[512,64], index: 11, kind: input, shape index: {}]
  %s12 = inlined_call_operand.hbm [shape: f32[1,64], index: 12, kind: input, shape index: {}]
  %s13 = inlined_call_operand.vmem [shape: bf16[512,64], index: 13, kind: input, shape index: {}]
  %s14 = inlined_call_operand.vmem [shape: f32[1,64], index: 14, kind: input, shape index: {}]
  %s15 = inlined_call_operand.vmem [shape: f32[1,16,64], index: 15, kind: input, shape index: {}]
  %s16 = inlined_call_operand.<no memory space> [shape: f32[1,1], index: 16, kind: input, shape index: {}]
  %s17 = inlined_call_operand.hbm [shape: f32[16,256], index: 17, kind: input, shape index: {}]
  %s18 = inlined_call_operand.vmem [shape: f32[1,256], index: 18, kind: input, shape index: {}]
  %s19 = inlined_call_operand.vmem [shape: f32[256,128], index: 19, kind: input, shape index: {}]
  %s20 = inlined_call_operand.vmem [shape: f32[1,128], index: 20, kind: input, shape index: {}]
  %s21 = inlined_call_operand.vmem [shape: f32[128,128], index: 21, kind: input, shape index: {}]
  %s22 = inlined_call_operand.vmem [shape: f32[1,128], index: 22, kind: input, shape index: {}]
  %s23 = inlined_call_operand.vmem [shape: f32[128,128], index: 23, kind: input, shape index: {}]
  %s24 = inlined_call_operand.vmem [shape: f32[1,128], index: 24, kind: input, shape index: {}]
  %s25 = inlined_call_operand.hbm [shape: f32[1,4,128], index: 25, kind: output, shape index: {0}]
  %s26 = inlined_call_operand.hbm [shape: f32[1,1,1], index: 26, kind: output, shape index: {1}]
  %27 = xla_tuple %s25, %s26
  %s28 = sld [smem:[#allocation0]]
  $region162: #{tpu_custom_call.1} parent=0
    _
  %s30 = ssub.s32 1, %s28
  %s31 = scalar_select 0, %s30, %s28
  %v32 = vstv %s16
  %33 = vst [vmem:[#allocation2] sm:$0x1] %v32
  $region1: #{tpu_custom_call.1} parent=0
    #allocation3 [shape = 'u8[4096]{0}', space=vmem, size = 0x1000, scoped, tag = 'input window, operand 2, single buffered']
    #allocation4 [shape = 's32[1]{0}', space=sflag, size = 0x4, scoped, tag = 'scoped memory for tpu_custom_call.1']
    #allocation5 [shape = 's32[1]{0}', space=sflag, size = 0x4, scoped, tag = 'scoped memory for tpu_custom_call.1']
    #allocation6 [shape = 'u8[4096]{0}', space=vmem, size = 0x1000, scoped, tag = 'input window, operand 3, single buffered']
    #allocation7 [shape = 's32[1]{0}', space=sflag, size = 0x4, scoped, tag = 'scoped memory for tpu_custom_call.1']
    #allocation8 [shape = 'u8[2048]{0}', space=vmem, size = 0x800, scoped, tag = 'input window, operand 4, single buffered']
    #allocation9 [shape = 'u8[32768]{0}', space=vmem, size = 0x8000, scoped, tag = 'input window, operand 5, single buffered']
    #allocation10 [shape = 's32[1]{0}', space=sflag, size = 0x4, scoped, tag = 'scoped memory for tpu_custom_call.1']
    #allocation11 [shape = 'u8[2048]{0}', space=vmem, size = 0x800, scoped, tag = 'input window, operand 6, single buffered']
    #allocation12 [shape = 'u8[32768]{0}', space=vmem, size = 0x8000, scoped, tag = 'input window, operand 7, single buffered']
    #allocation13 [shape = 's32[1]{0}', space=sflag, size = 0x4, scoped, tag = 'scoped memory for tpu_custom_call.1']
    #allocation14 [shape = 'u8[2048]{0}', space=vmem, size = 0x800, scoped, tag = 'input window, operand 8, single buffered']
    #allocation15 [shape = 'u8[524288]{0}', space=vmem, size = 0x80000, scoped, tag = 'input window, operand 9, single buffered']
    #allocation16 [shape = 's32[1]{0}', space=sflag, size = 0x4, scoped, tag = 'scoped memory for tpu_custom_call.1']
    #allocation17 [shape = 'u8[524288]{0}', space=vmem, size = 0x80000, scoped, tag = 'input window, operand 10, single buffered']
    #allocation18 [shape = 'u8[512]{0}', space=vmem, size = 0x400, scoped, tag = 'input window, operand 12, single buffered']
    #allocation19 [shape = 's32[1]{0}', space=sflag, size = 0x4, scoped, tag = 'scoped memory for tpu_custom_call.1']
    #allocation20 [shape = 'u8[16384]{0}', space=vmem, size = 0x4000, scoped, tag = 'input window, operand 17, single buffered']
    #allocation21 [shape = 'u8[2048]{0}', space=vmem, size = 0x800, scoped, tag = 'output window, operand 0, single buffered']
    #allocation22 [shape = 'u8[512]{0}', space=vmem, size = 0x400, scoped, tag = 'output window, operand 1, single buffered']
    #allocation23 [shape = 's32[1]{0}', space=sflag, size = 0x4, scoped, tag = 'scoped memory for tpu_custom_call.1']
    %34 = vsyncpa [#allocation4], 0
    %35 = vsyncpa [#allocation7], 0
    %36 = vsyncpa [#allocation10], 0
    %37 = vsyncpa [#allocation13], 0
    %38 = vsyncpa [#allocation16], 0
    %39 = vsyncpa [#allocation19], 0
    %40 = vsyncpa [#allocation5], 0
    %41 = vsyncpa [#allocation23], 0
    // Predicated region
    $region2: #{tpu_custom_call.1} parent=1 // pred_check
      _
    $region3: #{tpu_custom_call.1} parent=1 // pred_check_branch
      %43 = sbr.rel (0) target = $region5
    $region4: #{tpu_custom_call.1} parent=1 // pred_region
      _
    $region5: #{tpu_custom_call.1} parent=1 // pred_fallthru
      _
    // Predicated region
    $region6: #{tpu_custom_call.1} parent=1 // pred_check
      _
    $region7: #{tpu_custom_call.1} parent=1 // pred_check_branch
      %45 = sbr.rel (0) target = $region9
    $region8: #{tpu_custom_call.1} parent=1 // pred_region
      _
    $region9: #{tpu_custom_call.1} parent=1 // pred_fallthru
      _
    // Predicated region
    $region10: #{tpu_custom_call.1} parent=1 // pred_check
      _
    $region11: #{tpu_custom_call.1} parent=1 // pred_check_branch
      %47 = sbr.rel (0) target = $region13
    $region12: #{tpu_custom_call.1} parent=1 // pred_region
      %s49 = ssub.s32 128, 128
      %50 = vsyncadd [#allocation4], %s49
      %s52 = sshll.u32 [#allocation3], 4
      %s53 = int_to_ptr.vmem [resolvable:$true] %s52
      %55 = dma.hbm_to_vmem [thread:$0]  %s2, 128, %s53, [#allocation4]
    $region13: #{tpu_custom_call.1} parent=1 // pred_fallthru
      _
    // Predicated region
    $region14: #{tpu_custom_call.1} parent=1 // pred_check
      _
    $region15: #{tpu_custom_call.1} parent=1 // pred_check_branch
      %57 = sbr.rel (0) target = $region17
    $region16: #{tpu_custom_call.1} parent=1 // pred_region
      %s59 = ssub.s32 128, 128
      %60 = vsyncadd [#allocation7], %s59
      %s62 = sshll.u32 [#allocation6], 4
      %s63 = int_to_ptr.vmem [resolvable:$true] %s62
      %65 = dma.hbm_to_vmem [thread:$0]  %s3, 128, %s63, [#allocation7]
    $region17: #{tpu_custom_call.1} parent=1 // pred_fallthru
      _
    // Predicated region
    $region18: #{tpu_custom_call.1} parent=1 // pred_check
      _
    $region19: #{tpu_custom_call.1} parent=1 // pred_check_branch
      %67 = sbr.rel (0) target = $region21
    $region20: #{tpu_custom_call.1} parent=1 // pred_region
      %s69 = ssub.s32 64, 64
      %70 = vsyncadd [#allocation7], %s69
      %s72 = sshll.u32 [#allocation8], 4
      %s73 = int_to_ptr.vmem [resolvable:$true] %s72
      %75 = dma.hbm_to_vmem [thread:$0]  %s4, 64, %s73, [#allocation7]
    $region21: #{tpu_custom_call.1} parent=1 // pred_fallthru
      _
    // Predicated region
    $region22: #{tpu_custom_call.1} parent=1 // pred_check
      _
    $region23: #{tpu_custom_call.1} parent=1 // pred_check_branch
      %77 = sbr.rel (0) target = $region25
    $region24: #{tpu_custom_call.1} parent=1 // pred_region
      %s79 = ssub.s32 1024, 1024
      %80 = vsyncadd [#allocation10], %s79
      %s81 = sshll.u32 [#allocation9], 4
      %s82 = int_to_ptr.vmem [resolvable:$true] %s81
      %87 = dma.hbm_to_vmem [thread:$0]  %s5, 1024, %s82, [#allocation10], 512, 512, 32
    $region25: #{tpu_custom_call.1} parent=1 // pred_fallthru
      _
    // Predicated region
    $region26: #{tpu_custom_call.1} parent=1 // pred_check
      _
    $region27: #{tpu_custom_call.1} parent=1 // pred_check_branch
      %89 = sbr.rel (0) target = $region29
    $region28: #{tpu_custom_call.1} parent=1 // pred_region
      %s91 = ssub.s32 64, 64
      %92 = vsyncadd [#allocation10], %s91
      %s94 = sshll.u32 [#allocation11], 4
      %s95 = int_to_ptr.vmem [resolvable:$true] %s94
      %97 = dma.hbm_to_vmem [thread:$0]  %s6, 64, %s95, [#allocation10]
    $region29: #{tpu_custom_call.1} parent=1 // pred_fallthru
      _
    // Predicated region
    $region30: #{tpu_custom_call.1} parent=1 // pred_check
      _
    $region31: #{tpu_custom_call.1} parent=1 // pred_check_branch
      %99 = sbr.rel (0) target = $region33
    $region32: #{tpu_custom_call.1} parent=1 // pred_region
      %s101 = ssub.s32 1024, 1024
      %102 = vsyncadd [#allocation13], %s101
      %s103 = sshll.u32 [#allocation12], 4
      %s104 = int_to_ptr.vmem [resolvable:$true] %s103
      %109 = dma.hbm_to_vmem [thread:$0]  %s7, 1024, %s104, [#allocation13], 512, 512, 32
    $region33: #{tpu_custom_call.1} parent=1 // pred_fallthru
      _
    // Predicated region
    $region34: #{tpu_custom_call.1} parent=1 // pred_check
      _
    $region35: #{tpu_custom_call.1} parent=1 // pred_check_branch
      %111 = sbr.rel (0) target = $region37
    $region36: #{tpu_custom_call.1} parent=1 // pred_region
      %s113 = ssub.s32 64, 64
      %114 = vsyncadd [#allocation13], %s113
      %s116 = sshll.u32 [#allocation14], 4
      %s117 = int_to_ptr.vmem [resolvable:$true] %s116
      %119 = dma.hbm_to_vmem [thread:$0]  %s8, 64, %s117, [#allocation13]
    $region37: #{tpu_custom_call.1} parent=1 // pred_fallthru
      _
    // Predicated region
    $region38: #{tpu_custom_call.1} parent=1 // pred_check
      _
    $region39: #{tpu_custom_call.1} parent=1 // pred_check_branch
      %121 = sbr.rel (0) target = $region41
    $region40: #{tpu_custom_call.1} parent=1 // pred_region
      %s123 = ssub.s32 16384, 16384
      %124 = vsyncadd [#allocation16], %s123
      %s125 = sshll.u32 [#allocation15], 4
      %s126 = int_to_ptr.vmem [resolvable:$true] %s125
      %131 = dma.hbm_to_vmem [thread:$0]  %s9, 16384, %s126, [#allocation16], 512, 512, 32
    $region41: #{tpu_custom_call.1} parent=1 // pred_fallthru
      _
    // Predicated region
    $region42: #{tpu_custom_call.1} parent=1 // pred_check
      _
    $region43: #{tpu_custom_call.1} parent=1 // pred_check_branch
      %133 = sbr.rel (0) target = $region45
    $region44: #{tpu_custom_call.1} parent=1 // pred_region
      %s135 = ssub.s32 16384, 16384
      %136 = vsyncadd [#allocation16], %s135
      %s137 = sshll.u32 [#allocation17], 4
      %s138 = int_to_ptr.vmem [resolvable:$true] %s137
      %143 = dma.hbm_to_vmem [thread:$0]  %s10, 16384, %s138, [#allocation16], 512, 512, 32
    $region45: #{tpu_custom_call.1} parent=1 // pred_fallthru
      _
    // Predicated region
    $region46: #{tpu_custom_call.1} parent=1 // pred_check
      _
    $region47: #{tpu_custom_call.1} parent=1 // pred_check_branch
      %145 = sbr.rel (0) target = $region49
    $region48: #{tpu_custom_call.1} parent=1 // pred_region
      _
    $region49: #{tpu_custom_call.1} parent=1 // pred_fallthru
      _
    // Predicated region
    $region50: #{tpu_custom_call.1} parent=1 // pred_check
      _
    $region51: #{tpu_custom_call.1} parent=1 // pred_check_branch
      %147 = sbr.rel (0) target = $region53
    $region52: #{tpu_custom_call.1} parent=1 // pred_region
      %s149 = ssub.s32 16, 16
      %150 = vsyncadd [#allocation19], %s149
      %s152 = sshll.u32 [#allocation18], 4
      %s153 = int_to_ptr.vmem [resolvable:$true] %s152
      %155 = dma.hbm_to_vmem [thread:$0]  %s12, 16, %s153, [#allocation19]
    $region53: #{tpu_custom_call.1} parent=1 // pred_fallthru
      _
    // Predicated region
    $region54: #{tpu_custom_call.1} parent=1 // pred_check
      _
    $region55: #{tpu_custom_call.1} parent=1 // pred_check_branch
      %157 = sbr.rel (0) target = $region57
    $region56: #{tpu_custom_call.1} parent=1 // pred_region
      _
    $region57: #{tpu_custom_call.1} parent=1 // pred_fallthru
      _
    // Predicated region
    $region58: #{tpu_custom_call.1} parent=1 // pred_check
      _
    $region59: #{tpu_custom_call.1} parent=1 // pred_check_branch
      %159 = sbr.rel (0) target = $region61
    $region60: #{tpu_custom_call.1} parent=1 // pred_region
      _
    $region61: #{tpu_custom_call.1} parent=1 // pred_fallthru
      _
    // Predicated region
    $region62: #{tpu_custom_call.1} parent=1 // pred_check
      _
    $region63: #{tpu_custom_call.1} parent=1 // pred_check_branch
      %161 = sbr.rel (0) target = $region65
    $region64: #{tpu_custom_call.1} parent=1 // pred_region
      _
    $region65: #{tpu_custom_call.1} parent=1 // pred_fallthru
      _
    // Predicated region
    $region66: #{tpu_custom_call.1} parent=1 // pred_check
      _
    $region67: #{tpu_custom_call.1} parent=1 // pred_check_branch
      %163 = sbr.rel (0) target = $region69
    $region68: #{tpu_custom_call.1} parent=1 // pred_region
      _
    $region69: #{tpu_custom_call.1} parent=1 // pred_fallthru
      _
    // Predicated region
    $region70: #{tpu_custom_call.1} parent=1 // pred_check
      _
    $region71: #{tpu_custom_call.1} parent=1 // pred_check_branch
      %165 = sbr.rel (0) target = $region73
    $region72: #{tpu_custom_call.1} parent=1 // pred_region
      %s167 = ssub.s32 512, 512
      %168 = vsyncadd [#allocation19], %s167
      %s169 = sshll.u32 [#allocation20], 4
      %s170 = int_to_ptr.vmem [resolvable:$true] %s169
      %175 = dma.hbm_to_vmem [thread:$0]  %s17, 512, %s170, [#allocation19], 256, 256, 16
    $region73: #{tpu_custom_call.1} parent=1 // pred_fallthru
      _
    // Predicated region
    $region74: #{tpu_custom_call.1} parent=1 // pred_check
      _
    $region75: #{tpu_custom_call.1} parent=1 // pred_check_branch
      %177 = sbr.rel (0) target = $region77
    $region76: #{tpu_custom_call.1} parent=1 // pred_region
      _
    $region77: #{tpu_custom_call.1} parent=1 // pred_fallthru
      _
    // Predicated region
    $region78: #{tpu_custom_call.1} parent=1 // pred_check
      _
    $region79: #{tpu_custom_call.1} parent=1 // pred_check_branch
      %179 = sbr.rel (0) target = $region81
    $region80: #{tpu_custom_call.1} parent=1 // pred_region
      _
    $region81: #{tpu_custom_call.1} parent=1 // pred_fallthru
      _
    // Predicated region
    $region82: #{tpu_custom_call.1} parent=1 // pred_check
      _
    $region83: #{tpu_custom_call.1} parent=1 // pred_check_branch
      %181 = sbr.rel (0) target = $region85
    $region84: #{tpu_custom_call.1} parent=1 // pred_region
      _
    $region85: #{tpu_custom_call.1} parent=1 // pred_fallthru
      _
    // Predicated region
    $region86: #{tpu_custom_call.1} parent=1 // pred_check
      _
    $region87: #{tpu_custom_call.1} parent=1 // pred_check_branch
      %183 = sbr.rel (0) target = $region89
    $region88: #{tpu_custom_call.1} parent=1 // pred_region
      _
    $region89: #{tpu_custom_call.1} parent=1 // pred_fallthru
      _
    // Predicated region
    $region90: #{tpu_custom_call.1} parent=1 // pred_check
      _
    $region91: #{tpu_custom_call.1} parent=1 // pred_check_branch
      %185 = sbr.rel (0) target = $region93
    $region92: #{tpu_custom_call.1} parent=1 // pred_region
      _
    $region93: #{tpu_custom_call.1} parent=1 // pred_fallthru
      _
    // Predicated region
    $region94: #{tpu_custom_call.1} parent=1 // pred_check
      _
    $region95: #{tpu_custom_call.1} parent=1 // pred_check_branch
      %187 = sbr.rel (0) target = $region97
    $region96: #{tpu_custom_call.1} parent=1 // pred_region
      _
    $region97: #{tpu_custom_call.1} parent=1 // pred_fallthru
      _
    // Predicated region
    $region98: #{tpu_custom_call.1} parent=1 // pred_check
      _
    $region99: #{tpu_custom_call.1} parent=1 // pred_check_branch
      %189 = sbr.rel (0) target = $region101
    $region100: #{tpu_custom_call.1} parent=1 // pred_region
      _
    $region101: #{tpu_custom_call.1} parent=1 // pred_fallthru
      _
    // Predicated region
    $region102: #{tpu_custom_call.1} parent=1 // pred_check
      _
    $region103: #{tpu_custom_call.1} parent=1 // pred_check_branch
      %191 = sbr.rel (0) target = $region105
    $region104: #{tpu_custom_call.1} parent=1 // pred_region
      %192 = dma.done [#allocation4], 128
    $region105: #{tpu_custom_call.1} parent=1 // pred_fallthru
      _
    // Predicated region
    $region106: #{tpu_custom_call.1} parent=1 // pred_check
      _
    $region107: #{tpu_custom_call.1} parent=1 // pred_check_branch
      %194 = sbr.rel (0) target = $region109
    $region108: #{tpu_custom_call.1} parent=1 // pred_region
      %195 = dma.done [#allocation7], 128
    $region109: #{tpu_custom_call.1} parent=1 // pred_fallthru
      _
    // Predicated region
    $region110: #{tpu_custom_call.1} parent=1 // pred_check
      _
    $region111: #{tpu_custom_call.1} parent=1 // pred_check_branch
      %197 = sbr.rel (0) target = $region113
    $region112: #{tpu_custom_call.1} parent=1 // pred_region
      %198 = dma.done [#allocation7], 64
    $region113: #{tpu_custom_call.1} parent=1 // pred_fallthru
      _
    // Predicated region
    $region114: #{tpu_custom_call.1} parent=1 // pred_check
      _
    $region115: #{tpu_custom_call.1} parent=1 // pred_check_branch
      %200 = sbr.rel (0) target = $region117
    $region116: #{tpu_custom_call.1} parent=1 // pred_region
      %201 = dma.done [#allocation10], 1024
    $region117: #{tpu_custom_call.1} parent=1 // pred_fallthru
      _
    // Predicated region
    $region118: #{tpu_custom_call.1} parent=1 // pred_check
      _
    $region119: #{tpu_custom_call.1} parent=1 // pred_check_branch
      %203 = sbr.rel (0) target = $region121
    $region120: #{tpu_custom_call.1} parent=1 // pred_region
      %204 = dma.done [#allocation10], 64
    $region121: #{tpu_custom_call.1} parent=1 // pred_fallthru
      _
    // Predicated region
    $region122: #{tpu_custom_call.1} parent=1 // pred_check
      _
    $region123: #{tpu_custom_call.1} parent=1 // pred_check_branch
      %206 = sbr.rel (0) target = $region125
    $region124: #{tpu_custom_call.1} parent=1 // pred_region
      %207 = dma.done [#allocation13], 1024
    $region125: #{tpu_custom_call.1} parent=1 // pred_fallthru
      _
    // Predicated region
    $region126: #{tpu_custom_call.1} parent=1 // pred_check
      _
    $region127: #{tpu_custom_call.1} parent=1 // pred_check_branch
      %209 = sbr.rel (0) target = $region129
    $region128: #{tpu_custom_call.1} parent=1 // pred_region
      %210 = dma.done [#allocation13], 64
    $region129: #{tpu_custom_call.1} parent=1 // pred_fallthru
      _
    // Predicated region
    $region130: #{tpu_custom_call.1} parent=1 // pred_check
      _
    $region131: #{tpu_custom_call.1} parent=1 // pred_check_branch
      %212 = sbr.rel (0) target = $region133
    $region132: #{tpu_custom_call.1} parent=1 // pred_region
      %213 = dma.done [#allocation16], 16384
    $region133: #{tpu_custom_call.1} parent=1 // pred_fallthru
      _
    // Predicated region
    $region134: #{tpu_custom_call.1} parent=1 // pred_check
      _
    $region135: #{tpu_custom_call.1} parent=1 // pred_check_branch
      %215 = sbr.rel (0) target = $region137
    $region136: #{tpu_custom_call.1} parent=1 // pred_region
      %216 = dma.done [#allocation16], 16384
    $region137: #{tpu_custom_call.1} parent=1 // pred_fallthru
      _
    // Predicated region
    $region138: #{tpu_custom_call.1} parent=1 // pred_check
      _
    $region139: #{tpu_custom_call.1} parent=1 // pred_check_branch
      %218 = sbr.rel (0) target = $region141
    $region140: #{tpu_custom_call.1} parent=1 // pred_region
      %219 = dma.done [#allocation19], 16
    $region141: #{tpu_custom_call.1} parent=1 // pred_fallthru
      _
    // Predicated region
    $region142: #{tpu_custom_call.1} parent=1 // pred_check
      _
    $region143: #{tpu_custom_call.1} parent=1 // pred_check_branch
      %221 = sbr.rel (0) target = $region145
    $region144: #{tpu_custom_call.1} parent=1 // pred_region
      %222 = dma.done [#allocation19], 512
    $region145: #{tpu_custom_call.1} parent=1 // pred_fallthru
      _
    %v224 = vld [vmem:[%s0] sm:$0xff]
    %v225 = vld [vmem:[%s0 + $0x8] sm:$0xff]
    %v226 = vld [vmem:[%s0 + $0x10] sm:$0xff]
    %v227 = vld [vmem:[%s0 + $0x18] sm:$0xff]
    %v228 = vld [vmem:[%s0 + $0x20] sm:$0xff]
    %v229 = vld [vmem:[%s0 + $0x28] sm:$0xff]
    %v230 = vld [vmem:[%s0 + $0x30] sm:$0xff]
    %v231 = vld [vmem:[%s0 + $0x38] sm:$0xff]
    %v232 = vld [vmem:[%s1] sm:$0xff]
    %v233 = vld [vmem:[%s1 + $0x8] sm:$0xff]
    %v234 = vld [vmem:[%s1 + $0x10] sm:$0xff]
    %v235 = vld [vmem:[%s1 + $0x18] sm:$0xff]
    %v236 = vld [vmem:[%s1 + $0x20] sm:$0xff]
    %v237 = vld [vmem:[%s1 + $0x28] sm:$0xff]
    %v238 = vld [vmem:[%s1 + $0x30] sm:$0xff]
    %v239 = vld [vmem:[%s1 + $0x38] sm:$0xff]
    %v240 = vld [vmem:[#allocation3] sm:$0xff]
    %v241 = vld [vmem:[#allocation6] sm:$0xff]
    %v242 = vld [vmem:[#allocation9] sm:$0xff]
    %v243 = vld [vmem:[#allocation9 + $0x8] sm:$0xff]
    %v244 = vld [vmem:[#allocation9 + $0x10] sm:$0xff]
    %v245 = vld [vmem:[#allocation9 + $0x18] sm:$0xff]
    %v246 = vld [vmem:[#allocation9 + $0x20] sm:$0xff]
    %v247 = vld [vmem:[#allocation9 + $0x28] sm:$0xff]
    %v248 = vld [vmem:[#allocation9 + $0x30] sm:$0xff]
    %v249 = vld [vmem:[#allocation9 + $0x38] sm:$0xff]
    %v250 = vld [vmem:[#allocation11] sm:$0xf]
    %v252 = vlaneseq
    %v253 = vshrl.u32 %v252, 7
    %v254 = vsub.s32 0, %v253
    %v255 = vrot.slane %v250, %v254
    %v256 = vlaneseq
    %v257 = vshrl.u32 %v256, 7
    %v258 = vsub.s32 1, %v257
    %v259 = vrot.slane %v250, %v258
    %v260 = vlaneseq
    %v261 = vshrl.u32 %v260, 7
    %v262 = vsub.s32 2, %v261
    %v263 = vrot.slane %v250, %v262
    %v264 = vlaneseq
    %v265 = vshrl.u32 %v264, 7
    %v266 = vsub.s32 3, %v265
    %v267 = vrot.slane %v250, %v266
    %vm272 = vcmask 130048
    %v274 = vsel %vm272, %v224, 0
    %v277 = vsel %vm272, %v225, 0
    %v280 = vsel %vm272, %v226, 0
    %v283 = vsel %vm272, %v227, 0
    %v286 = vsel %vm272, %v228, 0
    %v289 = vsel %vm272, %v229, 0
    %v292 = vsel %vm272, %v230, 0
    %v295 = vsel %vm272, %v231, 0
    %297 = vmatprep.subr.mxu0 0.0
    %298 = vmatpush1.msra.mxu0 0.0
    %299 = vmatprep.subr.mxu0 0.0
    %300 = vmatpush1.msra.mxu0 0.0
    %301 = vmatprep.subr.mxu0 0.0
    %302 = vmatpush1.msra.mxu0 0.0
    %303 = vmatprep.subr.mxu0 0.0
    %304 = vmatpush1.msra.mxu0 0.0
    %305 = vmatprep.subr.mxu0 0.0
    %306 = vmatpush1.msra.mxu0 0.0
    %307 = vmatprep.subr.mxu0 0.0
    %308 = vmatpush1.msra.mxu0 0.0
    %309 = vmatprep.subr.mxu0 0.0
    %310 = vmatpush1.msra.mxu0 0.0
    %311 = vmatprep.subr.mxu0 0.0
    %312 = vmatpush1.msra.mxu0 0.0
    %313 = vmatprep.subr.mxu0 0.0
    %314 = vmatpush1.msra.mxu0 0.0
    %315 = vmatprep.subr.mxu0 0.0
    %316 = vmatpush1.msra.mxu0 0.0
    %317 = vmatprep.subr.mxu0 0.0
    %318 = vmatpush1.msra.mxu0 0.0
    %319 = vmatprep.subr.mxu0 0.0
    %320 = vmatpush1.msra.mxu0 0.0
    %321 = vmatprep.subr.mxu0 0.0
    %322 = vmatpush1.msra.mxu0 0.0
    %323 = vmatprep.subr.mxu0 0.0
    %324 = vmatpush1.msra.mxu0 0.0
    %325 = vmatprep.subr.mxu0 %v247
    %326 = vmatpush1.msra.mxu0 %v246
    %327 = vmatprep.subr.mxu0 %v243
    %328 = vmatpush1.msra.mxu0 %v242
    %329 = vmatprep.subr.mxu0 0.0
    %330 = vmatpush2.msra.mxu0 0.0
    %331 = vmatprep.subr.mxu0 0.0
    %332 = vmatpush2.msra.mxu0 0.0
    %333 = vmatprep.subr.mxu0 0.0
    %334 = vmatpush2.msra.mxu0 0.0
    %335 = vmatprep.subr.mxu0 0.0
    %336 = vmatpush2.msra.mxu0 0.0
    %337 = vmatprep.subr.mxu0 0.0
    %338 = vmatpush2.msra.mxu0 0.0
    %339 = vmatprep.subr.mxu0 0.0
    %340 = vmatpush2.msra.mxu0 0.0
    %341 = vmatprep.subr.mxu0 0.0
    %342 = vmatpush2.msra.mxu0 0.0
    %343 = vmatprep.subr.mxu0 0.0
    %344 = vmatpush2.msra.mxu0 0.0
    %345 = vmatprep.subr.mxu0 0.0
    %346 = vmatpush2.msra.mxu0 0.0
    %347 = vmatprep.subr.mxu0 0.0
    %348 = vmatpush2.msra.mxu0 0.0
    %349 = vmatprep.subr.mxu0 0.0
    %350 = vmatpush2.msra.mxu0 0.0
    %351 = vmatprep.subr.mxu0 0.0
    %352 = vmatpush2.msra.mxu0 0.0
    %353 = vmatprep.subr.mxu0 0.0
    %354 = vmatpush2.msra.mxu0 0.0
    %355 = vmatprep.subr.mxu0 0.0
    %356 = vmatpush2.msra.mxu0 0.0
    %357 = vmatprep.subr.mxu0 0.0
    %358 = vmatpush2.msra.mxu0 0.0
    %359 = vmatprep.subr.mxu0 0.0
    %360 = vmatpush2.msra.mxu0 0.0
    %361 = vmatprep.mubr.f32.mxu0 0.0
    %362 = vmatmul.mubr.f32.gmra.mxu0 %v274
    %v363 = vpop.f32.mrf.mxu0
    %v364 = vadd.f32 %v255, %v363
    %v365 = vpop.f32.mrf.mxu0
    %v366 = vadd.f32 %v259, %v365
    %367 = vmatprep.mubr.f32.mxu0 0.0
    %368 = vmatmul.mubr.f32.gmra.mxu0 %v277
    %v369 = vpop.f32.mrf.mxu0
    %v370 = vadd.f32 %v255, %v369
    %v371 = vpop.f32.mrf.mxu0
    %v372 = vadd.f32 %v259, %v371
    %373 = vmatprep.mubr.f32.mxu0 0.0
    %374 = vmatmul.mubr.f32.gmra.mxu0 %v280
    %v375 = vpop.f32.mrf.mxu0
    %v376 = vadd.f32 %v255, %v375
    %v377 = vpop.f32.mrf.mxu0
    %v378 = vadd.f32 %v259, %v377
    %379 = vmatprep.mubr.f32.mxu0 0.0
    %380 = vmatmul.mubr.f32.gmra.mxu0 %v283
    %v381 = vpop.f32.mrf.mxu0
    %v382 = vadd.f32 %v255, %v381
    %v383 = vpop.f32.mrf.mxu0
    %v384 = vadd.f32 %v259, %v383
    %385 = vmatprep.mubr.f32.mxu0 0.0
    %386 = vmatmul.mubr.f32.gmra.mxu0 %v286
    %v387 = vpop.f32.mrf.mxu0
    %v388 = vadd.f32 %v255, %v387
    %v389 = vpop.f32.mrf.mxu0
    %v390 = vadd.f32 %v259, %v389
    %391 = vmatprep.mubr.f32.mxu0 0.0
    %392 = vmatmul.mubr.f32.gmra.mxu0 %v289
    %v393 = vpop.f32.mrf.mxu0
    %v394 = vadd.f32 %v255, %v393
    %v395 = vpop.f32.mrf.mxu0
    %v396 = vadd.f32 %v259, %v395
    %397 = vmatprep.mubr.f32.mxu0 0.0
    %398 = vmatmul.mubr.f32.gmra.mxu0 %v292
    %v399 = vpop.f32.mrf.mxu0
    %v400 = vadd.f32 %v255, %v399
    %v401 = vpop.f32.mrf.mxu0
    %v402 = vadd.f32 %v259, %v401
    %403 = vmatprep.mubr.f32.mxu0 0.0
    %404 = vmatmul.mubr.f32.gmra.mxu0 %v295
    %v405 = vpop.f32.mrf.mxu0
    %v406 = vadd.f32 %v255, %v405
    %v407 = vpop.f32.mrf.mxu0
    %v408 = vadd.f32 %v259, %v407
    %409 = vdwg.mxu0
    %410 = vmatprep.subr.mxu0 0.0
    %411 = vmatpush1.msra.mxu0 0.0
    %412 = vmatprep.subr.mxu0 0.0
    %413 = vmatpush1.msra.mxu0 0.0
    %414 = vmatprep.subr.mxu0 0.0
    %415 = vmatpush1.msra.mxu0 0.0
    %416 = vmatprep.subr.mxu0 0.0
    %417 = vmatpush1.msra.mxu0 0.0
    %418 = vmatprep.subr.mxu0 0.0
    %419 = vmatpush1.msra.mxu0 0.0
    %420 = vmatprep.subr.mxu0 0.0
    %421 = vmatpush1.msra.mxu0 0.0
    %422 = vmatprep.subr.mxu0 0.0
    %423 = vmatpush1.msra.mxu0 0.0
    %424 = vmatprep.subr.mxu0 0.0
    %425 = vmatpush1.msra.mxu0 0.0
    %426 = vmatprep.subr.mxu0 0.0
    %427 = vmatpush1.msra.mxu0 0.0
    %428 = vmatprep.subr.mxu0 0.0
    %429 = vmatpush1.msra.mxu0 0.0
    %430 = vmatprep.subr.mxu0 0.0
    %431 = vmatpush1.msra.mxu0 0.0
    %432 = vmatprep.subr.mxu0 0.0
    %433 = vmatpush1.msra.mxu0 0.0
    %434 = vmatprep.subr.mxu0 0.0
    %435 = vmatpush1.msra.mxu0 0.0
    %436 = vmatprep.subr.mxu0 0.0
    %437 = vmatpush1.msra.mxu0 0.0
    %438 = vmatprep.subr.mxu0 %v249
    %439 = vmatpush1.msra.mxu0 %v248
    %440 = vmatprep.subr.mxu0 %v245
    %441 = vmatpush1.msra.mxu0 %v244
    %442 = vmatprep.subr.mxu0 0.0
    %443 = vmatpush2.msra.mxu0 0.0
    %444 = vmatprep.subr.mxu0 0.0
    %445 = vmatpush2.msra.mxu0 0.0
    %446 = vmatprep.subr.mxu0 0.0
    %447 = vmatpush2.msra.mxu0 0.0
    %448 = vmatprep.subr.mxu0 0.0
    %449 = vmatpush2.msra.mxu0 0.0
    %450 = vmatprep.subr.mxu0 0.0
    %451 = vmatpush2.msra.mxu0 0.0
    %452 = vmatprep.subr.mxu0 0.0
    %453 = vmatpush2.msra.mxu0 0.0
    %454 = vmatprep.subr.mxu0 0.0
    %455 = vmatpush2.msra.mxu0 0.0
    %456 = vmatprep.subr.mxu0 0.0
    %457 = vmatpush2.msra.mxu0 0.0
    %458 = vmatprep.subr.mxu0 0.0
    %459 = vmatpush2.msra.mxu0 0.0
    %460 = vmatprep.subr.mxu0 0.0
    %461 = vmatpush2.msra.mxu0 0.0
    %462 = vmatprep.subr.mxu0 0.0
    %463 = vmatpush2.msra.mxu0 0.0
    %464 = vmatprep.subr.mxu0 0.0
    %465 = vmatpush2.msra.mxu0 0.0
    %466 = vmatprep.subr.mxu0 0.0
    %467 = vmatpush2.msra.mxu0 0.0
    %468 = vmatprep.subr.mxu0 0.0
    %469 = vmatpush2.msra.mxu0 0.0
    %470 = vmatprep.subr.mxu0 0.0
    %471 = vmatpush2.msra.mxu0 0.0
    %472 = vmatprep.subr.mxu0 0.0
    %473 = vmatpush2.msra.mxu0 0.0
    %474 = vmatprep.mubr.f32.mxu0 0.0
    %475 = vmatmul.mubr.f32.gmra.mxu0 %v274
    %v476 = vpop.f32.mrf.mxu0
    %v477 = vadd.f32 %v263, %v476
    %v478 = vpop.f32.mrf.mxu0
    %v479 = vadd.f32 %v267, %v478
    %480 = vmatprep.mubr.f32.mxu0 0.0
    %481 = vmatmul.mubr.f32.gmra.mxu0 %v277
    %v482 = vpop.f32.mrf.mxu0
    %v483 = vadd.f32 %v263, %v482
    %v484 = vpop.f32.mrf.mxu0
    %v485 = vadd.f32 %v267, %v484
    %486 = vmatprep.mubr.f32.mxu0 0.0
    %487 = vmatmul.mubr.f32.gmra.mxu0 %v280
    %v488 = vpop.f32.mrf.mxu0
    %v489 = vadd.f32 %v263, %v488
    %v490 = vpop.f32.mrf.mxu0
    %v491 = vadd.f32 %v267, %v490
    %492 = vmatprep.mubr.f32.mxu0 0.0
    %493 = vmatmul.mubr.f32.gmra.mxu0 %v283
    %v494 = vpop.f32.mrf.mxu0
    %v495 = vadd.f32 %v263, %v494
    %v496 = vpop.f32.mrf.mxu0
    %v497 = vadd.f32 %v267, %v496
    %498 = vmatprep.mubr.f32.mxu0 0.0
    %499 = vmatmul.mubr.f32.gmra.mxu0 %v286
    %v500 = vpop.f32.mrf.mxu0
    %v501 = vadd.f32 %v263, %v500
    %v502 = vpop.f32.mrf.mxu0
    %v503 = vadd.f32 %v267, %v502
    %504 = vmatprep.mubr.f32.mxu0 0.0
    %505 = vmatmul.mubr.f32.gmra.mxu0 %v289
    %v506 = vpop.f32.mrf.mxu0
    %v507 = vadd.f32 %v263, %v506
    %v508 = vpop.f32.mrf.mxu0
    %v509 = vadd.f32 %v267, %v508
    %510 = vmatprep.mubr.f32.mxu0 0.0
    %511 = vmatmul.mubr.f32.gmra.mxu0 %v292
    %v512 = vpop.f32.mrf.mxu0
    %v513 = vadd.f32 %v263, %v512
    %v514 = vpop.f32.mrf.mxu0
    %v515 = vadd.f32 %v267, %v514
    %516 = vmatprep.mubr.f32.mxu0 0.0
    %517 = vmatmul.mubr.f32.gmra.mxu0 %v295
    %v518 = vpop.f32.mrf.mxu0
    %v519 = vadd.f32 %v263, %v518
    %v520 = vpop.f32.mrf.mxu0
    %v521 = vadd.f32 %v267, %v520
    %522 = vdwg.mxu0
    %v523 = vld [vmem:[#allocation12] sm:$0xff]
    %v524 = vld [vmem:[#allocation12 + $0x8] sm:$0xff]
    %v525 = vld [vmem:[#allocation12 + $0x10] sm:$0xff]
    %v526 = vld [vmem:[#allocation12 + $0x18] sm:$0xff]
    %v527 = vld [vmem:[#allocation12 + $0x20] sm:$0xff]
    %v528 = vld [vmem:[#allocation12 + $0x28] sm:$0xff]
    %v529 = vld [vmem:[#allocation12 + $0x30] sm:$0xff]
    %v530 = vld [vmem:[#allocation12 + $0x38] sm:$0xff]
    %v531 = vld [vmem:[#allocation14] sm:$0xf]
    %v533 = vlaneseq
    %v534 = vshrl.u32 %v533, 7
    %v535 = vsub.s32 0, %v534
    %v536 = vrot.slane %v531, %v535
    %v537 = vlaneseq
    %v538 = vshrl.u32 %v537, 7
    %v539 = vsub.s32 1, %v538
    %v540 = vrot.slane %v531, %v539
    %v541 = vlaneseq
    %v542 = vshrl.u32 %v541, 7
    %v543 = vsub.s32 2, %v542
    %v544 = vrot.slane %v531, %v543
    %v545 = vlaneseq
    %v546 = vshrl.u32 %v545, 7
    %v547 = vsub.s32 3, %v546
    %v548 = vrot.slane %v531, %v547
    %v554 = vsel %vm272, %v232, 0
    %v557 = vsel %vm272, %v233, 0
    %v560 = vsel %vm272, %v234, 0
    %v563 = vsel %vm272, %v235, 0
    %v566 = vsel %vm272, %v236, 0
    %v569 = vsel %vm272, %v237, 0
    %v572 = vsel %vm272, %v238, 0
    %v575 = vsel %vm272, %v239, 0
    %577 = vmatprep.subr.mxu0 0.0
    %578 = vmatpush1.msra.mxu0 0.0
    %579 = vmatprep.subr.mxu0 0.0
    %580 = vmatpush1.msra.mxu0 0.0
    %581 = vmatprep.subr.mxu0 0.0
    %582 = vmatpush1.msra.mxu0 0.0
    %583 = vmatprep.subr.mxu0 0.0
    %584 = vmatpush1.msra.mxu0 0.0
    %585 = vmatprep.subr.mxu0 0.0
    %586 = vmatpush1.msra.mxu0 0.0
    %587 = vmatprep.subr.mxu0 0.0
    %588 = vmatpush1.msra.mxu0 0.0
    %589 = vmatprep.subr.mxu0 0.0
    %590 = vmatpush1.msra.mxu0 0.0
    %591 = vmatprep.subr.mxu0 0.0
    %592 = vmatpush1.msra.mxu0 0.0
    %593 = vmatprep.subr.mxu0 0.0
    %594 = vmatpush1.msra.mxu0 0.0
    %595 = vmatprep.subr.mxu0 0.0
    %596 = vmatpush1.msra.mxu0 0.0
    %597 = vmatprep.subr.mxu0 0.0
    %598 = vmatpush1.msra.mxu0 0.0
    %599 = vmatprep.subr.mxu0 0.0
    %600 = vmatpush1.msra.mxu0 0.0
    %601 = vmatprep.subr.mxu0 0.0
    %602 = vmatpush1.msra.mxu0 0.0
    %603 = vmatprep.subr.mxu0 0.0
    %604 = vmatpush1.msra.mxu0 0.0
    %605 = vmatprep.subr.mxu0 %v528
    %606 = vmatpush1.msra.mxu0 %v527
    %607 = vmatprep.subr.mxu0 %v524
    %608 = vmatpush1.msra.mxu0 %v523
    %609 = vmatprep.subr.mxu0 0.0
    %610 = vmatpush2.msra.mxu0 0.0
    %611 = vmatprep.subr.mxu0 0.0
    %612 = vmatpush2.msra.mxu0 0.0
    %613 = vmatprep.subr.mxu0 0.0
    %614 = vmatpush2.msra.mxu0 0.0
    %615 = vmatprep.subr.mxu0 0.0
    %616 = vmatpush2.msra.mxu0 0.0
    %617 = vmatprep.subr.mxu0 0.0
    %618 = vmatpush2.msra.mxu0 0.0
    %619 = vmatprep.subr.mxu0 0.0
    %620 = vmatpush2.msra.mxu0 0.0
    %621 = vmatprep.subr.mxu0 0.0
    %622 = vmatpush2.msra.mxu0 0.0
    %623 = vmatprep.subr.mxu0 0.0
    %624 = vmatpush2.msra.mxu0 0.0
    %625 = vmatprep.subr.mxu0 0.0
    %626 = vmatpush2.msra.mxu0 0.0
    %627 = vmatprep.subr.mxu0 0.0
    %628 = vmatpush2.msra.mxu0 0.0
    %629 = vmatprep.subr.mxu0 0.0
    %630 = vmatpush2.msra.mxu0 0.0
    %631 = vmatprep.subr.mxu0 0.0
    %632 = vmatpush2.msra.mxu0 0.0
    %633 = vmatprep.subr.mxu0 0.0
    %634 = vmatpush2.msra.mxu0 0.0
    %635 = vmatprep.subr.mxu0 0.0
    %636 = vmatpush2.msra.mxu0 0.0
    %637 = vmatprep.subr.mxu0 0.0
    %638 = vmatpush2.msra.mxu0 0.0
    %639 = vmatprep.subr.mxu0 0.0
    %640 = vmatpush2.msra.mxu0 0.0
    %641 = vmatprep.mubr.f32.mxu0 0.0
    %642 = vmatmul.mubr.f32.gmra.mxu0 %v554
    %v643 = vpop.f32.mrf.mxu0
    %v644 = vadd.f32 %v536, %v643
    %v645 = vpop.f32.mrf.mxu0
    %v646 = vadd.f32 %v540, %v645
    %647 = vmatprep.mubr.f32.mxu0 0.0
    %648 = vmatmul.mubr.f32.gmra.mxu0 %v557
    %v649 = vpop.f32.mrf.mxu0
    %v650 = vadd.f32 %v536, %v649
    %v651 = vpop.f32.mrf.mxu0
    %v652 = vadd.f32 %v540, %v651
    %653 = vmatprep.mubr.f32.mxu0 0.0
    %654 = vmatmul.mubr.f32.gmra.mxu0 %v560
    %v655 = vpop.f32.mrf.mxu0
    %v656 = vadd.f32 %v536, %v655
    %v657 = vpop.f32.mrf.mxu0
    %v658 = vadd.f32 %v540, %v657
    %659 = vmatprep.mubr.f32.mxu0 0.0
    %660 = vmatmul.mubr.f32.gmra.mxu0 %v563
    %v661 = vpop.f32.mrf.mxu0
    %v662 = vadd.f32 %v536, %v661
    %v663 = vpop.f32.mrf.mxu0
    %v664 = vadd.f32 %v540, %v663
    %665 = vmatprep.mubr.f32.mxu0 0.0
    %666 = vmatmul.mubr.f32.gmra.mxu0 %v566
    %v667 = vpop.f32.mrf.mxu0
    %v668 = vadd.f32 %v536, %v667
    %v669 = vpop.f32.mrf.mxu0
    %v670 = vadd.f32 %v540, %v669
    %671 = vmatprep.mubr.f32.mxu0 0.0
    %672 = vmatmul.mubr.f32.gmra.mxu0 %v569
    %v673 = vpop.f32.mrf.mxu0
    %v674 = vadd.f32 %v536, %v673
    %v675 = vpop.f32.mrf.mxu0
    %v676 = vadd.f32 %v540, %v675
    %677 = vmatprep.mubr.f32.mxu0 0.0
    %678 = vmatmul.mubr.f32.gmra.mxu0 %v572
    %v679 = vpop.f32.mrf.mxu0
    %v680 = vadd.f32 %v536, %v679
    %v681 = vpop.f32.mrf.mxu0
    %v682 = vadd.f32 %v540, %v681
    %683 = vmatprep.mubr.f32.mxu0 0.0
    %684 = vmatmul.mubr.f32.gmra.mxu0 %v575
    %v685 = vpop.f32.mrf.mxu0
    %v686 = vadd.f32 %v536, %v685
    %v687 = vpop.f32.mrf.mxu0
    %v688 = vadd.f32 %v540, %v687
    %689 = vdwg.mxu0
    %690 = vmatprep.subr.mxu0 0.0
    %691 = vmatpush1.msra.mxu0 0.0
    %692 = vmatprep.subr.mxu0 0.0
    %693 = vmatpush1.msra.mxu0 0.0
    %694 = vmatprep.subr.mxu0 0.0
    %695 = vmatpush1.msra.mxu0 0.0
    %696 = vmatprep.subr.mxu0 0.0
    %697 = vmatpush1.msra.mxu0 0.0
    %698 = vmatprep.subr.mxu0 0.0
    %699 = vmatpush1.msra.mxu0 0.0
    %700 = vmatprep.subr.mxu0 0.0
    %701 = vmatpush1.msra.mxu0 0.0
    %702 = vmatprep.subr.mxu0 0.0
    %703 = vmatpush1.msra.mxu0 0.0
    %704 = vmatprep.subr.mxu0 0.0
    %705 = vmatpush1.msra.mxu0 0.0
    %706 = vmatprep.subr.mxu0 0.0
    %707 = vmatpush1.msra.mxu0 0.0
    %708 = vmatprep.subr.mxu0 0.0
    %709 = vmatpush1.msra.mxu0 0.0
    %710 = vmatprep.subr.mxu0 0.0
    %711 = vmatpush1.msra.mxu0 0.0
    %712 = vmatprep.subr.mxu0 0.0
    %713 = vmatpush1.msra.mxu0 0.0
    %714 = vmatprep.subr.mxu0 0.0
    %715 = vmatpush1.msra.mxu0 0.0
    %716 = vmatprep.subr.mxu0 0.0
    %717 = vmatpush1.msra.mxu0 0.0
    %718 = vmatprep.subr.mxu0 %v530
    %719 = vmatpush1.msra.mxu0 %v529
    %720 = vmatprep.subr.mxu0 %v526
    %721 = vmatpush1.msra.mxu0 %v525
    %722 = vmatprep.subr.mxu0 0.0
    %723 = vmatpush2.msra.mxu0 0.0
    %724 = vmatprep.subr.mxu0 0.0
    %725 = vmatpush2.msra.mxu0 0.0
    %726 = vmatprep.subr.mxu0 0.0
    %727 = vmatpush2.msra.mxu0 0.0
    %728 = vmatprep.subr.mxu0 0.0
    %729 = vmatpush2.msra.mxu0 0.0
    %730 = vmatprep.subr.mxu0 0.0
    %731 = vmatpush2.msra.mxu0 0.0
    %732 = vmatprep.subr.mxu0 0.0
    %733 = vmatpush2.msra.mxu0 0.0
    %734 = vmatprep.subr.mxu0 0.0
    %735 = vmatpush2.msra.mxu0 0.0
    %736 = vmatprep.subr.mxu0 0.0
    %737 = vmatpush2.msra.mxu0 0.0
    %738 = vmatprep.subr.mxu0 0.0
    %739 = vmatpush2.msra.mxu0 0.0
    %740 = vmatprep.subr.mxu0 0.0
    %741 = vmatpush2.msra.mxu0 0.0
    %742 = vmatprep.subr.mxu0 0.0
    %743 = vmatpush2.msra.mxu0 0.0
    %744 = vmatprep.subr.mxu0 0.0
    %745 = vmatpush2.msra.mxu0 0.0
    %746 = vmatprep.subr.mxu0 0.0
    %747 = vmatpush2.msra.mxu0 0.0
    %748 = vmatprep.subr.mxu0 0.0
    %749 = vmatpush2.msra.mxu0 0.0
    %750 = vmatprep.subr.mxu0 0.0
    %751 = vmatpush2.msra.mxu0 0.0
    %752 = vmatprep.subr.mxu0 0.0
    %753 = vmatpush2.msra.mxu0 0.0
    %754 = vmatprep.mubr.f32.mxu0 0.0
    %755 = vmatmul.mubr.f32.gmra.mxu0 %v554
    %v756 = vpop.f32.mrf.mxu0
    %v757 = vadd.f32 %v544, %v756
    %v758 = vpop.f32.mrf.mxu0
    %v759 = vadd.f32 %v548, %v758
    %760 = vmatprep.mubr.f32.mxu0 0.0
    %761 = vmatmul.mubr.f32.gmra.mxu0 %v557
    %v762 = vpop.f32.mrf.mxu0
    %v763 = vadd.f32 %v544, %v762
    %v764 = vpop.f32.mrf.mxu0
    %v765 = vadd.f32 %v548, %v764
    %766 = vmatprep.mubr.f32.mxu0 0.0
    %767 = vmatmul.mubr.f32.gmra.mxu0 %v560
    %v768 = vpop.f32.mrf.mxu0
    %v769 = vadd.f32 %v544, %v768
    %v770 = vpop.f32.mrf.mxu0
    %v771 = vadd.f32 %v548, %v770
    %772 = vmatprep.mubr.f32.mxu0 0.0
    %773 = vmatmul.mubr.f32.gmra.mxu0 %v563
    %v774 = vpop.f32.mrf.mxu0
    %v775 = vadd.f32 %v544, %v774
    %v776 = vpop.f32.mrf.mxu0
    %v777 = vadd.f32 %v548, %v776
    %778 = vmatprep.mubr.f32.mxu0 0.0
    %779 = vmatmul.mubr.f32.gmra.mxu0 %v566
    %v780 = vpop.f32.mrf.mxu0
    %v781 = vadd.f32 %v544, %v780
    %v782 = vpop.f32.mrf.mxu0
    %v783 = vadd.f32 %v548, %v782
    %784 = vmatprep.mubr.f32.mxu0 0.0
    %785 = vmatmul.mubr.f32.gmra.mxu0 %v569
    %v786 = vpop.f32.mrf.mxu0
    %v787 = vadd.f32 %v544, %v786
    %v788 = vpop.f32.mrf.mxu0
    %v789 = vadd.f32 %v548, %v788
    %790 = vmatprep.mubr.f32.mxu0 0.0
    %791 = vmatmul.mubr.f32.gmra.mxu0 %v572
    %v792 = vpop.f32.mrf.mxu0
    %v793 = vadd.f32 %v544, %v792
    %v794 = vpop.f32.mrf.mxu0
    %v795 = vadd.f32 %v548, %v794
    %796 = vmatprep.mubr.f32.mxu0 0.0
    %797 = vmatmul.mubr.f32.gmra.mxu0 %v575
    %v798 = vpop.f32.mrf.mxu0
    %v799 = vadd.f32 %v544, %v798
    %v800 = vpop.f32.mrf.mxu0
    %v801 = vadd.f32 %v548, %v800
    %802 = vdwg.mxu0
    %v803 = vld [vmem:[#allocation15] sm:$0xff]
    %v804 = vld [vmem:[#allocation15 + $0x8] sm:$0xff]
    %v805 = vld [vmem:[#allocation15 + $0x10] sm:$0xff]
    %v806 = vld [vmem:[#allocation15 + $0x18] sm:$0xff]
    %v807 = vld [vmem:[#allocation15 + $0x20] sm:$0xff]
    %v808 = vld [vmem:[#allocation15 + $0x28] sm:$0xff]
    %v809 = vld [vmem:[#allocation15 + $0x30] sm:$0xff]
    %v810 = vld [vmem:[#allocation15 + $0x38] sm:$0xff]
    %v811 = vld [vmem:[#allocation15 + $0x40] sm:$0xff]
    %v812 = vld [vmem:[#allocation15 + $0x48] sm:$0xff]
    %v813 = vld [vmem:[#allocation15 + $0x50] sm:$0xff]
    %v814 = vld [vmem:[#allocation15 + $0x58] sm:$0xff]
    %v815 = vld [vmem:[#allocation15 + $0x60] sm:$0xff]
    %v816 = vld [vmem:[#allocation15 + $0x68] sm:$0xff]
    %v817 = vld [vmem:[#allocation15 + $0x70] sm:$0xff]
    %v818 = vld [vmem:[#allocation15 + $0x78] sm:$0xff]
    %v819 = vld [vmem:[#allocation15 + $0x80] sm:$0xff]
    %v820 = vld [vmem:[#allocation15 + $0x88] sm:$0xff]
    %v821 = vld [vmem:[#allocation15 + $0x90] sm:$0xff]
    %v822 = vld [vmem:[#allocation15 + $0x98] sm:$0xff]
    %v823 = vld [vmem:[#allocation15 + $0xa0] sm:$0xff]
    %v824 = vld [vmem:[#allocation15 + $0xa8] sm:$0xff]
    %v825 = vld [vmem:[#allocation15 + $0xb0] sm:$0xff]
    %v826 = vld [vmem:[#allocation15 + $0xb8] sm:$0xff]
    %v827 = vld [vmem:[#allocation15 + $0xc0] sm:$0xff]
    %v828 = vld [vmem:[#allocation15 + $0xc8] sm:$0xff]
    %v829 = vld [vmem:[#allocation15 + $0xd0] sm:$0xff]
    %v830 = vld [vmem:[#allocation15 + $0xd8] sm:$0xff]
    %v831 = vld [vmem:[#allocation15 + $0xe0] sm:$0xff]
    %v832 = vld [vmem:[#allocation15 + $0xe8] sm:$0xff]
    %v833 = vld [vmem:[#allocation15 + $0xf0] sm:$0xff]
    %v834 = vld [vmem:[#allocation15 + $0xf8] sm:$0xff]
    %v835 = vld [vmem:[#allocation15 + $0x100] sm:$0xff]
    %v836 = vld [vmem:[#allocation15 + $0x108] sm:$0xff]
    %v837 = vld [vmem:[#allocation15 + $0x110] sm:$0xff]
    %v838 = vld [vmem:[#allocation15 + $0x118] sm:$0xff]
    %v839 = vld [vmem:[#allocation15 + $0x120] sm:$0xff]
    %v840 = vld [vmem:[#allocation15 + $0x128] sm:$0xff]
    %v841 = vld [vmem:[#allocation15 + $0x130] sm:$0xff]
    %v842 = vld [vmem:[#allocation15 + $0x138] sm:$0xff]
    %v843 = vld [vmem:[#allocation15 + $0x140] sm:$0xff]
    %v844 = vld [vmem:[#allocation15 + $0x148] sm:$0xff]
    %v845 = vld [vmem:[#allocation15 + $0x150] sm:$0xff]
    %v846 = vld [vmem:[#allocation15 + $0x158] sm:$0xff]
    %v847 = vld [vmem:[#allocation15 + $0x160] sm:$0xff]
    %v848 = vld [vmem:[#allocation15 + $0x168] sm:$0xff]
    %v849 = vld [vmem:[#allocation15 + $0x170] sm:$0xff]
    %v850 = vld [vmem:[#allocation15 + $0x178] sm:$0xff]
    %v851 = vld [vmem:[#allocation15 + $0x180] sm:$0xff]
    %v852 = vld [vmem:[#allocation15 + $0x188] sm:$0xff]
    %v853 = vld [vmem:[#allocation15 + $0x190] sm:$0xff]
    %v854 = vld [vmem:[#allocation15 + $0x198] sm:$0xff]
    %v855 = vld [vmem:[#allocation15 + $0x1a0] sm:$0xff]
    %v856 = vld [vmem:[#allocation15 + $0x1a8] sm:$0xff]
    %v857 = vld [vmem:[#allocation15 + $0x1b0] sm:$0xff]
    %v858 = vld [vmem:[#allocation15 + $0x1b8] sm:$0xff]
    %v859 = vld [vmem:[#allocation15 + $0x1c0] sm:$0xff]
    %v860 = vld [vmem:[#allocation15 + $0x1c8] sm:$0xff]
    %v861 = vld [vmem:[#allocation15 + $0x1d0] sm:$0xff]
    %v862 = vld [vmem:[#allocation15 + $0x1d8] sm:$0xff]
    %v863 = vld [vmem:[#allocation15 + $0x1e0] sm:$0xff]
    %v864 = vld [vmem:[#allocation15 + $0x1e8] sm:$0xff]
    %v865 = vld [vmem:[#allocation15 + $0x1f0] sm:$0xff]
    %v866 = vld [vmem:[#allocation15 + $0x1f8] sm:$0xff]
    %v867 = vld [vmem:[#allocation15 + $0x200] sm:$0xff]
    %v868 = vld [vmem:[#allocation15 + $0x208] sm:$0xff]
    %v869 = vld [vmem:[#allocation15 + $0x210] sm:$0xff]
    %v870 = vld [vmem:[#allocation15 + $0x218] sm:$0xff]
    %v871 = vld [vmem:[#allocation15 + $0x220] sm:$0xff]
    %v872 = vld [vmem:[#allocation15 + $0x228] sm:$0xff]
    %v873 = vld [vmem:[#allocation15 + $0x230] sm:$0xff]
    %v874 = vld [vmem:[#allocation15 + $0x238] sm:$0xff]
    %v875 = vld [vmem:[#allocation15 + $0x240] sm:$0xff]
    %v876 = vld [vmem:[#allocation15 + $0x248] sm:$0xff]
    %v877 = vld [vmem:[#allocation15 + $0x250] sm:$0xff]
    %v878 = vld [vmem:[#allocation15 + $0x258] sm:$0xff]
    %v879 = vld [vmem:[#allocation15 + $0x260] sm:$0xff]
    %v880 = vld [vmem:[#allocation15 + $0x268] sm:$0xff]
    %v881 = vld [vmem:[#allocation15 + $0x270] sm:$0xff]
    %v882 = vld [vmem:[#allocation15 + $0x278] sm:$0xff]
    %v883 = vld [vmem:[#allocation15 + $0x280] sm:$0xff]
    %v884 = vld [vmem:[#allocation15 + $0x288] sm:$0xff]
    %v885 = vld [vmem:[#allocation15 + $0x290] sm:$0xff]
    %v886 = vld [vmem:[#allocation15 + $0x298] sm:$0xff]
    %v887 = vld [vmem:[#allocation15 + $0x2a0] sm:$0xff]
    %v888 = vld [vmem:[#allocation15 + $0x2a8] sm:$0xff]
    %v889 = vld [vmem:[#allocation15 + $0x2b0] sm:$0xff]
    %v890 = vld [vmem:[#allocation15 + $0x2b8] sm:$0xff]
    %v891 = vld [vmem:[#allocation15 + $0x2c0] sm:$0xff]
    %v892 = vld [vmem:[#allocation15 + $0x2c8] sm:$0xff]
    %v893 = vld [vmem:[#allocation15 + $0x2d0] sm:$0xff]
    %v894 = vld [vmem:[#allocation15 + $0x2d8] sm:$0xff]
    %v895 = vld [vmem:[#allocation15 + $0x2e0] sm:$0xff]
    %v896 = vld [vmem:[#allocation15 + $0x2e8] sm:$0xff]
    %v897 = vld [vmem:[#allocation15 + $0x2f0] sm:$0xff]
    %v898 = vld [vmem:[#allocation15 + $0x2f8] sm:$0xff]
    %v899 = vld [vmem:[#allocation15 + $0x300] sm:$0xff]
    %v900 = vld [vmem:[#allocation15 + $0x308] sm:$0xff]
    %v901 = vld [vmem:[#allocation15 + $0x310] sm:$0xff]
    %v902 = vld [vmem:[#allocation15 + $0x318] sm:$0xff]
    %v903 = vld [vmem:[#allocation15 + $0x320] sm:$0xff]
    %v904 = vld [vmem:[#allocation15 + $0x328] sm:$0xff]
    %v905 = vld [vmem:[#allocation15 + $0x330] sm:$0xff]
    %v906 = vld [vmem:[#allocation15 + $0x338] sm:$0xff]
    %v907 = vld [vmem:[#allocation15 + $0x340] sm:$0xff]
    %v908 = vld [vmem:[#allocation15 + $0x348] sm:$0xff]
    %v909 = vld [vmem:[#allocation15 + $0x350] sm:$0xff]
    %v910 = vld [vmem:[#allocation15 + $0x358] sm:$0xff]
    %v911 = vld [vmem:[#allocation15 + $0x360] sm:$0xff]
    %v912 = vld [vmem:[#allocation15 + $0x368] sm:$0xff]
    %v913 = vld [vmem:[#allocation15 + $0x370] sm:$0xff]
    %v914 = vld [vmem:[#allocation15 + $0x378] sm:$0xff]
    %v915 = vld [vmem:[#allocation15 + $0x380] sm:$0xff]
    %v916 = vld [vmem:[#allocation15 + $0x388] sm:$0xff]
    %v917 = vld [vmem:[#allocation15 + $0x390] sm:$0xff]
    %v918 = vld [vmem:[#allocation15 + $0x398] sm:$0xff]
    %v919 = vld [vmem:[#allocation15 + $0x3a0] sm:$0xff]
    %v920 = vld [vmem:[#allocation15 + $0x3a8] sm:$0xff]
    %v921 = vld [vmem:[#allocation15 + $0x3b0] sm:$0xff]
    %v922 = vld [vmem:[#allocation15 + $0x3b8] sm:$0xff]
    %v923 = vld [vmem:[#allocation15 + $0x3c0] sm:$0xff]
    %v924 = vld [vmem:[#allocation15 + $0x3c8] sm:$0xff]
    %v925 = vld [vmem:[#allocation15 + $0x3d0] sm:$0xff]
    %v926 = vld [vmem:[#allocation15 + $0x3d8] sm:$0xff]
    %v927 = vld [vmem:[#allocation15 + $0x3e0] sm:$0xff]
    %v928 = vld [vmem:[#allocation15 + $0x3e8] sm:$0xff]
    %v929 = vld [vmem:[#allocation15 + $0x3f0] sm:$0xff]
    %v930 = vld [vmem:[#allocation15 + $0x3f8] sm:$0xff]
    %v932 = vcombine.high %v240, %v240
    %934 = vmatprep.subr.mxu0 %v864
    %935 = vmatpush1.msra.mxu0 %v863
    %936 = vmatprep.subr.mxu0 %v860
    %937 = vmatpush1.msra.mxu0 %v859
    %938 = vmatprep.subr.mxu0 %v856
    %939 = vmatpush1.msra.mxu0 %v855
    %940 = vmatprep.subr.mxu0 %v852
    %941 = vmatpush1.msra.mxu0 %v851
    %942 = vmatprep.subr.mxu0 %v848
    %943 = vmatpush1.msra.mxu0 %v847
    %944 = vmatprep.subr.mxu0 %v844
    %945 = vmatpush1.msra.mxu0 %v843
    %946 = vmatprep.subr.mxu0 %v840
    %947 = vmatpush1.msra.mxu0 %v839
    %948 = vmatprep.subr.mxu0 %v836
    %949 = vmatpush1.msra.mxu0 %v835
    %950 = vmatprep.subr.mxu0 %v832
    %951 = vmatpush1.msra.mxu0 %v831
    %952 = vmatprep.subr.mxu0 %v828
    %953 = vmatpush1.msra.mxu0 %v827
    %954 = vmatprep.subr.mxu0 %v824
    %955 = vmatpush1.msra.mxu0 %v823
    %956 = vmatprep.subr.mxu0 %v820
    %957 = vmatpush1.msra.mxu0 %v819
    %958 = vmatprep.subr.mxu0 %v816
    %959 = vmatpush1.msra.mxu0 %v815
    %960 = vmatprep.subr.mxu0 %v812
    %961 = vmatpush1.msra.mxu0 %v811
    %962 = vmatprep.subr.mxu0 %v808
    %963 = vmatpush1.msra.mxu0 %v807
    %964 = vmatprep.subr.mxu0 %v804
    %965 = vmatpush1.msra.mxu0 %v803
    %966 = vmatprep.subr.mxu0 %v928
    %967 = vmatpush2.msra.mxu0 %v927
    %968 = vmatprep.subr.mxu0 %v924
    %969 = vmatpush2.msra.mxu0 %v923
    %970 = vmatprep.subr.mxu0 %v920
    %971 = vmatpush2.msra.mxu0 %v919
    %972 = vmatprep.subr.mxu0 %v916
    %973 = vmatpush2.msra.mxu0 %v915
    %974 = vmatprep.subr.mxu0 %v912
    %975 = vmatpush2.msra.mxu0 %v911
    %976 = vmatprep.subr.mxu0 %v908
    %977 = vmatpush2.msra.mxu0 %v907
    %978 = vmatprep.subr.mxu0 %v904
    %979 = vmatpush2.msra.mxu0 %v903
    %980 = vmatprep.subr.mxu0 %v900
    %981 = vmatpush2.msra.mxu0 %v899
    %982 = vmatprep.subr.mxu0 %v896
    %983 = vmatpush2.msra.mxu0 %v895
    %984 = vmatprep.subr.mxu0 %v892
    %985 = vmatpush2.msra.mxu0 %v891
    %986 = vmatprep.subr.mxu0 %v888
    %987 = vmatpush2.msra.mxu0 %v887
    %988 = vmatprep.subr.mxu0 %v884
    %989 = vmatpush2.msra.mxu0 %v883
    %990 = vmatprep.subr.mxu0 %v880
    %991 = vmatpush2.msra.mxu0 %v879
    %992 = vmatprep.subr.mxu0 %v876
    %993 = vmatpush2.msra.mxu0 %v875
    %994 = vmatprep.subr.mxu0 %v872
    %995 = vmatpush2.msra.mxu0 %v871
    %996 = vmatprep.subr.mxu0 %v868
    %997 = vmatpush2.msra.mxu0 %v867
    %998 = vmatprep.mubr.f32.mxu0 %v932
    %999 = vmatmul.mubr.f32.gmra.mxu0 %v240
    %v1000 = vpop.f32.mrf.mxu0
    %v1001 = vadd.f32 %v255, %v1000
    %v1002 = vpop.f32.mrf.mxu0
    %v1003 = vadd.f32 %v259, %v1002
    %1004 = vdwg.mxu0
    %1005 = vmatprep.subr.mxu0 %v866
    %1006 = vmatpush1.msra.mxu0 %v865
    %1007 = vmatprep.subr.mxu0 %v862
    %1008 = vmatpush1.msra.mxu0 %v861
    %1009 = vmatprep.subr.mxu0 %v858
    %1010 = vmatpush1.msra.mxu0 %v857
    %1011 = vmatprep.subr.mxu0 %v854
    %1012 = vmatpush1.msra.mxu0 %v853
    %1013 = vmatprep.subr.mxu0 %v850
    %1014 = vmatpush1.msra.mxu0 %v849
    %1015 = vmatprep.subr.mxu0 %v846
    %1016 = vmatpush1.msra.mxu0 %v845
    %1017 = vmatprep.subr.mxu0 %v842
    %1018 = vmatpush1.msra.mxu0 %v841
    %1019 = vmatprep.subr.mxu0 %v838
    %1020 = vmatpush1.msra.mxu0 %v837
    %1021 = vmatprep.subr.mxu0 %v834
    %1022 = vmatpush1.msra.mxu0 %v833
    %1023 = vmatprep.subr.mxu0 %v830
    %1024 = vmatpush1.msra.mxu0 %v829
    %1025 = vmatprep.subr.mxu0 %v826
    %1026 = vmatpush1.msra.mxu0 %v825
    %1027 = vmatprep.subr.mxu0 %v822
    %1028 = vmatpush1.msra.mxu0 %v821
    %1029 = vmatprep.subr.mxu0 %v818
    %1030 = vmatpush1.msra.mxu0 %v817
    %1031 = vmatprep.subr.mxu0 %v814
    %1032 = vmatpush1.msra.mxu0 %v813
    %1033 = vmatprep.subr.mxu0 %v810
    %1034 = vmatpush1.msra.mxu0 %v809
    %1035 = vmatprep.subr.mxu0 %v806
    %1036 = vmatpush1.msra.mxu0 %v805
    %1037 = vmatprep.subr.mxu0 %v930
    %1038 = vmatpush2.msra.mxu0 %v929
    %1039 = vmatprep.subr.mxu0 %v926
    %1040 = vmatpush2.msra.mxu0 %v925
    %1041 = vmatprep.subr.mxu0 %v922
    %1042 = vmatpush2.msra.mxu0 %v921
    %1043 = vmatprep.subr.mxu0 %v918
    %1044 = vmatpush2.msra.mxu0 %v917
    %1045 = vmatprep.subr.mxu0 %v914
    %1046 = vmatpush2.msra.mxu0 %v913
    %1047 = vmatprep.subr.mxu0 %v910
    %1048 = vmatpush2.msra.mxu0 %v909
    %1049 = vmatprep.subr.mxu0 %v906
    %1050 = vmatpush2.msra.mxu0 %v905
    %1051 = vmatprep.subr.mxu0 %v902
    %1052 = vmatpush2.msra.mxu0 %v901
    %1053 = vmatprep.subr.mxu0 %v898
    %1054 = vmatpush2.msra.mxu0 %v897
    %1055 = vmatprep.subr.mxu0 %v894
    %1056 = vmatpush2.msra.mxu0 %v893
    %1057 = vmatprep.subr.mxu0 %v890
    %1058 = vmatpush2.msra.mxu0 %v889
    %1059 = vmatprep.subr.mxu0 %v886
    %1060 = vmatpush2.msra.mxu0 %v885
    %1061 = vmatprep.subr.mxu0 %v882
    %1062 = vmatpush2.msra.mxu0 %v881
    %1063 = vmatprep.subr.mxu0 %v878
    %1064 = vmatpush2.msra.mxu0 %v877
    %1065 = vmatprep.subr.mxu0 %v874
    %1066 = vmatpush2.msra.mxu0 %v873
    %1067 = vmatprep.subr.mxu0 %v870
    %1068 = vmatpush2.msra.mxu0 %v869
    %1069 = vmatprep.mubr.f32.mxu0 %v932
    %1070 = vmatmul.mubr.f32.gmra.mxu0 %v240
    %v1071 = vpop.f32.mrf.mxu0
    %v1072 = vadd.f32 %v263, %v1071
    %v1073 = vpop.f32.mrf.mxu0
    %v1074 = vadd.f32 %v267, %v1073
    %1075 = vdwg.mxu0
    %v1076 = vld [vmem:[#allocation17] sm:$0xff]
    %v1077 = vld [vmem:[#allocation17 + $0x8] sm:$0xff]
    %v1078 = vld [vmem:[#allocation17 + $0x10] sm:$0xff]
    %v1079 = vld [vmem:[#allocation17 + $0x18] sm:$0xff]
    %v1080 = vld [vmem:[#allocation17 + $0x20] sm:$0xff]
    %v1081 = vld [vmem:[#allocation17 + $0x28] sm:$0xff]
    %v1082 = vld [vmem:[#allocation17 + $0x30] sm:$0xff]
    %v1083 = vld [vmem:[#allocation17 + $0x38] sm:$0xff]
    %v1084 = vld [vmem:[#allocation17 + $0x40] sm:$0xff]
    %v1085 = vld [vmem:[#allocation17 + $0x48] sm:$0xff]
    %v1086 = vld [vmem:[#allocation17 + $0x50] sm:$0xff]
    %v1087 = vld [vmem:[#allocation17 + $0x58] sm:$0xff]
    %v1088 = vld [vmem:[#allocation17 + $0x60] sm:$0xff]
    %v1089 = vld [vmem:[#allocation17 + $0x68] sm:$0xff]
    %v1090 = vld [vmem:[#allocation17 + $0x70] sm:$0xff]
    %v1091 = vld [vmem:[#allocation17 + $0x78] sm:$0xff]
    %v1092 = vld [vmem:[#allocation17 + $0x80] sm:$0xff]
    %v1093 = vld [vmem:[#allocation17 + $0x88] sm:$0xff]
    %v1094 = vld [vmem:[#allocation17 + $0x90] sm:$0xff]
    %v1095 = vld [vmem:[#allocation17 + $0x98] sm:$0xff]
    %v1096 = vld [vmem:[#allocation17 + $0xa0] sm:$0xff]
    %v1097 = vld [vmem:[#allocation17 + $0xa8] sm:$0xff]
    %v1098 = vld [vmem:[#allocation17 + $0xb0] sm:$0xff]
    %v1099 = vld [vmem:[#allocation17 + $0xb8] sm:$0xff]
    %v1100 = vld [vmem:[#allocation17 + $0xc0] sm:$0xff]
    %v1101 = vld [vmem:[#allocation17 + $0xc8] sm:$0xff]
    %v1102 = vld [vmem:[#allocation17 + $0xd0] sm:$0xff]
    %v1103 = vld [vmem:[#allocation17 + $0xd8] sm:$0xff]
    %v1104 = vld [vmem:[#allocation17 + $0xe0] sm:$0xff]
    %v1105 = vld [vmem:[#allocation17 + $0xe8] sm:$0xff]
    %v1106 = vld [vmem:[#allocation17 + $0xf0] sm:$0xff]
    %v1107 = vld [vmem:[#allocation17 + $0xf8] sm:$0xff]
    %v1108 = vld [vmem:[#allocation17 + $0x100] sm:$0xff]
    %v1109 = vld [vmem:[#allocation17 + $0x108] sm:$0xff]
    %v1110 = vld [vmem:[#allocation17 + $0x110] sm:$0xff]
    %v1111 = vld [vmem:[#allocation17 + $0x118] sm:$0xff]
    %v1112 = vld [vmem:[#allocation17 + $0x120] sm:$0xff]
    %v1113 = vld [vmem:[#allocation17 + $0x128] sm:$0xff]
    %v1114 = vld [vmem:[#allocation17 + $0x130] sm:$0xff]
    %v1115 = vld [vmem:[#allocation17 + $0x138] sm:$0xff]
    %v1116 = vld [vmem:[#allocation17 + $0x140] sm:$0xff]
    %v1117 = vld [vmem:[#allocation17 + $0x148] sm:$0xff]
    %v1118 = vld [vmem:[#allocation17 + $0x150] sm:$0xff]
    %v1119 = vld [vmem:[#allocation17 + $0x158] sm:$0xff]
    %v1120 = vld [vmem:[#allocation17 + $0x160] sm:$0xff]
    %v1121 = vld [vmem:[#allocation17 + $0x168] sm:$0xff]
    %v1122 = vld [vmem:[#allocation17 + $0x170] sm:$0xff]
    %v1123 = vld [vmem:[#allocation17 + $0x178] sm:$0xff]
    %v1124 = vld [vmem:[#allocation17 + $0x180] sm:$0xff]
    %v1125 = vld [vmem:[#allocation17 + $0x188] sm:$0xff]
    %v1126 = vld [vmem:[#allocation17 + $0x190] sm:$0xff]
    %v1127 = vld [vmem:[#allocation17 + $0x198] sm:$0xff]
    %v1128 = vld [vmem:[#allocation17 + $0x1a0] sm:$0xff]
    %v1129 = vld [vmem:[#allocation17 + $0x1a8] sm:$0xff]
    %v1130 = vld [vmem:[#allocation17 + $0x1b0] sm:$0xff]
    %v1131 = vld [vmem:[#allocation17 + $0x1b8] sm:$0xff]
    %v1132 = vld [vmem:[#allocation17 + $0x1c0] sm:$0xff]
    %v1133 = vld [vmem:[#allocation17 + $0x1c8] sm:$0xff]
    %v1134 = vld [vmem:[#allocation17 + $0x1d0] sm:$0xff]
    %v1135 = vld [vmem:[#allocation17 + $0x1d8] sm:$0xff]
    %v1136 = vld [vmem:[#allocation17 + $0x1e0] sm:$0xff]
    %v1137 = vld [vmem:[#allocation17 + $0x1e8] sm:$0xff]
    %v1138 = vld [vmem:[#allocation17 + $0x1f0] sm:$0xff]
    %v1139 = vld [vmem:[#allocation17 + $0x1f8] sm:$0xff]
    %v1140 = vld [vmem:[#allocation17 + $0x200] sm:$0xff]
    %v1141 = vld [vmem:[#allocation17 + $0x208] sm:$0xff]
    %v1142 = vld [vmem:[#allocation17 + $0x210] sm:$0xff]
    %v1143 = vld [vmem:[#allocation17 + $0x218] sm:$0xff]
    %v1144 = vld [vmem:[#allocation17 + $0x220] sm:$0xff]
    %v1145 = vld [vmem:[#allocation17 + $0x228] sm:$0xff]
    %v1146 = vld [vmem:[#allocation17 + $0x230] sm:$0xff]
    %v1147 = vld [vmem:[#allocation17 + $0x238] sm:$0xff]
    %v1148 = vld [vmem:[#allocation17 + $0x240] sm:$0xff]
    %v1149 = vld [vmem:[#allocation17 + $0x248] sm:$0xff]
    %v1150 = vld [vmem:[#allocation17 + $0x250] sm:$0xff]
    %v1151 = vld [vmem:[#allocation17 + $0x258] sm:$0xff]
    %v1152 = vld [vmem:[#allocation17 + $0x260] sm:$0xff]
    %v1153 = vld [vmem:[#allocation17 + $0x268] sm:$0xff]
    %v1154 = vld [vmem:[#allocation17 + $0x270] sm:$0xff]
    %v1155 = vld [vmem:[#allocation17 + $0x278] sm:$0xff]
    %v1156 = vld [vmem:[#allocation17 + $0x280] sm:$0xff]
    %v1157 = vld [vmem:[#allocation17 + $0x288] sm:$0xff]
    %v1158 = vld [vmem:[#allocation17 + $0x290] sm:$0xff]
    %v1159 = vld [vmem:[#allocation17 + $0x298] sm:$0xff]
    %v1160 = vld [vmem:[#allocation17 + $0x2a0] sm:$0xff]
    %v1161 = vld [vmem:[#allocation17 + $0x2a8] sm:$0xff]
    %v1162 = vld [vmem:[#allocation17 + $0x2b0] sm:$0xff]
    %v1163 = vld [vmem:[#allocation17 + $0x2b8] sm:$0xff]
    %v1164 = vld [vmem:[#allocation17 + $0x2c0] sm:$0xff]
    %v1165 = vld [vmem:[#allocation17 + $0x2c8] sm:$0xff]
    %v1166 = vld [vmem:[#allocation17 + $0x2d0] sm:$0xff]
    %v1167 = vld [vmem:[#allocation17 + $0x2d8] sm:$0xff]
    %v1168 = vld [vmem:[#allocation17 + $0x2e0] sm:$0xff]
    %v1169 = vld [vmem:[#allocation17 + $0x2e8] sm:$0xff]
    %v1170 = vld [vmem:[#allocation17 + $0x2f0] sm:$0xff]
    %v1171 = vld [vmem:[#allocation17 + $0x2f8] sm:$0xff]
    %v1172 = vld [vmem:[#allocation17 + $0x300] sm:$0xff]
    %v1173 = vld [vmem:[#allocation17 + $0x308] sm:$0xff]
    %v1174 = vld [vmem:[#allocation17 + $0x310] sm:$0xff]
    %v1175 = vld [vmem:[#allocation17 + $0x318] sm:$0xff]
    %v1176 = vld [vmem:[#allocation17 + $0x320] sm:$0xff]
    %v1177 = vld [vmem:[#allocation17 + $0x328] sm:$0xff]
    %v1178 = vld [vmem:[#allocation17 + $0x330] sm:$0xff]
    %v1179 = vld [vmem:[#allocation17 + $0x338] sm:$0xff]
    %v1180 = vld [vmem:[#allocation17 + $0x340] sm:$0xff]
    %v1181 = vld [vmem:[#allocation17 + $0x348] sm:$0xff]
    %v1182 = vld [vmem:[#allocation17 + $0x350] sm:$0xff]
    %v1183 = vld [vmem:[#allocation17 + $0x358] sm:$0xff]
    %v1184 = vld [vmem:[#allocation17 + $0x360] sm:$0xff]
    %v1185 = vld [vmem:[#allocation17 + $0x368] sm:$0xff]
    %v1186 = vld [vmem:[#allocation17 + $0x370] sm:$0xff]
    %v1187 = vld [vmem:[#allocation17 + $0x378] sm:$0xff]
    %v1188 = vld [vmem:[#allocation17 + $0x380] sm:$0xff]
    %v1189 = vld [vmem:[#allocation17 + $0x388] sm:$0xff]
    %v1190 = vld [vmem:[#allocation17 + $0x390] sm:$0xff]
    %v1191 = vld [vmem:[#allocation17 + $0x398] sm:$0xff]
    %v1192 = vld [vmem:[#allocation17 + $0x3a0] sm:$0xff]
    %v1193 = vld [vmem:[#allocation17 + $0x3a8] sm:$0xff]
    %v1194 = vld [vmem:[#allocation17 + $0x3b0] sm:$0xff]
    %v1195 = vld [vmem:[#allocation17 + $0x3b8] sm:$0xff]
    %v1196 = vld [vmem:[#allocation17 + $0x3c0] sm:$0xff]
    %v1197 = vld [vmem:[#allocation17 + $0x3c8] sm:$0xff]
    %v1198 = vld [vmem:[#allocation17 + $0x3d0] sm:$0xff]
    %v1199 = vld [vmem:[#allocation17 + $0x3d8] sm:$0xff]
    %v1200 = vld [vmem:[#allocation17 + $0x3e0] sm:$0xff]
    %v1201 = vld [vmem:[#allocation17 + $0x3e8] sm:$0xff]
    %v1202 = vld [vmem:[#allocation17 + $0x3f0] sm:$0xff]
    %v1203 = vld [vmem:[#allocation17 + $0x3f8] sm:$0xff]
    %v1205 = vcombine.high %v241, %v241
    %1207 = vmatprep.subr.mxu0 %v1137
    %1208 = vmatpush1.msra.mxu0 %v1136
    %1209 = vmatprep.subr.mxu0 %v1133
    %1210 = vmatpush1.msra.mxu0 %v1132
    %1211 = vmatprep.subr.mxu0 %v1129
    %1212 = vmatpush1.msra.mxu0 %v1128
    %1213 = vmatprep.subr.mxu0 %v1125
    %1214 = vmatpush1.msra.mxu0 %v1124
    %1215 = vmatprep.subr.mxu0 %v1121
    %1216 = vmatpush1.msra.mxu0 %v1120
    %1217 = vmatprep.subr.mxu0 %v1117
    %1218 = vmatpush1.msra.mxu0 %v1116
    %1219 = vmatprep.subr.mxu0 %v1113
    %1220 = vmatpush1.msra.mxu0 %v1112
    %1221 = vmatprep.subr.mxu0 %v1109
    %1222 = vmatpush1.msra.mxu0 %v1108
    %1223 = vmatprep.subr.mxu0 %v1105
    %1224 = vmatpush1.msra.mxu0 %v1104
    %1225 = vmatprep.subr.mxu0 %v1101
    %1226 = vmatpush1.msra.mxu0 %v1100
    %1227 = vmatprep.subr.mxu0 %v1097
    %1228 = vmatpush1.msra.mxu0 %v1096
    %1229 = vmatprep.subr.mxu0 %v1093
    %1230 = vmatpush1.msra.mxu0 %v1092
    %1231 = vmatprep.subr.mxu0 %v1089
    %1232 = vmatpush1.msra.mxu0 %v1088
    %1233 = vmatprep.subr.mxu0 %v1085
    %1234 = vmatpush1.msra.mxu0 %v1084
    %1235 = vmatprep.subr.mxu0 %v1081
    %1236 = vmatpush1.msra.mxu0 %v1080
    %1237 = vmatprep.subr.mxu0 %v1077
    %1238 = vmatpush1.msra.mxu0 %v1076
    %1239 = vmatprep.subr.mxu0 %v1201
    %1240 = vmatpush2.msra.mxu0 %v1200
    %1241 = vmatprep.subr.mxu0 %v1197
    %1242 = vmatpush2.msra.mxu0 %v1196
    %1243 = vmatprep.subr.mxu0 %v1193
    %1244 = vmatpush2.msra.mxu0 %v1192
    %1245 = vmatprep.subr.mxu0 %v1189
    %1246 = vmatpush2.msra.mxu0 %v1188
    %1247 = vmatprep.subr.mxu0 %v1185
    %1248 = vmatpush2.msra.mxu0 %v1184
    %1249 = vmatprep.subr.mxu0 %v1181
    %1250 = vmatpush2.msra.mxu0 %v1180
    %1251 = vmatprep.subr.mxu0 %v1177
    %1252 = vmatpush2.msra.mxu0 %v1176
    %1253 = vmatprep.subr.mxu0 %v1173
    %1254 = vmatpush2.msra.mxu0 %v1172
    %1255 = vmatprep.subr.mxu0 %v1169
    %1256 = vmatpush2.msra.mxu0 %v1168
    %1257 = vmatprep.subr.mxu0 %v1165
    %1258 = vmatpush2.msra.mxu0 %v1164
    %1259 = vmatprep.subr.mxu0 %v1161
    %1260 = vmatpush2.msra.mxu0 %v1160
    %1261 = vmatprep.subr.mxu0 %v1157
    %1262 = vmatpush2.msra.mxu0 %v1156
    %1263 = vmatprep.subr.mxu0 %v1153
    %1264 = vmatpush2.msra.mxu0 %v1152
    %1265 = vmatprep.subr.mxu0 %v1149
    %1266 = vmatpush2.msra.mxu0 %v1148
    %1267 = vmatprep.subr.mxu0 %v1145
    %1268 = vmatpush2.msra.mxu0 %v1144
    %1269 = vmatprep.subr.mxu0 %v1141
    %1270 = vmatpush2.msra.mxu0 %v1140
    %1271 = vmatprep.mubr.f32.mxu0 %v1205
    %1272 = vmatmul.mubr.f32.gmra.mxu0 %v241
    %v1273 = vpop.f32.mrf.mxu0
    %v1274 = vadd.f32 %v536, %v1273
    %v1275 = vpop.f32.mrf.mxu0
    %v1276 = vadd.f32 %v540, %v1275
    %1277 = vdwg.mxu0
    %1278 = vmatprep.subr.mxu0 %v1139
    %1279 = vmatpush1.msra.mxu0 %v1138
    %1280 = vmatprep.subr.mxu0 %v1135
    %1281 = vmatpush1.msra.mxu0 %v1134
    %1282 = vmatprep.subr.mxu0 %v1131
    %1283 = vmatpush1.msra.mxu0 %v1130
    %1284 = vmatprep.subr.mxu0 %v1127
    %1285 = vmatpush1.msra.mxu0 %v1126
    %1286 = vmatprep.subr.mxu0 %v1123
    %1287 = vmatpush1.msra.mxu0 %v1122
    %1288 = vmatprep.subr.mxu0 %v1119
    %1289 = vmatpush1.msra.mxu0 %v1118
    %1290 = vmatprep.subr.mxu0 %v1115
    %1291 = vmatpush1.msra.mxu0 %v1114
    %1292 = vmatprep.subr.mxu0 %v1111
    %1293 = vmatpush1.msra.mxu0 %v1110
    %1294 = vmatprep.subr.mxu0 %v1107
    %1295 = vmatpush1.msra.mxu0 %v1106
    %1296 = vmatprep.subr.mxu0 %v1103
    %1297 = vmatpush1.msra.mxu0 %v1102
    %1298 = vmatprep.subr.mxu0 %v1099
    %1299 = vmatpush1.msra.mxu0 %v1098
    %1300 = vmatprep.subr.mxu0 %v1095
    %1301 = vmatpush1.msra.mxu0 %v1094
    %1302 = vmatprep.subr.mxu0 %v1091
    %1303 = vmatpush1.msra.mxu0 %v1090
    %1304 = vmatprep.subr.mxu0 %v1087
    %1305 = vmatpush1.msra.mxu0 %v1086
    %1306 = vmatprep.subr.mxu0 %v1083
    %1307 = vmatpush1.msra.mxu0 %v1082
    %1308 = vmatprep.subr.mxu0 %v1079
    %1309 = vmatpush1.msra.mxu0 %v1078
    %1310 = vmatprep.subr.mxu0 %v1203
    %1311 = vmatpush2.msra.mxu0 %v1202
    %1312 = vmatprep.subr.mxu0 %v1199
    %1313 = vmatpush2.msra.mxu0 %v1198
    %1314 = vmatprep.subr.mxu0 %v1195
    %1315 = vmatpush2.msra.mxu0 %v1194
    %1316 = vmatprep.subr.mxu0 %v1191
    %1317 = vmatpush2.msra.mxu0 %v1190
    %1318 = vmatprep.subr.mxu0 %v1187
    %1319 = vmatpush2.msra.mxu0 %v1186
    %1320 = vmatprep.subr.mxu0 %v1183
    %1321 = vmatpush2.msra.mxu0 %v1182
    %1322 = vmatprep.subr.mxu0 %v1179
    %1323 = vmatpush2.msra.mxu0 %v1178
    %1324 = vmatprep.subr.mxu0 %v1175
    %1325 = vmatpush2.msra.mxu0 %v1174
    %1326 = vmatprep.subr.mxu0 %v1171
    %1327 = vmatpush2.msra.mxu0 %v1170
    %1328 = vmatprep.subr.mxu0 %v1167
    %1329 = vmatpush2.msra.mxu0 %v1166
    %1330 = vmatprep.subr.mxu0 %v1163
    %1331 = vmatpush2.msra.mxu0 %v1162
    %1332 = vmatprep.subr.mxu0 %v1159
    %1333 = vmatpush2.msra.mxu0 %v1158
    %1334 = vmatprep.subr.mxu0 %v1155
    %1335 = vmatpush2.msra.mxu0 %v1154
    %1336 = vmatprep.subr.mxu0 %v1151
    %1337 = vmatpush2.msra.mxu0 %v1150
    %1338 = vmatprep.subr.mxu0 %v1147
    %1339 = vmatpush2.msra.mxu0 %v1146
    %1340 = vmatprep.subr.mxu0 %v1143
    %1341 = vmatpush2.msra.mxu0 %v1142
    %1342 = vmatprep.mubr.f32.mxu0 %v1205
    %1343 = vmatmul.mubr.f32.gmra.mxu0 %v241
    %v1344 = vpop.f32.mrf.mxu0
    %v1345 = vadd.f32 %v544, %v1344
    %v1346 = vpop.f32.mrf.mxu0
    %v1347 = vadd.f32 %v548, %v1346
    %1348 = vdwg.mxu0
    %v1353 = vcombine.low %v1274, %v1276
    %v1354 = vcombine.low %v1345, %v1347
    %v1356 = vunpack.c.l.s4 1966171168
    %v1357 = vunpack.c.0.s8 %v1356
    %v1358 = vlaneseq
    %v1359 = vshrl.u32 %v1358, 7
    %v1360 = vsub.s32 %v1357, %v1359
    %v1361 = vrot.slane %v1353, %v1360
    %v1363 = vunpack.c.l.s4 1966171168
    %v1364 = vunpack.c.0.s8 %v1363
    %v1365 = vlaneseq
    %v1366 = vshrl.u32 %v1365, 7
    %v1367 = vsub.s32 %v1364, %v1366
    %v1368 = vrot.slane %v1354, %v1367
    %v1369 = vcombine.low %v1361, %v1368
    %v1370 = vcombine.high %v1361, %v1368
    %v1372 = vunpack.c.l.s4 1966171168
    %v1373 = vunpack.c.0.s8 %v1372
    %v1374 = vlaneseq
    %v1375 = vshrl.u32 %v1374, 7
    %v1376 = vsub.s32 %v1373, %v1375
    %v1377 = vrot.slane %v1369, %v1376
    %v1379 = vunpack.c.l.s4 1966171168
    %v1380 = vunpack.c.0.s8 %v1379
    %v1381 = vlaneseq
    %v1382 = vshrl.u32 %v1381, 7
    %v1383 = vsub.s32 %v1380, %v1382
    %v1384 = vrot.slane %v1370, %v1383
    %v1385 = vcombine.high %v1377, %v1377
    %v1386 = vcombine.high %v1384, %v1384
    %v1387 = vlaneseq
    %v1388 = vshrl.u32 %v1387, 7
    %v1389 = vsub.s32 0, %v1388
    %v1390 = vrot.slane %v1377, %v1389
    %v1391 = vlaneseq
    %v1392 = vshrl.u32 %v1391, 7
    %v1393 = vsub.s32 1, %v1392
    %v1394 = vrot.slane %v1377, %v1393
    %v1395 = vlaneseq
    %v1396 = vshrl.u32 %v1395, 7
    %v1397 = vsub.s32 2, %v1396
    %v1398 = vrot.slane %v1377, %v1397
    %v1399 = vlaneseq
    %v1400 = vshrl.u32 %v1399, 7
    %v1401 = vsub.s32 3, %v1400
    %v1402 = vrot.slane %v1377, %v1401
    %v1403 = vlaneseq
    %v1404 = vshrl.u32 %v1403, 7
    %v1405 = vsub.s32 0, %v1404
    %v1406 = vrot.slane %v1384, %v1405
    %v1407 = vlaneseq
    %v1408 = vshrl.u32 %v1407, 7
    %v1409 = vsub.s32 1, %v1408
    %v1410 = vrot.slane %v1384, %v1409
    %v1411 = vlaneseq
    %v1412 = vshrl.u32 %v1411, 7
    %v1413 = vsub.s32 2, %v1412
    %v1414 = vrot.slane %v1384, %v1413
    %v1415 = vlaneseq
    %v1416 = vshrl.u32 %v1415, 7
    %v1417 = vsub.s32 3, %v1416
    %v1418 = vrot.slane %v1384, %v1417
    %v1419 = vlaneseq
    %v1420 = vshrl.u32 %v1419, 7
    %v1421 = vsub.s32 0, %v1420
    %v1422 = vrot.slane %v1385, %v1421
    %v1423 = vlaneseq
    %v1424 = vshrl.u32 %v1423, 7
    %v1425 = vsub.s32 1, %v1424
    %v1426 = vrot.slane %v1385, %v1425
    %v1427 = vlaneseq
    %v1428 = vshrl.u32 %v1427, 7
    %v1429 = vsub.s32 2, %v1428
    %v1430 = vrot.slane %v1385, %v1429
    %v1431 = vlaneseq
    %v1432 = vshrl.u32 %v1431, 7
    %v1433 = vsub.s32 3, %v1432
    %v1434 = vrot.slane %v1385, %v1433
    %v1435 = vlaneseq
    %v1436 = vshrl.u32 %v1435, 7
    %v1437 = vsub.s32 0, %v1436
    %v1438 = vrot.slane %v1386, %v1437
    %v1439 = vlaneseq
    %v1440 = vshrl.u32 %v1439, 7
    %v1441 = vsub.s32 1, %v1440
    %v1442 = vrot.slane %v1386, %v1441
    %v1443 = vlaneseq
    %v1444 = vshrl.u32 %v1443, 7
    %v1445 = vsub.s32 2, %v1444
    %v1446 = vrot.slane %v1386, %v1445
    %v1447 = vlaneseq
    %v1448 = vshrl.u32 %v1447, 7
    %v1449 = vsub.s32 3, %v1448
    %v1450 = vrot.slane %v1386, %v1449
    %v1467 = vadd.f32 %v364, %v1390
    %v1468 = vadd.f32 %v366, %v1394
    %v1469 = vadd.f32 %v477, %v1398
    %v1470 = vadd.f32 %v479, %v1402
    %v1471 = vadd.f32 %v370, %v1390
    %v1472 = vadd.f32 %v372, %v1394
    %v1473 = vadd.f32 %v483, %v1398
    %v1474 = vadd.f32 %v485, %v1402
    %v1475 = vadd.f32 %v376, %v1406
    %v1476 = vadd.f32 %v378, %v1410
    %v1477 = vadd.f32 %v489, %v1414
    %v1478 = vadd.f32 %v491, %v1418
    %v1479 = vadd.f32 %v382, %v1406
    %v1480 = vadd.f32 %v384, %v1410
    %v1481 = vadd.f32 %v495, %v1414
    %v1482 = vadd.f32 %v497, %v1418
    %v1483 = vadd.f32 %v388, %v1422
    %v1484 = vadd.f32 %v390, %v1426
    %v1485 = vadd.f32 %v501, %v1430
    %v1486 = vadd.f32 %v503, %v1434
    %v1487 = vadd.f32 %v394, %v1422
    %v1488 = vadd.f32 %v396, %v1426
    %v1489 = vadd.f32 %v507, %v1430
    %v1490 = vadd.f32 %v509, %v1434
    %v1491 = vadd.f32 %v400, %v1438
    %v1492 = vadd.f32 %v402, %v1442
    %v1493 = vadd.f32 %v513, %v1446
    %v1494 = vadd.f32 %v515, %v1450
    %v1495 = vadd.f32 %v406, %v1438
    %v1496 = vadd.f32 %v408, %v1442
    %v1497 = vadd.f32 %v519, %v1446
    %v1498 = vadd.f32 %v521, %v1450
    %vm1499 = vcmp.gt.f32.partialorder %v1467, 0.0
    %vm1500 = vcmp.gt.f32.partialorder %v1468, 0.0
    %vm1501 = vcmp.gt.f32.partialorder %v1469, 0.0
    %vm1502 = vcmp.gt.f32.partialorder %v1470, 0.0
    %vm1503 = vcmp.gt.f32.partialorder %v1471, 0.0
    %vm1504 = vcmp.gt.f32.partialorder %v1472, 0.0
    %vm1505 = vcmp.gt.f32.partialorder %v1473, 0.0
    %vm1506 = vcmp.gt.f32.partialorder %v1474, 0.0
    %vm1507 = vcmp.gt.f32.partialorder %v1475, 0.0
    %vm1508 = vcmp.gt.f32.partialorder %v1476, 0.0
    %vm1509 = vcmp.gt.f32.partialorder %v1477, 0.0
    %vm1510 = vcmp.gt.f32.partialorder %v1478, 0.0
    %vm1511 = vcmp.gt.f32.partialorder %v1479, 0.0
    %vm1512 = vcmp.gt.f32.partialorder %v1480, 0.0
    %vm1513 = vcmp.gt.f32.partialorder %v1481, 0.0
    %vm1514 = vcmp.gt.f32.partialorder %v1482, 0.0
    %vm1515 = vcmp.gt.f32.partialorder %v1483, 0.0
    %vm1516 = vcmp.gt.f32.partialorder %v1484, 0.0
    %vm1517 = vcmp.gt.f32.partialorder %v1485, 0.0
    %vm1518 = vcmp.gt.f32.partialorder %v1486, 0.0
    %vm1519 = vcmp.gt.f32.partialorder %v1487, 0.0
    %vm1520 = vcmp.gt.f32.partialorder %v1488, 0.0
    %vm1521 = vcmp.gt.f32.partialorder %v1489, 0.0
    %vm1522 = vcmp.gt.f32.partialorder %v1490, 0.0
    %vm1523 = vcmp.gt.f32.partialorder %v1491, 0.0
    %vm1524 = vcmp.gt.f32.partialorder %v1492, 0.0
    %vm1525 = vcmp.gt.f32.partialorder %v1493, 0.0
    %vm1526 = vcmp.gt.f32.partialorder %v1494, 0.0
    %vm1527 = vcmp.gt.f32.partialorder %v1495, 0.0
    %vm1528 = vcmp.gt.f32.partialorder %v1496, 0.0
    %vm1529 = vcmp.gt.f32.partialorder %v1497, 0.0
    %vm1530 = vcmp.gt.f32.partialorder %v1498, 0.0
    %v1531 = vmul.f32 %v1467, 0.33
    %v1532 = vmul.f32 %v1468, 0.33
    %v1533 = vmul.f32 %v1469, 0.33
    %v1534 = vmul.f32 %v1470, 0.33
    %v1535 = vmul.f32 %v1471, 0.33
    %v1536 = vmul.f32 %v1472, 0.33
    %v1537 = vmul.f32 %v1473, 0.33
    %v1538 = vmul.f32 %v1474, 0.33
    %v1539 = vmul.f32 %v1475, 0.33
    %v1540 = vmul.f32 %v1476, 0.33
    %v1541 = vmul.f32 %v1477, 0.33
    %v1542 = vmul.f32 %v1478, 0.33
    %v1543 = vmul.f32 %v1479, 0.33
    %v1544 = vmul.f32 %v1480, 0.33
    %v1545 = vmul.f32 %v1481, 0.33
    %v1546 = vmul.f32 %v1482, 0.33
    %v1547 = vmul.f32 %v1483, 0.33
    %v1548 = vmul.f32 %v1484, 0.33
    %v1549 = vmul.f32 %v1485, 0.33
    %v1550 = vmul.f32 %v1486, 0.33
    %v1551 = vmul.f32 %v1487, 0.33
    %v1552 = vmul.f32 %v1488, 0.33
    %v1553 = vmul.f32 %v1489, 0.33
    %v1554 = vmul.f32 %v1490, 0.33
    %v1555 = vmul.f32 %v1491, 0.33
    %v1556 = vmul.f32 %v1492, 0.33
    %v1557 = vmul.f32 %v1493, 0.33
    %v1558 = vmul.f32 %v1494, 0.33
    %v1559 = vmul.f32 %v1495, 0.33
    %v1560 = vmul.f32 %v1496, 0.33
    %v1561 = vmul.f32 %v1497, 0.33
    %v1562 = vmul.f32 %v1498, 0.33
    %v1563 = vsel %vm1499, %v1467, %v1531
    %v1564 = vsel %vm1500, %v1468, %v1532
    %v1565 = vsel %vm1501, %v1469, %v1533
    %v1566 = vsel %vm1502, %v1470, %v1534
    %v1567 = vsel %vm1503, %v1471, %v1535
    %v1568 = vsel %vm1504, %v1472, %v1536
    %v1569 = vsel %vm1505, %v1473, %v1537
    %v1570 = vsel %vm1506, %v1474, %v1538
    %v1571 = vsel %vm1507, %v1475, %v1539
    %v1572 = vsel %vm1508, %v1476, %v1540
    %v1573 = vsel %vm1509, %v1477, %v1541
    %v1574 = vsel %vm1510, %v1478, %v1542
    %v1575 = vsel %vm1511, %v1479, %v1543
    %v1576 = vsel %vm1512, %v1480, %v1544
    %v1577 = vsel %vm1513, %v1481, %v1545
    %v1578 = vsel %vm1514, %v1482, %v1546
    %v1579 = vsel %vm1515, %v1483, %v1547
    %v1580 = vsel %vm1516, %v1484, %v1548
    %v1581 = vsel %vm1517, %v1485, %v1549
    %v1582 = vsel %vm1518, %v1486, %v1550
    %v1583 = vsel %vm1519, %v1487, %v1551
    %v1584 = vsel %vm1520, %v1488, %v1552
    %v1585 = vsel %vm1521, %v1489, %v1553
    %v1586 = vsel %vm1522, %v1490, %v1554
    %v1587 = vsel %vm1523, %v1491, %v1555
    %v1588 = vsel %vm1524, %v1492, %v1556
    %v1589 = vsel %vm1525, %v1493, %v1557
    %v1590 = vsel %vm1526, %v1494, %v1558
    %v1591 = vsel %vm1527, %v1495, %v1559
    %v1592 = vsel %vm1528, %v1496, %v1560
    %v1593 = vsel %vm1529, %v1497, %v1561
    %v1594 = vsel %vm1530, %v1498, %v1562
    %v1595 = vpack.c.bf16 %v1567, %v1563
    %v1596 = vpack.c.bf16 %v1568, %v1564
    %v1597 = vpack.c.bf16 %v1569, %v1565
    %v1598 = vpack.c.bf16 %v1570, %v1566
    %v1599 = vpack.c.bf16 %v1575, %v1571
    %v1600 = vpack.c.bf16 %v1576, %v1572
    %v1601 = vpack.c.bf16 %v1577, %v1573
    %v1602 = vpack.c.bf16 %v1578, %v1574
    %v1603 = vpack.c.bf16 %v1583, %v1579
    %v1604 = vpack.c.bf16 %v1584, %v1580
    %v1605 = vpack.c.bf16 %v1585, %v1581
    %v1606 = vpack.c.bf16 %v1586, %v1582
    %v1607 = vpack.c.bf16 %v1591, %v1587
    %v1608 = vpack.c.bf16 %v1592, %v1588
    %v1609 = vpack.c.bf16 %v1593, %v1589
    %v1610 = vpack.c.bf16 %v1594, %v1590
    %v1615 = vcombine.low %v1001, %v1003
    %v1616 = vcombine.low %v1072, %v1074
    %v1618 = vunpack.c.l.s4 1966171168
    %v1619 = vunpack.c.0.s8 %v1618
    %v1620 = vlaneseq
    %v1621 = vshrl.u32 %v1620, 7
    %v1622 = vsub.s32 %v1619, %v1621
    %v1623 = vrot.slane %v1615, %v1622
    %v1625 = vunpack.c.l.s4 1966171168
    %v1626 = vunpack.c.0.s8 %v1625
    %v1627 = vlaneseq
    %v1628 = vshrl.u32 %v1627, 7
    %v1629 = vsub.s32 %v1626, %v1628
    %v1630 = vrot.slane %v1616, %v1629
    %v1631 = vcombine.low %v1623, %v1630
    %v1632 = vcombine.high %v1623, %v1630
    %v1634 = vunpack.c.l.s4 1966171168
    %v1635 = vunpack.c.0.s8 %v1634
    %v1636 = vlaneseq
    %v1637 = vshrl.u32 %v1636, 7
    %v1638 = vsub.s32 %v1635, %v1637
    %v1639 = vrot.slane %v1631, %v1638
    %v1641 = vunpack.c.l.s4 1966171168
    %v1642 = vunpack.c.0.s8 %v1641
    %v1643 = vlaneseq
    %v1644 = vshrl.u32 %v1643, 7
    %v1645 = vsub.s32 %v1642, %v1644
    %v1646 = vrot.slane %v1632, %v1645
    %v1647 = vcombine.high %v1639, %v1639
    %v1648 = vcombine.high %v1646, %v1646
    %v1649 = vlaneseq
    %v1650 = vshrl.u32 %v1649, 7
    %v1651 = vsub.s32 0, %v1650
    %v1652 = vrot.slane %v1639, %v1651
    %v1653 = vlaneseq
    %v1654 = vshrl.u32 %v1653, 7
    %v1655 = vsub.s32 1, %v1654
    %v1656 = vrot.slane %v1639, %v1655
    %v1657 = vlaneseq
    %v1658 = vshrl.u32 %v1657, 7
    %v1659 = vsub.s32 2, %v1658
    %v1660 = vrot.slane %v1639, %v1659
    %v1661 = vlaneseq
    %v1662 = vshrl.u32 %v1661, 7
    %v1663 = vsub.s32 3, %v1662
    %v1664 = vrot.slane %v1639, %v1663
    %v1665 = vlaneseq
    %v1666 = vshrl.u32 %v1665, 7
    %v1667 = vsub.s32 0, %v1666
    %v1668 = vrot.slane %v1646, %v1667
    %v1669 = vlaneseq
    %v1670 = vshrl.u32 %v1669, 7
    %v1671 = vsub.s32 1, %v1670
    %v1672 = vrot.slane %v1646, %v1671
    %v1673 = vlaneseq
    %v1674 = vshrl.u32 %v1673, 7
    %v1675 = vsub.s32 2, %v1674
    %v1676 = vrot.slane %v1646, %v1675
    %v1677 = vlaneseq
    %v1678 = vshrl.u32 %v1677, 7
    %v1679 = vsub.s32 3, %v1678
    %v1680 = vrot.slane %v1646, %v1679
    %v1681 = vlaneseq
    %v1682 = vshrl.u32 %v1681, 7
    %v1683 = vsub.s32 0, %v1682
    %v1684 = vrot.slane %v1647, %v1683
    %v1685 = vlaneseq
    %v1686 = vshrl.u32 %v1685, 7
    %v1687 = vsub.s32 1, %v1686
    %v1688 = vrot.slane %v1647, %v1687
    %v1689 = vlaneseq
    %v1690 = vshrl.u32 %v1689, 7
    %v1691 = vsub.s32 2, %v1690
    %v1692 = vrot.slane %v1647, %v1691
    %v1693 = vlaneseq
    %v1694 = vshrl.u32 %v1693, 7
    %v1695 = vsub.s32 3, %v1694
    %v1696 = vrot.slane %v1647, %v1695
    %v1697 = vlaneseq
    %v1698 = vshrl.u32 %v1697, 7
    %v1699 = vsub.s32 0, %v1698
    %v1700 = vrot.slane %v1648, %v1699
    %v1701 = vlaneseq
    %v1702 = vshrl.u32 %v1701, 7
    %v1703 = vsub.s32 1, %v1702
    %v1704 = vrot.slane %v1648, %v1703
    %v1705 = vlaneseq
    %v1706 = vshrl.u32 %v1705, 7
    %v1707 = vsub.s32 2, %v1706
    %v1708 = vrot.slane %v1648, %v1707
    %v1709 = vlaneseq
    %v1710 = vshrl.u32 %v1709, 7
    %v1711 = vsub.s32 3, %v1710
    %v1712 = vrot.slane %v1648, %v1711
    %v1729 = vadd.f32 %v644, %v1652
    %v1730 = vadd.f32 %v646, %v1656
    %v1731 = vadd.f32 %v757, %v1660
    %v1732 = vadd.f32 %v759, %v1664
    %v1733 = vadd.f32 %v650, %v1652
    %v1734 = vadd.f32 %v652, %v1656
    %v1735 = vadd.f32 %v763, %v1660
    %v1736 = vadd.f32 %v765, %v1664
    %v1737 = vadd.f32 %v656, %v1668
    %v1738 = vadd.f32 %v658, %v1672
    %v1739 = vadd.f32 %v769, %v1676
    %v1740 = vadd.f32 %v771, %v1680
    %v1741 = vadd.f32 %v662, %v1668
    %v1742 = vadd.f32 %v664, %v1672
    %v1743 = vadd.f32 %v775, %v1676
    %v1744 = vadd.f32 %v777, %v1680
    %v1745 = vadd.f32 %v668, %v1684
    %v1746 = vadd.f32 %v670, %v1688
    %v1747 = vadd.f32 %v781, %v1692
    %v1748 = vadd.f32 %v783, %v1696
    %v1749 = vadd.f32 %v674, %v1684
    %v1750 = vadd.f32 %v676, %v1688
    %v1751 = vadd.f32 %v787, %v1692
    %v1752 = vadd.f32 %v789, %v1696
    %v1753 = vadd.f32 %v680, %v1700
    %v1754 = vadd.f32 %v682, %v1704
    %v1755 = vadd.f32 %v793, %v1708
    %v1756 = vadd.f32 %v795, %v1712
    %v1757 = vadd.f32 %v686, %v1700
    %v1758 = vadd.f32 %v688, %v1704
    %v1759 = vadd.f32 %v799, %v1708
    %v1760 = vadd.f32 %v801, %v1712
    %vm1761 = vcmp.gt.f32.partialorder %v1729, 0.0
    %vm1762 = vcmp.gt.f32.partialorder %v1730, 0.0
    %vm1763 = vcmp.gt.f32.partialorder %v1731, 0.0
    %vm1764 = vcmp.gt.f32.partialorder %v1732, 0.0
    %vm1765 = vcmp.gt.f32.partialorder %v1733, 0.0
    %vm1766 = vcmp.gt.f32.partialorder %v1734, 0.0
    %vm1767 = vcmp.gt.f32.partialorder %v1735, 0.0
    %vm1768 = vcmp.gt.f32.partialorder %v1736, 0.0
    %vm1769 = vcmp.gt.f32.partialorder %v1737, 0.0
    %vm1770 = vcmp.gt.f32.partialorder %v1738, 0.0
    %vm1771 = vcmp.gt.f32.partialorder %v1739, 0.0
    %vm1772 = vcmp.gt.f32.partialorder %v1740, 0.0
    %vm1773 = vcmp.gt.f32.partialorder %v1741, 0.0
    %vm1774 = vcmp.gt.f32.partialorder %v1742, 0.0
    %vm1775 = vcmp.gt.f32.partialorder %v1743, 0.0
    %vm1776 = vcmp.gt.f32.partialorder %v1744, 0.0
    %vm1777 = vcmp.gt.f32.partialorder %v1745, 0.0
    %vm1778 = vcmp.gt.f32.partialorder %v1746, 0.0
    %vm1779 = vcmp.gt.f32.partialorder %v1747, 0.0
    %vm1780 = vcmp.gt.f32.partialorder %v1748, 0.0
    %vm1781 = vcmp.gt.f32.partialorder %v1749, 0.0
    %vm1782 = vcmp.gt.f32.partialorder %v1750, 0.0
    %vm1783 = vcmp.gt.f32.partialorder %v1751, 0.0
    %vm1784 = vcmp.gt.f32.partialorder %v1752, 0.0
    %vm1785 = vcmp.gt.f32.partialorder %v1753, 0.0
    %vm1786 = vcmp.gt.f32.partialorder %v1754, 0.0
    %vm1787 = vcmp.gt.f32.partialorder %v1755, 0.0
    %vm1788 = vcmp.gt.f32.partialorder %v1756, 0.0
    %vm1789 = vcmp.gt.f32.partialorder %v1757, 0.0
    %vm1790 = vcmp.gt.f32.partialorder %v1758, 0.0
    %vm1791 = vcmp.gt.f32.partialorder %v1759, 0.0
    %vm1792 = vcmp.gt.f32.partialorder %v1760, 0.0
    %v1793 = vmul.f32 %v1729, 0.33
    %v1794 = vmul.f32 %v1730, 0.33
    %v1795 = vmul.f32 %v1731, 0.33
    %v1796 = vmul.f32 %v1732, 0.33
    %v1797 = vmul.f32 %v1733, 0.33
    %v1798 = vmul.f32 %v1734, 0.33
    %v1799 = vmul.f32 %v1735, 0.33
    %v1800 = vmul.f32 %v1736, 0.33
    %v1801 = vmul.f32 %v1737, 0.33
    %v1802 = vmul.f32 %v1738, 0.33
    %v1803 = vmul.f32 %v1739, 0.33
    %v1804 = vmul.f32 %v1740, 0.33
    %v1805 = vmul.f32 %v1741, 0.33
    %v1806 = vmul.f32 %v1742, 0.33
    %v1807 = vmul.f32 %v1743, 0.33
    %v1808 = vmul.f32 %v1744, 0.33
    %v1809 = vmul.f32 %v1745, 0.33
    %v1810 = vmul.f32 %v1746, 0.33
    %v1811 = vmul.f32 %v1747, 0.33
    %v1812 = vmul.f32 %v1748, 0.33
    %v1813 = vmul.f32 %v1749, 0.33
    %v1814 = vmul.f32 %v1750, 0.33
    %v1815 = vmul.f32 %v1751, 0.33
    %v1816 = vmul.f32 %v1752, 0.33
    %v1817 = vmul.f32 %v1753, 0.33
    %v1818 = vmul.f32 %v1754, 0.33
    %v1819 = vmul.f32 %v1755, 0.33
    %v1820 = vmul.f32 %v1756, 0.33
    %v1821 = vmul.f32 %v1757, 0.33
    %v1822 = vmul.f32 %v1758, 0.33
    %v1823 = vmul.f32 %v1759, 0.33
    %v1824 = vmul.f32 %v1760, 0.33
    %v1825 = vsel %vm1761, %v1729, %v1793
    %v1826 = vsel %vm1762, %v1730, %v1794
    %v1827 = vsel %vm1763, %v1731, %v1795
    %v1828 = vsel %vm1764, %v1732, %v1796
    %v1829 = vsel %vm1765, %v1733, %v1797
    %v1830 = vsel %vm1766, %v1734, %v1798
    %v1831 = vsel %vm1767, %v1735, %v1799
    %v1832 = vsel %vm1768, %v1736, %v1800
    %v1833 = vsel %vm1769, %v1737, %v1801
    %v1834 = vsel %vm1770, %v1738, %v1802
    %v1835 = vsel %vm1771, %v1739, %v1803
    %v1836 = vsel %vm1772, %v1740, %v1804
    %v1837 = vsel %vm1773, %v1741, %v1805
    %v1838 = vsel %vm1774, %v1742, %v1806
    %v1839 = vsel %vm1775, %v1743, %v1807
    %v1840 = vsel %vm1776, %v1744, %v1808
    %v1841 = vsel %vm1777, %v1745, %v1809
    %v1842 = vsel %vm1778, %v1746, %v1810
    %v1843 = vsel %vm1779, %v1747, %v1811
    %v1844 = vsel %vm1780, %v1748, %v1812
    %v1845 = vsel %vm1781, %v1749, %v1813
    %v1846 = vsel %vm1782, %v1750, %v1814
    %v1847 = vsel %vm1783, %v1751, %v1815
    %v1848 = vsel %vm1784, %v1752, %v1816
    %v1849 = vsel %vm1785, %v1753, %v1817
    %v1850 = vsel %vm1786, %v1754, %v1818
    %v1851 = vsel %vm1787, %v1755, %v1819
    %v1852 = vsel %vm1788, %v1756, %v1820
    %v1853 = vsel %vm1789, %v1757, %v1821
    %v1854 = vsel %vm1790, %v1758, %v1822
    %v1855 = vsel %vm1791, %v1759, %v1823
    %v1856 = vsel %vm1792, %v1760, %v1824
    %v1857 = vpack.c.bf16 %v1829, %v1825
    %v1858 = vpack.c.bf16 %v1830, %v1826
    %v1859 = vpack.c.bf16 %v1831, %v1827
    %v1860 = vpack.c.bf16 %v1832, %v1828
    %v1861 = vpack.c.bf16 %v1837, %v1833
    %v1862 = vpack.c.bf16 %v1838, %v1834
    %v1863 = vpack.c.bf16 %v1839, %v1835
    %v1864 = vpack.c.bf16 %v1840, %v1836
    %v1865 = vpack.c.bf16 %v1845, %v1841
    %v1866 = vpack.c.bf16 %v1846, %v1842
    %v1867 = vpack.c.bf16 %v1847, %v1843
    %v1868 = vpack.c.bf16 %v1848, %v1844
    %v1869 = vpack.c.bf16 %v1853, %v1849
    %v1870 = vpack.c.bf16 %v1854, %v1850
    %v1871 = vpack.c.bf16 %v1855, %v1851
    %v1872 = vpack.c.bf16 %v1856, %v1852
    %v1873 = vld [vmem:[%s11] sm:$0xf]
    %v1874 = vld [vmem:[%s11 + $0x4] sm:$0xf]
    %v1875 = vld [vmem:[%s11 + $0x8] sm:$0xf]
    %v1876 = vld [vmem:[%s11 + $0xc] sm:$0xf]
    %v1877 = vld [vmem:[%s11 + $0x10] sm:$0xf]
    %v1878 = vld [vmem:[%s11 + $0x14] sm:$0xf]
    %v1879 = vld [vmem:[%s11 + $0x18] sm:$0xf]
    %v1880 = vld [vmem:[%s11 + $0x1c] sm:$0xf]
    %v1881 = vld [vmem:[%s11 + $0x20] sm:$0xf]
    %v1882 = vld [vmem:[%s11 + $0x24] sm:$0xf]
    %v1883 = vld [vmem:[%s11 + $0x28] sm:$0xf]
    %v1884 = vld [vmem:[%s11 + $0x2c] sm:$0xf]
    %v1885 = vld [vmem:[%s11 + $0x30] sm:$0xf]
    %v1886 = vld [vmem:[%s11 + $0x34] sm:$0xf]
    %v1887 = vld [vmem:[%s11 + $0x38] sm:$0xf]
    %v1888 = vld [vmem:[%s11 + $0x3c] sm:$0xf]
    %v1889 = vld [vmem:[%s11 + $0x40] sm:$0xf]
    %v1890 = vld [vmem:[%s11 + $0x44] sm:$0xf]
    %v1891 = vld [vmem:[%s11 + $0x48] sm:$0xf]
    %v1892 = vld [vmem:[%s11 + $0x4c] sm:$0xf]
    %v1893 = vld [vmem:[%s11 + $0x50] sm:$0xf]
    %v1894 = vld [vmem:[%s11 + $0x54] sm:$0xf]
    %v1895 = vld [vmem:[%s11 + $0x58] sm:$0xf]
    %v1896 = vld [vmem:[%s11 + $0x5c] sm:$0xf]
    %v1897 = vld [vmem:[%s11 + $0x60] sm:$0xf]
    %v1898 = vld [vmem:[%s11 + $0x64] sm:$0xf]
    %v1899 = vld [vmem:[%s11 + $0x68] sm:$0xf]
    %v1900 = vld [vmem:[%s11 + $0x6c] sm:$0xf]
    %v1901 = vld [vmem:[%s11 + $0x70] sm:$0xf]
    %v1902 = vld [vmem:[%s11 + $0x74] sm:$0xf]
    %v1903 = vld [vmem:[%s11 + $0x78] sm:$0xf]
    %v1904 = vld [vmem:[%s11 + $0x7c] sm:$0xf]
    %v1905 = vld [vmem:[%s11 + $0x80] sm:$0xf]
    %v1906 = vld [vmem:[%s11 + $0x84] sm:$0xf]
    %v1907 = vld [vmem:[%s11 + $0x88] sm:$0xf]
    %v1908 = vld [vmem:[%s11 + $0x8c] sm:$0xf]
    %v1909 = vld [vmem:[%s11 + $0x90] sm:$0xf]
    %v1910 = vld [vmem:[%s11 + $0x94] sm:$0xf]
    %v1911 = vld [vmem:[%s11 + $0x98] sm:$0xf]
    %v1912 = vld [vmem:[%s11 + $0x9c] sm:$0xf]
    %v1913 = vld [vmem:[%s11 + $0xa0] sm:$0xf]
    %v1914 = vld [vmem:[%s11 + $0xa4] sm:$0xf]
    %v1915 = vld [vmem:[%s11 + $0xa8] sm:$0xf]
    %v1916 = vld [vmem:[%s11 + $0xac] sm:$0xf]
    %v1917 = vld [vmem:[%s11 + $0xb0] sm:$0xf]
    %v1918 = vld [vmem:[%s11 + $0xb4] sm:$0xf]
    %v1919 = vld [vmem:[%s11 + $0xb8] sm:$0xf]
    %v1920 = vld [vmem:[%s11 + $0xbc] sm:$0xf]
    %v1921 = vld [vmem:[%s11 + $0xc0] sm:$0xf]
    %v1922 = vld [vmem:[%s11 + $0xc4] sm:$0xf]
    %v1923 = vld [vmem:[%s11 + $0xc8] sm:$0xf]
    %v1924 = vld [vmem:[%s11 + $0xcc] sm:$0xf]
    %v1925 = vld [vmem:[%s11 + $0xd0] sm:$0xf]
    %v1926 = vld [vmem:[%s11 + $0xd4] sm:$0xf]
    %v1927 = vld [vmem:[%s11 + $0xd8] sm:$0xf]
    %v1928 = vld [vmem:[%s11 + $0xdc] sm:$0xf]
    %v1929 = vld [vmem:[%s11 + $0xe0] sm:$0xf]
    %v1930 = vld [vmem:[%s11 + $0xe4] sm:$0xf]
    %v1931 = vld [vmem:[%s11 + $0xe8] sm:$0xf]
    %v1932 = vld [vmem:[%s11 + $0xec] sm:$0xf]
    %v1933 = vld [vmem:[%s11 + $0xf0] sm:$0xf]
    %v1934 = vld [vmem:[%s11 + $0xf4] sm:$0xf]
    %v1935 = vld [vmem:[%s11 + $0xf8] sm:$0xf]
    %v1936 = vld [vmem:[%s11 + $0xfc] sm:$0xf]
    %v1937 = vld [vmem:[#allocation18] sm:$0x1]
    %v1939 = vlaneseq
    %v1940 = vshrl.u32 %v1939, 7
    %v1941 = vsub.s32 0, %v1940
    %v1942 = vrot.slane %v1937, %v1941
    %v2008 = vunpack.c.l.b16 %v1873
    %v2009 = vunpack.c.l.b16 %v1874
    %v2010 = vunpack.c.l.b16 %v1875
    %v2011 = vunpack.c.l.b16 %v1876
    %v2012 = vunpack.c.l.b16 %v1877
    %v2013 = vunpack.c.l.b16 %v1878
    %v2014 = vunpack.c.l.b16 %v1879
    %v2015 = vunpack.c.l.b16 %v1880
    %v2016 = vunpack.c.l.b16 %v1881
    %v2017 = vunpack.c.l.b16 %v1882
    %v2018 = vunpack.c.l.b16 %v1883
    %v2019 = vunpack.c.l.b16 %v1884
    %v2020 = vunpack.c.l.b16 %v1885
    %v2021 = vunpack.c.l.b16 %v1886
    %v2022 = vunpack.c.l.b16 %v1887
    %v2023 = vunpack.c.l.b16 %v1888
    %v2024 = vunpack.c.l.b16 %v1889
    %v2025 = vunpack.c.l.b16 %v1890
    %v2026 = vunpack.c.l.b16 %v1891
    %v2027 = vunpack.c.l.b16 %v1892
    %v2028 = vunpack.c.l.b16 %v1893
    %v2029 = vunpack.c.l.b16 %v1894
    %v2030 = vunpack.c.l.b16 %v1895
    %v2031 = vunpack.c.l.b16 %v1896
    %v2032 = vunpack.c.l.b16 %v1897
    %v2033 = vunpack.c.l.b16 %v1898
    %v2034 = vunpack.c.l.b16 %v1899
    %v2035 = vunpack.c.l.b16 %v1900
    %v2036 = vunpack.c.l.b16 %v1901
    %v2037 = vunpack.c.l.b16 %v1902
    %v2038 = vunpack.c.l.b16 %v1903
    %v2039 = vunpack.c.l.b16 %v1904
    %v2040 = vunpack.c.l.b16 %v1905
    %v2041 = vunpack.c.l.b16 %v1906
    %v2042 = vunpack.c.l.b16 %v1907
    %v2043 = vunpack.c.l.b16 %v1908
    %v2044 = vunpack.c.l.b16 %v1909
    %v2045 = vunpack.c.l.b16 %v1910
    %v2046 = vunpack.c.l.b16 %v1911
    %v2047 = vunpack.c.l.b16 %v1912
    %v2048 = vunpack.c.l.b16 %v1913
    %v2049 = vunpack.c.l.b16 %v1914
    %v2050 = vunpack.c.l.b16 %v1915
    %v2051 = vunpack.c.l.b16 %v1916
    %v2052 = vunpack.c.l.b16 %v1917
    %v2053 = vunpack.c.l.b16 %v1918
    %v2054 = vunpack.c.l.b16 %v1919
    %v2055 = vunpack.c.l.b16 %v1920
    %v2056 = vunpack.c.l.b16 %v1921
    %v2057 = vunpack.c.l.b16 %v1922
    %v2058 = vunpack.c.l.b16 %v1923
    %v2059 = vunpack.c.l.b16 %v1924
    %v2060 = vunpack.c.l.b16 %v1925
    %v2061 = vunpack.c.l.b16 %v1926
    %v2062 = vunpack.c.l.b16 %v1927
    %v2063 = vunpack.c.l.b16 %v1928
    %v2064 = vunpack.c.l.b16 %v1929
    %v2065 = vunpack.c.l.b16 %v1930
    %v2066 = vunpack.c.l.b16 %v1931
    %v2067 = vunpack.c.l.b16 %v1932
    %v2068 = vunpack.c.l.b16 %v1933
    %v2069 = vunpack.c.l.b16 %v1934
    %v2070 = vunpack.c.l.b16 %v1935
    %v2071 = vunpack.c.l.b16 %v1936
    %v2072 = vpack.c.b16 %v2009, %v2008
    %v2073 = vpack.c.b16 %v2011, %v2010
    %v2074 = vpack.c.b16 %v2013, %v2012
    %v2075 = vpack.c.b16 %v2015, %v2014
    %v2076 = vpack.c.b16 %v2017, %v2016
    %v2077 = vpack.c.b16 %v2019, %v2018
    %v2078 = vpack.c.b16 %v2021, %v2020
    %v2079 = vpack.c.b16 %v2023, %v2022
    %v2080 = vpack.c.b16 %v2025, %v2024
    %v2081 = vpack.c.b16 %v2027, %v2026
    %v2082 = vpack.c.b16 %v2029, %v2028
    %v2083 = vpack.c.b16 %v2031, %v2030
    %v2084 = vpack.c.b16 %v2033, %v2032
    %v2085 = vpack.c.b16 %v2035, %v2034
    %v2086 = vpack.c.b16 %v2037, %v2036
    %v2087 = vpack.c.b16 %v2039, %v2038
    %v2088 = vpack.c.b16 %v2041, %v2040
    %v2089 = vpack.c.b16 %v2043, %v2042
    %v2090 = vpack.c.b16 %v2045, %v2044
    %v2091 = vpack.c.b16 %v2047, %v2046
    %v2092 = vpack.c.b16 %v2049, %v2048
    %v2093 = vpack.c.b16 %v2051, %v2050
    %v2094 = vpack.c.b16 %v2053, %v2052
    %v2095 = vpack.c.b16 %v2055, %v2054
    %v2096 = vpack.c.b16 %v2057, %v2056
    %v2097 = vpack.c.b16 %v2059, %v2058
    %v2098 = vpack.c.b16 %v2061, %v2060
    %v2099 = vpack.c.b16 %v2063, %v2062
    %v2100 = vpack.c.b16 %v2065, %v2064
    %v2101 = vpack.c.b16 %v2067, %v2066
    %v2102 = vpack.c.b16 %v2069, %v2068
    %v2103 = vpack.c.b16 %v2071, %v2070
    %2136 = vmatprep.subr.bf16.mxu0 0
    %2137 = vmatpush1.bf16.msra.mxu0 %v2079
    %2138 = vmatprep.subr.bf16.mxu0 0
    %2139 = vmatpush1.bf16.msra.mxu0 %v2078
    %2140 = vmatprep.subr.bf16.mxu0 0
    %2141 = vmatpush1.bf16.msra.mxu0 %v2077
    %2142 = vmatprep.subr.bf16.mxu0 0
    %2143 = vmatpush1.bf16.msra.mxu0 %v2076
    %2144 = vmatprep.subr.bf16.mxu0 0
    %2145 = vmatpush1.bf16.msra.mxu0 %v2075
    %2146 = vmatprep.subr.bf16.mxu0 0
    %2147 = vmatpush1.bf16.msra.mxu0 %v2074
    %2148 = vmatprep.subr.bf16.mxu0 0
    %2149 = vmatpush1.bf16.msra.mxu0 %v2073
    %2150 = vmatprep.subr.bf16.mxu0 0
    %2151 = vmatpush1.bf16.msra.mxu0 %v2072
    %2152 = vmatprep.subr.bf16.mxu0 0
    %2153 = vmatpush2.bf16.msra.mxu0 %v2087
    %2154 = vmatprep.subr.bf16.mxu0 0
    %2155 = vmatpush2.bf16.msra.mxu0 %v2086
    %2156 = vmatprep.subr.bf16.mxu0 0
    %2157 = vmatpush2.bf16.msra.mxu0 %v2085
    %2158 = vmatprep.subr.bf16.mxu0 0
    %2159 = vmatpush2.bf16.msra.mxu0 %v2084
    %2160 = vmatprep.subr.bf16.mxu0 0
    %2161 = vmatpush2.bf16.msra.mxu0 %v2083
    %2162 = vmatprep.subr.bf16.mxu0 0
    %2163 = vmatpush2.bf16.msra.mxu0 %v2082
    %2164 = vmatprep.subr.bf16.mxu0 0
    %2165 = vmatpush2.bf16.msra.mxu0 %v2081
    %2166 = vmatprep.subr.bf16.mxu0 0
    %2167 = vmatpush2.bf16.msra.mxu0 %v2080
    %2168 = vmatprep.mubr.bf16.mxu0 %v1596
    %2169 = vmatmul.mubr.bf16.gmra.mxu0 %v1595
    %v2170 = vpop.f32.mrf.mxu0
    %v2171 = vadd.f32 %v1942, %v2170
    %v2172 = vpop.f32.mrf.mxu0
    %v2173 = vpop.f32.mrf.mxu0
    %v2174 = vadd.f32 %v1942, %v2173
    %v2175 = vpop.f32.mrf.mxu0
    %2176 = vmatprep.mubr.bf16.mxu0 %v1600
    %2177 = vmatmul.mubr.bf16.gmra.mxu0 %v1599
    %v2178 = vpop.f32.mrf.mxu0
    %v2179 = vadd.f32 %v1942, %v2178
    %v2180 = vpop.f32.mrf.mxu0
    %v2181 = vpop.f32.mrf.mxu0
    %v2182 = vadd.f32 %v1942, %v2181
    %v2183 = vpop.f32.mrf.mxu0
    %2184 = vmatprep.mubr.bf16.mxu0 %v1604
    %2185 = vmatmul.mubr.bf16.gmra.mxu0 %v1603
    %v2186 = vpop.f32.mrf.mxu0
    %v2187 = vadd.f32 %v1942, %v2186
    %v2188 = vpop.f32.mrf.mxu0
    %v2189 = vpop.f32.mrf.mxu0
    %v2190 = vadd.f32 %v1942, %v2189
    %v2191 = vpop.f32.mrf.mxu0
    %2192 = vmatprep.mubr.bf16.mxu0 %v1608
    %2193 = vmatmul.mubr.bf16.gmra.mxu0 %v1607
    %v2194 = vpop.f32.mrf.mxu0
    %v2195 = vadd.f32 %v1942, %v2194
    %v2196 = vpop.f32.mrf.mxu0
    %v2197 = vpop.f32.mrf.mxu0
    %v2198 = vadd.f32 %v1942, %v2197
    %v2199 = vpop.f32.mrf.mxu0
    %2200 = vdwg.mxu0
    %2201 = vmatprep.subr.bf16.mxu0 0
    %2202 = vmatpush1.bf16.msra.mxu0 %v2095
    %2203 = vmatprep.subr.bf16.mxu0 0
    %2204 = vmatpush1.bf16.msra.mxu0 %v2094
    %2205 = vmatprep.subr.bf16.mxu0 0
    %2206 = vmatpush1.bf16.msra.mxu0 %v2093
    %2207 = vmatprep.subr.bf16.mxu0 0
    %2208 = vmatpush1.bf16.msra.mxu0 %v2092
    %2209 = vmatprep.subr.bf16.mxu0 0
    %2210 = vmatpush1.bf16.msra.mxu0 %v2091
    %2211 = vmatprep.subr.bf16.mxu0 0
    %2212 = vmatpush1.bf16.msra.mxu0 %v2090
    %2213 = vmatprep.subr.bf16.mxu0 0
    %2214 = vmatpush1.bf16.msra.mxu0 %v2089
    %2215 = vmatprep.subr.bf16.mxu0 0
    %2216 = vmatpush1.bf16.msra.mxu0 %v2088
    %2217 = vmatprep.subr.bf16.mxu0 0
    %2218 = vmatpush2.bf16.msra.mxu0 %v2103
    %2219 = vmatprep.subr.bf16.mxu0 0
    %2220 = vmatpush2.bf16.msra.mxu0 %v2102
    %2221 = vmatprep.subr.bf16.mxu0 0
    %2222 = vmatpush2.bf16.msra.mxu0 %v2101
    %2223 = vmatprep.subr.bf16.mxu0 0
    %2224 = vmatpush2.bf16.msra.mxu0 %v2100
    %2225 = vmatprep.subr.bf16.mxu0 0
    %2226 = vmatpush2.bf16.msra.mxu0 %v2099
    %2227 = vmatprep.subr.bf16.mxu0 0
    %2228 = vmatpush2.bf16.msra.mxu0 %v2098
    %2229 = vmatprep.subr.bf16.mxu0 0
    %2230 = vmatpush2.bf16.msra.mxu0 %v2097
    %2231 = vmatprep.subr.bf16.mxu0 0
    %2232 = vmatpush2.bf16.msra.mxu0 %v2096
    %2233 = vmatprep.mubr.bf16.mxu0 %v1598
    %2234 = vmatmul.mubr.bf16.gmra.mxu0 %v1597
    %v2235 = vpop.f32.mrf.mxu0
    %v2236 = vadd.f32 %v2171, %v2235
    %v2237 = vpop.f32.mrf.mxu0
    %v2238 = vpop.f32.mrf.mxu0
    %v2239 = vadd.f32 %v2174, %v2238
    %v2240 = vpop.f32.mrf.mxu0
    %2241 = vmatprep.mubr.bf16.mxu0 %v1602
    %2242 = vmatmul.mubr.bf16.gmra.mxu0 %v1601
    %v2243 = vpop.f32.mrf.mxu0
    %v2244 = vadd.f32 %v2179, %v2243
    %v2245 = vpop.f32.mrf.mxu0
    %v2246 = vpop.f32.mrf.mxu0
    %v2247 = vadd.f32 %v2182, %v2246
    %v2248 = vpop.f32.mrf.mxu0
    %2249 = vmatprep.mubr.bf16.mxu0 %v1606
    %2250 = vmatmul.mubr.bf16.gmra.mxu0 %v1605
    %v2251 = vpop.f32.mrf.mxu0
    %v2252 = vadd.f32 %v2187, %v2251
    %v2253 = vpop.f32.mrf.mxu0
    %v2254 = vpop.f32.mrf.mxu0
    %v2255 = vadd.f32 %v2190, %v2254
    %v2256 = vpop.f32.mrf.mxu0
    %2257 = vmatprep.mubr.bf16.mxu0 %v1610
    %2258 = vmatmul.mubr.bf16.gmra.mxu0 %v1609
    %v2259 = vpop.f32.mrf.mxu0
    %v2260 = vadd.f32 %v2195, %v2259
    %v2261 = vpop.f32.mrf.mxu0
    %v2262 = vpop.f32.mrf.mxu0
    %v2263 = vadd.f32 %v2198, %v2262
    %v2264 = vpop.f32.mrf.mxu0
    %2265 = vdwg.mxu0
    %v2266 = vld [vmem:[%s13] sm:$0xf]
    %v2267 = vld [vmem:[%s13 + $0x4] sm:$0xf]
    %v2268 = vld [vmem:[%s13 + $0x8] sm:$0xf]
    %v2269 = vld [vmem:[%s13 + $0xc] sm:$0xf]
    %v2270 = vld [vmem:[%s13 + $0x10] sm:$0xf]
    %v2271 = vld [vmem:[%s13 + $0x14] sm:$0xf]
    %v2272 = vld [vmem:[%s13 + $0x18] sm:$0xf]
    %v2273 = vld [vmem:[%s13 + $0x1c] sm:$0xf]
    %v2274 = vld [vmem:[%s13 + $0x20] sm:$0xf]
    %v2275 = vld [vmem:[%s13 + $0x24] sm:$0xf]
    %v2276 = vld [vmem:[%s13 + $0x28] sm:$0xf]
    %v2277 = vld [vmem:[%s13 + $0x2c] sm:$0xf]
    %v2278 = vld [vmem:[%s13 + $0x30] sm:$0xf]
    %v2279 = vld [vmem:[%s13 + $0x34] sm:$0xf]
    %v2280 = vld [vmem:[%s13 + $0x38] sm:$0xf]
    %v2281 = vld [vmem:[%s13 + $0x3c] sm:$0xf]
    %v2282 = vld [vmem:[%s13 + $0x40] sm:$0xf]
    %v2283 = vld [vmem:[%s13 + $0x44] sm:$0xf]
    %v2284 = vld [vmem:[%s13 + $0x48] sm:$0xf]
    %v2285 = vld [vmem:[%s13 + $0x4c] sm:$0xf]
    %v2286 = vld [vmem:[%s13 + $0x50] sm:$0xf]
    %v2287 = vld [vmem:[%s13 + $0x54] sm:$0xf]
    %v2288 = vld [vmem:[%s13 + $0x58] sm:$0xf]
    %v2289 = vld [vmem:[%s13 + $0x5c] sm:$0xf]
    %v2290 = vld [vmem:[%s13 + $0x60] sm:$0xf]
    %v2291 = vld [vmem:[%s13 + $0x64] sm:$0xf]
    %v2292 = vld [vmem:[%s13 + $0x68] sm:$0xf]
    %v2293 = vld [vmem:[%s13 + $0x6c] sm:$0xf]
    %v2294 = vld [vmem:[%s13 + $0x70] sm:$0xf]
    %v2295 = vld [vmem:[%s13 + $0x74] sm:$0xf]
    %v2296 = vld [vmem:[%s13 + $0x78] sm:$0xf]
    %v2297 = vld [vmem:[%s13 + $0x7c] sm:$0xf]
    %v2298 = vld [vmem:[%s13 + $0x80] sm:$0xf]
    %v2299 = vld [vmem:[%s13 + $0x84] sm:$0xf]
    %v2300 = vld [vmem:[%s13 + $0x88] sm:$0xf]
    %v2301 = vld [vmem:[%s13 + $0x8c] sm:$0xf]
    %v2302 = vld [vmem:[%s13 + $0x90] sm:$0xf]
    %v2303 = vld [vmem:[%s13 + $0x94] sm:$0xf]
    %v2304 = vld [vmem:[%s13 + $0x98] sm:$0xf]
    %v2305 = vld [vmem:[%s13 + $0x9c] sm:$0xf]
    %v2306 = vld [vmem:[%s13 + $0xa0] sm:$0xf]
    %v2307 = vld [vmem:[%s13 + $0xa4] sm:$0xf]
    %v2308 = vld [vmem:[%s13 + $0xa8] sm:$0xf]
    %v2309 = vld [vmem:[%s13 + $0xac] sm:$0xf]
    %v2310 = vld [vmem:[%s13 + $0xb0] sm:$0xf]
    %v2311 = vld [vmem:[%s13 + $0xb4] sm:$0xf]
    %v2312 = vld [vmem:[%s13 + $0xb8] sm:$0xf]
    %v2313 = vld [vmem:[%s13 + $0xbc] sm:$0xf]
    %v2314 = vld [vmem:[%s13 + $0xc0] sm:$0xf]
    %v2315 = vld [vmem:[%s13 + $0xc4] sm:$0xf]
    %v2316 = vld [vmem:[%s13 + $0xc8] sm:$0xf]
    %v2317 = vld [vmem:[%s13 + $0xcc] sm:$0xf]
    %v2318 = vld [vmem:[%s13 + $0xd0] sm:$0xf]
    %v2319 = vld [vmem:[%s13 + $0xd4] sm:$0xf]
    %v2320 = vld [vmem:[%s13 + $0xd8] sm:$0xf]
    %v2321 = vld [vmem:[%s13 + $0xdc] sm:$0xf]
    %v2322 = vld [vmem:[%s13 + $0xe0] sm:$0xf]
    %v2323 = vld [vmem:[%s13 + $0xe4] sm:$0xf]
    %v2324 = vld [vmem:[%s13 + $0xe8] sm:$0xf]
    %v2325 = vld [vmem:[%s13 + $0xec] sm:$0xf]
    %v2326 = vld [vmem:[%s13 + $0xf0] sm:$0xf]
    %v2327 = vld [vmem:[%s13 + $0xf4] sm:$0xf]
    %v2328 = vld [vmem:[%s13 + $0xf8] sm:$0xf]
    %v2329 = vld [vmem:[%s13 + $0xfc] sm:$0xf]
    %v2330 = vld [vmem:[%s14] sm:$0x1]
    %v2332 = vlaneseq
    %v2333 = vshrl.u32 %v2332, 7
    %v2334 = vsub.s32 0, %v2333
    %v2335 = vrot.slane %v2330, %v2334
    %v2401 = vunpack.c.l.b16 %v2266
    %v2402 = vunpack.c.l.b16 %v2267
    %v2403 = vunpack.c.l.b16 %v2268
    %v2404 = vunpack.c.l.b16 %v2269
    %v2405 = vunpack.c.l.b16 %v2270
    %v2406 = vunpack.c.l.b16 %v2271
    %v2407 = vunpack.c.l.b16 %v2272
    %v2408 = vunpack.c.l.b16 %v2273
    %v2409 = vunpack.c.l.b16 %v2274
    %v2410 = vunpack.c.l.b16 %v2275
    %v2411 = vunpack.c.l.b16 %v2276
    %v2412 = vunpack.c.l.b16 %v2277
    %v2413 = vunpack.c.l.b16 %v2278
    %v2414 = vunpack.c.l.b16 %v2279
    %v2415 = vunpack.c.l.b16 %v2280
    %v2416 = vunpack.c.l.b16 %v2281
    %v2417 = vunpack.c.l.b16 %v2282
    %v2418 = vunpack.c.l.b16 %v2283
    %v2419 = vunpack.c.l.b16 %v2284
    %v2420 = vunpack.c.l.b16 %v2285
    %v2421 = vunpack.c.l.b16 %v2286
    %v2422 = vunpack.c.l.b16 %v2287
    %v2423 = vunpack.c.l.b16 %v2288
    %v2424 = vunpack.c.l.b16 %v2289
    %v2425 = vunpack.c.l.b16 %v2290
    %v2426 = vunpack.c.l.b16 %v2291
    %v2427 = vunpack.c.l.b16 %v2292
    %v2428 = vunpack.c.l.b16 %v2293
    %v2429 = vunpack.c.l.b16 %v2294
    %v2430 = vunpack.c.l.b16 %v2295
    %v2431 = vunpack.c.l.b16 %v2296
    %v2432 = vunpack.c.l.b16 %v2297
    %v2433 = vunpack.c.l.b16 %v2298
    %v2434 = vunpack.c.l.b16 %v2299
    %v2435 = vunpack.c.l.b16 %v2300
    %v2436 = vunpack.c.l.b16 %v2301
    %v2437 = vunpack.c.l.b16 %v2302
    %v2438 = vunpack.c.l.b16 %v2303
    %v2439 = vunpack.c.l.b16 %v2304
    %v2440 = vunpack.c.l.b16 %v2305
    %v2441 = vunpack.c.l.b16 %v2306
    %v2442 = vunpack.c.l.b16 %v2307
    %v2443 = vunpack.c.l.b16 %v2308
    %v2444 = vunpack.c.l.b16 %v2309
    %v2445 = vunpack.c.l.b16 %v2310
    %v2446 = vunpack.c.l.b16 %v2311
    %v2447 = vunpack.c.l.b16 %v2312
    %v2448 = vunpack.c.l.b16 %v2313
    %v2449 = vunpack.c.l.b16 %v2314
    %v2450 = vunpack.c.l.b16 %v2315
    %v2451 = vunpack.c.l.b16 %v2316
    %v2452 = vunpack.c.l.b16 %v2317
    %v2453 = vunpack.c.l.b16 %v2318
    %v2454 = vunpack.c.l.b16 %v2319
    %v2455 = vunpack.c.l.b16 %v2320
    %v2456 = vunpack.c.l.b16 %v2321
    %v2457 = vunpack.c.l.b16 %v2322
    %v2458 = vunpack.c.l.b16 %v2323
    %v2459 = vunpack.c.l.b16 %v2324
    %v2460 = vunpack.c.l.b16 %v2325
    %v2461 = vunpack.c.l.b16 %v2326
    %v2462 = vunpack.c.l.b16 %v2327
    %v2463 = vunpack.c.l.b16 %v2328
    %v2464 = vunpack.c.l.b16 %v2329
    %v2465 = vpack.c.b16 %v2402, %v2401
    %v2466 = vpack.c.b16 %v2404, %v2403
    %v2467 = vpack.c.b16 %v2406, %v2405
    %v2468 = vpack.c.b16 %v2408, %v2407
    %v2469 = vpack.c.b16 %v2410, %v2409
    %v2470 = vpack.c.b16 %v2412, %v2411
    %v2471 = vpack.c.b16 %v2414, %v2413
    %v2472 = vpack.c.b16 %v2416, %v2415
    %v2473 = vpack.c.b16 %v2418, %v2417
    %v2474 = vpack.c.b16 %v2420, %v2419
    %v2475 = vpack.c.b16 %v2422, %v2421
    %v2476 = vpack.c.b16 %v2424, %v2423
    %v2477 = vpack.c.b16 %v2426, %v2425
    %v2478 = vpack.c.b16 %v2428, %v2427
    %v2479 = vpack.c.b16 %v2430, %v2429
    %v2480 = vpack.c.b16 %v2432, %v2431
    %v2481 = vpack.c.b16 %v2434, %v2433
    %v2482 = vpack.c.b16 %v2436, %v2435
    %v2483 = vpack.c.b16 %v2438, %v2437
    %v2484 = vpack.c.b16 %v2440, %v2439
    %v2485 = vpack.c.b16 %v2442, %v2441
    %v2486 = vpack.c.b16 %v2444, %v2443
    %v2487 = vpack.c.b16 %v2446, %v2445
    %v2488 = vpack.c.b16 %v2448, %v2447
    %v2489 = vpack.c.b16 %v2450, %v2449
    %v2490 = vpack.c.b16 %v2452, %v2451
    %v2491 = vpack.c.b16 %v2454, %v2453
    %v2492 = vpack.c.b16 %v2456, %v2455
    %v2493 = vpack.c.b16 %v2458, %v2457
    %v2494 = vpack.c.b16 %v2460, %v2459
    %v2495 = vpack.c.b16 %v2462, %v2461
    %v2496 = vpack.c.b16 %v2464, %v2463
    %2529 = vmatprep.subr.bf16.mxu0 0
    %2530 = vmatpush1.bf16.msra.mxu0 %v2472
    %2531 = vmatprep.subr.bf16.mxu0 0
    %2532 = vmatpush1.bf16.msra.mxu0 %v2471
    %2533 = vmatprep.subr.bf16.mxu0 0
    %2534 = vmatpush1.bf16.msra.mxu0 %v2470
    %2535 = vmatprep.subr.bf16.mxu0 0
    %2536 = vmatpush1.bf16.msra.mxu0 %v2469
    %2537 = vmatprep.subr.bf16.mxu0 0
    %2538 = vmatpush1.bf16.msra.mxu0 %v2468
    %2539 = vmatprep.subr.bf16.mxu0 0
    %2540 = vmatpush1.bf16.msra.mxu0 %v2467
    %2541 = vmatprep.subr.bf16.mxu0 0
    %2542 = vmatpush1.bf16.msra.mxu0 %v2466
    %2543 = vmatprep.subr.bf16.mxu0 0
    %2544 = vmatpush1.bf16.msra.mxu0 %v2465
    %2545 = vmatprep.subr.bf16.mxu0 0
    %2546 = vmatpush2.bf16.msra.mxu0 %v2480
    %2547 = vmatprep.subr.bf16.mxu0 0
    %2548 = vmatpush2.bf16.msra.mxu0 %v2479
    %2549 = vmatprep.subr.bf16.mxu0 0
    %2550 = vmatpush2.bf16.msra.mxu0 %v2478
    %2551 = vmatprep.subr.bf16.mxu0 0
    %2552 = vmatpush2.bf16.msra.mxu0 %v2477
    %2553 = vmatprep.subr.bf16.mxu0 0
    %2554 = vmatpush2.bf16.msra.mxu0 %v2476
    %2555 = vmatprep.subr.bf16.mxu0 0
    %2556 = vmatpush2.bf16.msra.mxu0 %v2475
    %2557 = vmatprep.subr.bf16.mxu0 0
    %2558 = vmatpush2.bf16.msra.mxu0 %v2474
    %2559 = vmatprep.subr.bf16.mxu0 0
    %2560 = vmatpush2.bf16.msra.mxu0 %v2473
    %2561 = vmatprep.mubr.bf16.mxu0 %v1858
    %2562 = vmatmul.mubr.bf16.gmra.mxu0 %v1857
    %v2563 = vpop.f32.mrf.mxu0
    %v2564 = vadd.f32 %v2335, %v2563
    %v2565 = vpop.f32.mrf.mxu0
    %v2566 = vpop.f32.mrf.mxu0
    %v2567 = vadd.f32 %v2335, %v2566
    %v2568 = vpop.f32.mrf.mxu0
    %2569 = vmatprep.mubr.bf16.mxu0 %v1862
    %2570 = vmatmul.mubr.bf16.gmra.mxu0 %v1861
    %v2571 = vpop.f32.mrf.mxu0
    %v2572 = vadd.f32 %v2335, %v2571
    %v2573 = vpop.f32.mrf.mxu0
    %v2574 = vpop.f32.mrf.mxu0
    %v2575 = vadd.f32 %v2335, %v2574
    %v2576 = vpop.f32.mrf.mxu0
    %2577 = vmatprep.mubr.bf16.mxu0 %v1866
    %2578 = vmatmul.mubr.bf16.gmra.mxu0 %v1865
    %v2579 = vpop.f32.mrf.mxu0
    %v2580 = vadd.f32 %v2335, %v2579
    %v2581 = vpop.f32.mrf.mxu0
    %v2582 = vpop.f32.mrf.mxu0
    %v2583 = vadd.f32 %v2335, %v2582
    %v2584 = vpop.f32.mrf.mxu0
    %2585 = vmatprep.mubr.bf16.mxu0 %v1870
    %2586 = vmatmul.mubr.bf16.gmra.mxu0 %v1869
    %v2587 = vpop.f32.mrf.mxu0
    %v2588 = vadd.f32 %v2335, %v2587
    %v2589 = vpop.f32.mrf.mxu0
    %v2590 = vpop.f32.mrf.mxu0
    %v2591 = vadd.f32 %v2335, %v2590
    %v2592 = vpop.f32.mrf.mxu0
    %2593 = vdwg.mxu0
    %2594 = vmatprep.subr.bf16.mxu0 0
    %2595 = vmatpush1.bf16.msra.mxu0 %v2488
    %2596 = vmatprep.subr.bf16.mxu0 0
    %2597 = vmatpush1.bf16.msra.mxu0 %v2487
    %2598 = vmatprep.subr.bf16.mxu0 0
    %2599 = vmatpush1.bf16.msra.mxu0 %v2486
    %2600 = vmatprep.subr.bf16.mxu0 0
    %2601 = vmatpush1.bf16.msra.mxu0 %v2485
    %2602 = vmatprep.subr.bf16.mxu0 0
    %2603 = vmatpush1.bf16.msra.mxu0 %v2484
    %2604 = vmatprep.subr.bf16.mxu0 0
    %2605 = vmatpush1.bf16.msra.mxu0 %v2483
    %2606 = vmatprep.subr.bf16.mxu0 0
    %2607 = vmatpush1.bf16.msra.mxu0 %v2482
    %2608 = vmatprep.subr.bf16.mxu0 0
    %2609 = vmatpush1.bf16.msra.mxu0 %v2481
    %2610 = vmatprep.subr.bf16.mxu0 0
    %2611 = vmatpush2.bf16.msra.mxu0 %v2496
    %2612 = vmatprep.subr.bf16.mxu0 0
    %2613 = vmatpush2.bf16.msra.mxu0 %v2495
    %2614 = vmatprep.subr.bf16.mxu0 0
    %2615 = vmatpush2.bf16.msra.mxu0 %v2494
    %2616 = vmatprep.subr.bf16.mxu0 0
    %2617 = vmatpush2.bf16.msra.mxu0 %v2493
    %2618 = vmatprep.subr.bf16.mxu0 0
    %2619 = vmatpush2.bf16.msra.mxu0 %v2492
    %2620 = vmatprep.subr.bf16.mxu0 0
    %2621 = vmatpush2.bf16.msra.mxu0 %v2491
    %2622 = vmatprep.subr.bf16.mxu0 0
    %2623 = vmatpush2.bf16.msra.mxu0 %v2490
    %2624 = vmatprep.subr.bf16.mxu0 0
    %2625 = vmatpush2.bf16.msra.mxu0 %v2489
    %2626 = vmatprep.mubr.bf16.mxu0 %v1860
    %2627 = vmatmul.mubr.bf16.gmra.mxu0 %v1859
    %v2628 = vpop.f32.mrf.mxu0
    %v2629 = vadd.f32 %v2564, %v2628
    %v2630 = vpop.f32.mrf.mxu0
    %v2631 = vpop.f32.mrf.mxu0
    %v2632 = vadd.f32 %v2567, %v2631
    %v2633 = vpop.f32.mrf.mxu0
    %2634 = vmatprep.mubr.bf16.mxu0 %v1864
    %2635 = vmatmul.mubr.bf16.gmra.mxu0 %v1863
    %v2636 = vpop.f32.mrf.mxu0
    %v2637 = vadd.f32 %v2572, %v2636
    %v2638 = vpop.f32.mrf.mxu0
    %v2639 = vpop.f32.mrf.mxu0
    %v2640 = vadd.f32 %v2575, %v2639
    %v2641 = vpop.f32.mrf.mxu0
    %2642 = vmatprep.mubr.bf16.mxu0 %v1868
    %2643 = vmatmul.mubr.bf16.gmra.mxu0 %v1867
    %v2644 = vpop.f32.mrf.mxu0
    %v2645 = vadd.f32 %v2580, %v2644
    %v2646 = vpop.f32.mrf.mxu0
    %v2647 = vpop.f32.mrf.mxu0
    %v2648 = vadd.f32 %v2583, %v2647
    %v2649 = vpop.f32.mrf.mxu0
    %2650 = vmatprep.mubr.bf16.mxu0 %v1872
    %2651 = vmatmul.mubr.bf16.gmra.mxu0 %v1871
    %v2652 = vpop.f32.mrf.mxu0
    %v2653 = vadd.f32 %v2588, %v2652
    %v2654 = vpop.f32.mrf.mxu0
    %v2655 = vpop.f32.mrf.mxu0
    %v2656 = vadd.f32 %v2591, %v2655
    %v2657 = vpop.f32.mrf.mxu0
    %2658 = vdwg.mxu0
    %v2667 = vcombine.high %v2236, %v2236
    %v2669 = vunpack.c.l.s4 1966171168
    %v2670 = vunpack.c.0.s8 %v2669
    %v2671 = vlaneseq
    %v2672 = vshrl.u32 %v2671, 7
    %v2673 = vsub.s32 %v2670, %v2672
    %v2674 = vrot.slane %v2236, %v2673
    %v2676 = vunpack.c.l.s4 1966171168
    %v2677 = vunpack.c.0.s8 %v2676
    %v2678 = vlaneseq
    %v2679 = vshrl.u32 %v2678, 7
    %v2680 = vsub.s32 %v2677, %v2679
    %v2681 = vrot.slane %v2667, %v2680
    %v2682 = vcombine.high %v2674, %v2674
    %v2683 = vcombine.high %v2681, %v2681
    %v2685 = vunpack.c.l.s4 1966171168
    %v2686 = vunpack.c.0.s8 %v2685
    %v2687 = vlaneseq
    %v2688 = vshrl.u32 %v2687, 7
    %v2689 = vsub.s32 %v2686, %v2688
    %v2690 = vrot.slane %v2674, %v2689
    %v2692 = vunpack.c.l.s4 1966171168
    %v2693 = vunpack.c.0.s8 %v2692
    %v2694 = vlaneseq
    %v2695 = vshrl.u32 %v2694, 7
    %v2696 = vsub.s32 %v2693, %v2695
    %v2697 = vrot.slane %v2681, %v2696
    %v2699 = vunpack.c.l.s4 1966171168
    %v2700 = vunpack.c.0.s8 %v2699
    %v2701 = vlaneseq
    %v2702 = vshrl.u32 %v2701, 7
    %v2703 = vsub.s32 %v2700, %v2702
    %v2704 = vrot.slane %v2682, %v2703
    %v2706 = vunpack.c.l.s4 1966171168
    %v2707 = vunpack.c.0.s8 %v2706
    %v2708 = vlaneseq
    %v2709 = vshrl.u32 %v2708, 7
    %v2710 = vsub.s32 %v2707, %v2709
    %v2711 = vrot.slane %v2683, %v2710
    %v2712 = vcombine.high %v2690, %v2690
    %v2713 = vcombine.high %v2697, %v2697
    %v2714 = vcombine.high %v2704, %v2704
    %v2715 = vcombine.high %v2711, %v2711
    %v2716 = vcombine.high %v2239, %v2239
    %v2718 = vunpack.c.l.s4 1966171168
    %v2719 = vunpack.c.0.s8 %v2718
    %v2720 = vlaneseq
    %v2721 = vshrl.u32 %v2720, 7
    %v2722 = vsub.s32 %v2719, %v2721
    %v2723 = vrot.slane %v2239, %v2722
    %v2725 = vunpack.c.l.s4 1966171168
    %v2726 = vunpack.c.0.s8 %v2725
    %v2727 = vlaneseq
    %v2728 = vshrl.u32 %v2727, 7
    %v2729 = vsub.s32 %v2726, %v2728
    %v2730 = vrot.slane %v2716, %v2729
    %v2731 = vcombine.high %v2723, %v2723
    %v2732 = vcombine.high %v2730, %v2730
    %v2734 = vunpack.c.l.s4 1966171168
    %v2735 = vunpack.c.0.s8 %v2734
    %v2736 = vlaneseq
    %v2737 = vshrl.u32 %v2736, 7
    %v2738 = vsub.s32 %v2735, %v2737
    %v2739 = vrot.slane %v2723, %v2738
    %v2741 = vunpack.c.l.s4 1966171168
    %v2742 = vunpack.c.0.s8 %v2741
    %v2743 = vlaneseq
    %v2744 = vshrl.u32 %v2743, 7
    %v2745 = vsub.s32 %v2742, %v2744
    %v2746 = vrot.slane %v2730, %v2745
    %v2748 = vunpack.c.l.s4 1966171168
    %v2749 = vunpack.c.0.s8 %v2748
    %v2750 = vlaneseq
    %v2751 = vshrl.u32 %v2750, 7
    %v2752 = vsub.s32 %v2749, %v2751
    %v2753 = vrot.slane %v2731, %v2752
    %v2755 = vunpack.c.l.s4 1966171168
    %v2756 = vunpack.c.0.s8 %v2755
    %v2757 = vlaneseq
    %v2758 = vshrl.u32 %v2757, 7
    %v2759 = vsub.s32 %v2756, %v2758
    %v2760 = vrot.slane %v2732, %v2759
    %v2761 = vcombine.high %v2739, %v2739
    %v2762 = vcombine.high %v2746, %v2746
    %v2763 = vcombine.high %v2753, %v2753
    %v2764 = vcombine.high %v2760, %v2760
    %v2765 = vcombine.high %v2244, %v2244
    %v2767 = vunpack.c.l.s4 1966171168
    %v2768 = vunpack.c.0.s8 %v2767
    %v2769 = vlaneseq
    %v2770 = vshrl.u32 %v2769, 7
    %v2771 = vsub.s32 %v2768, %v2770
    %v2772 = vrot.slane %v2244, %v2771
    %v2774 = vunpack.c.l.s4 1966171168
    %v2775 = vunpack.c.0.s8 %v2774
    %v2776 = vlaneseq
    %v2777 = vshrl.u32 %v2776, 7
    %v2778 = vsub.s32 %v2775, %v2777
    %v2779 = vrot.slane %v2765, %v2778
    %v2780 = vcombine.high %v2772, %v2772
    %v2781 = vcombine.high %v2779, %v2779
    %v2783 = vunpack.c.l.s4 1966171168
    %v2784 = vunpack.c.0.s8 %v2783
    %v2785 = vlaneseq
    %v2786 = vshrl.u32 %v2785, 7
    %v2787 = vsub.s32 %v2784, %v2786
    %v2788 = vrot.slane %v2772, %v2787
    %v2790 = vunpack.c.l.s4 1966171168
    %v2791 = vunpack.c.0.s8 %v2790
    %v2792 = vlaneseq
    %v2793 = vshrl.u32 %v2792, 7
    %v2794 = vsub.s32 %v2791, %v2793
    %v2795 = vrot.slane %v2779, %v2794
    %v2797 = vunpack.c.l.s4 1966171168
    %v2798 = vunpack.c.0.s8 %v2797
    %v2799 = vlaneseq
    %v2800 = vshrl.u32 %v2799, 7
    %v2801 = vsub.s32 %v2798, %v2800
    %v2802 = vrot.slane %v2780, %v2801
    %v2804 = vunpack.c.l.s4 1966171168
    %v2805 = vunpack.c.0.s8 %v2804
    %v2806 = vlaneseq
    %v2807 = vshrl.u32 %v2806, 7
    %v2808 = vsub.s32 %v2805, %v2807
    %v2809 = vrot.slane %v2781, %v2808
    %v2810 = vcombine.high %v2788, %v2788
    %v2811 = vcombine.high %v2795, %v2795
    %v2812 = vcombine.high %v2802, %v2802
    %v2813 = vcombine.high %v2809, %v2809
    %v2814 = vcombine.high %v2247, %v2247
    %v2816 = vunpack.c.l.s4 1966171168
    %v2817 = vunpack.c.0.s8 %v2816
    %v2818 = vlaneseq
    %v2819 = vshrl.u32 %v2818, 7
    %v2820 = vsub.s32 %v2817, %v2819
    %v2821 = vrot.slane %v2247, %v2820
    %v2823 = vunpack.c.l.s4 1966171168
    %v2824 = vunpack.c.0.s8 %v2823
    %v2825 = vlaneseq
    %v2826 = vshrl.u32 %v2825, 7
    %v2827 = vsub.s32 %v2824, %v2826
    %v2828 = vrot.slane %v2814, %v2827
    %v2829 = vcombine.high %v2821, %v2821
    %v2830 = vcombine.high %v2828, %v2828
    %v2832 = vunpack.c.l.s4 1966171168
    %v2833 = vunpack.c.0.s8 %v2832
    %v2834 = vlaneseq
    %v2835 = vshrl.u32 %v2834, 7
    %v2836 = vsub.s32 %v2833, %v2835
    %v2837 = vrot.slane %v2821, %v2836
    %v2839 = vunpack.c.l.s4 1966171168
    %v2840 = vunpack.c.0.s8 %v2839
    %v2841 = vlaneseq
    %v2842 = vshrl.u32 %v2841, 7
    %v2843 = vsub.s32 %v2840, %v2842
    %v2844 = vrot.slane %v2828, %v2843
    %v2846 = vunpack.c.l.s4 1966171168
    %v2847 = vunpack.c.0.s8 %v2846
    %v2848 = vlaneseq
    %v2849 = vshrl.u32 %v2848, 7
    %v2850 = vsub.s32 %v2847, %v2849
    %v2851 = vrot.slane %v2829, %v2850
    %v2853 = vunpack.c.l.s4 1966171168
    %v2854 = vunpack.c.0.s8 %v2853
    %v2855 = vlaneseq
    %v2856 = vshrl.u32 %v2855, 7
    %v2857 = vsub.s32 %v2854, %v2856
    %v2858 = vrot.slane %v2830, %v2857
    %v2859 = vcombine.high %v2837, %v2837
    %v2860 = vcombine.high %v2844, %v2844
    %v2861 = vcombine.high %v2851, %v2851
    %v2862 = vcombine.high %v2858, %v2858
    %v2863 = vcombine.high %v2252, %v2252
    %v2865 = vunpack.c.l.s4 1966171168
    %v2866 = vunpack.c.0.s8 %v2865
    %v2867 = vlaneseq
    %v2868 = vshrl.u32 %v2867, 7
    %v2869 = vsub.s32 %v2866, %v2868
    %v2870 = vrot.slane %v2252, %v2869
    %v2872 = vunpack.c.l.s4 1966171168
    %v2873 = vunpack.c.0.s8 %v2872
    %v2874 = vlaneseq
    %v2875 = vshrl.u32 %v2874, 7
    %v2876 = vsub.s32 %v2873, %v2875
    %v2877 = vrot.slane %v2863, %v2876
    %v2878 = vcombine.high %v2870, %v2870
    %v2879 = vcombine.high %v2877, %v2877
    %v2881 = vunpack.c.l.s4 1966171168
    %v2882 = vunpack.c.0.s8 %v2881
    %v2883 = vlaneseq
    %v2884 = vshrl.u32 %v2883, 7
    %v2885 = vsub.s32 %v2882, %v2884
    %v2886 = vrot.slane %v2870, %v2885
    %v2888 = vunpack.c.l.s4 1966171168
    %v2889 = vunpack.c.0.s8 %v2888
    %v2890 = vlaneseq
    %v2891 = vshrl.u32 %v2890, 7
    %v2892 = vsub.s32 %v2889, %v2891
    %v2893 = vrot.slane %v2877, %v2892
    %v2895 = vunpack.c.l.s4 1966171168
    %v2896 = vunpack.c.0.s8 %v2895
    %v2897 = vlaneseq
    %v2898 = vshrl.u32 %v2897, 7
    %v2899 = vsub.s32 %v2896, %v2898
    %v2900 = vrot.slane %v2878, %v2899
    %v2902 = vunpack.c.l.s4 1966171168
    %v2903 = vunpack.c.0.s8 %v2902
    %v2904 = vlaneseq
    %v2905 = vshrl.u32 %v2904, 7
    %v2906 = vsub.s32 %v2903, %v2905
    %v2907 = vrot.slane %v2879, %v2906
    %v2908 = vcombine.high %v2886, %v2886
    %v2909 = vcombine.high %v2893, %v2893
    %v2910 = vcombine.high %v2900, %v2900
    %v2911 = vcombine.high %v2907, %v2907
    %v2912 = vcombine.high %v2255, %v2255
    %v2914 = vunpack.c.l.s4 1966171168
    %v2915 = vunpack.c.0.s8 %v2914
    %v2916 = vlaneseq
    %v2917 = vshrl.u32 %v2916, 7
    %v2918 = vsub.s32 %v2915, %v2917
    %v2919 = vrot.slane %v2255, %v2918
    %v2921 = vunpack.c.l.s4 1966171168
    %v2922 = vunpack.c.0.s8 %v2921
    %v2923 = vlaneseq
    %v2924 = vshrl.u32 %v2923, 7
    %v2925 = vsub.s32 %v2922, %v2924
    %v2926 = vrot.slane %v2912, %v2925
    %v2927 = vcombine.high %v2919, %v2919
    %v2928 = vcombine.high %v2926, %v2926
    %v2930 = vunpack.c.l.s4 1966171168
    %v2931 = vunpack.c.0.s8 %v2930
    %v2932 = vlaneseq
    %v2933 = vshrl.u32 %v2932, 7
    %v2934 = vsub.s32 %v2931, %v2933
    %v2935 = vrot.slane %v2919, %v2934
    %v2937 = vunpack.c.l.s4 1966171168
    %v2938 = vunpack.c.0.s8 %v2937
    %v2939 = vlaneseq
    %v2940 = vshrl.u32 %v2939, 7
    %v2941 = vsub.s32 %v2938, %v2940
    %v2942 = vrot.slane %v2926, %v2941
    %v2944 = vunpack.c.l.s4 1966171168
    %v2945 = vunpack.c.0.s8 %v2944
    %v2946 = vlaneseq
    %v2947 = vshrl.u32 %v2946, 7
    %v2948 = vsub.s32 %v2945, %v2947
    %v2949 = vrot.slane %v2927, %v2948
    %v2951 = vunpack.c.l.s4 1966171168
    %v2952 = vunpack.c.0.s8 %v2951
    %v2953 = vlaneseq
    %v2954 = vshrl.u32 %v2953, 7
    %v2955 = vsub.s32 %v2952, %v2954
    %v2956 = vrot.slane %v2928, %v2955
    %v2957 = vcombine.high %v2935, %v2935
    %v2958 = vcombine.high %v2942, %v2942
    %v2959 = vcombine.high %v2949, %v2949
    %v2960 = vcombine.high %v2956, %v2956
    %v2961 = vcombine.high %v2260, %v2260
    %v2963 = vunpack.c.l.s4 1966171168
    %v2964 = vunpack.c.0.s8 %v2963
    %v2965 = vlaneseq
    %v2966 = vshrl.u32 %v2965, 7
    %v2967 = vsub.s32 %v2964, %v2966
    %v2968 = vrot.slane %v2260, %v2967
    %v2970 = vunpack.c.l.s4 1966171168
    %v2971 = vunpack.c.0.s8 %v2970
    %v2972 = vlaneseq
    %v2973 = vshrl.u32 %v2972, 7
    %v2974 = vsub.s32 %v2971, %v2973
    %v2975 = vrot.slane %v2961, %v2974
    %v2976 = vcombine.high %v2968, %v2968
    %v2977 = vcombine.high %v2975, %v2975
    %v2979 = vunpack.c.l.s4 1966171168
    %v2980 = vunpack.c.0.s8 %v2979
    %v2981 = vlaneseq
    %v2982 = vshrl.u32 %v2981, 7
    %v2983 = vsub.s32 %v2980, %v2982
    %v2984 = vrot.slane %v2968, %v2983
    %v2986 = vunpack.c.l.s4 1966171168
    %v2987 = vunpack.c.0.s8 %v2986
    %v2988 = vlaneseq
    %v2989 = vshrl.u32 %v2988, 7
    %v2990 = vsub.s32 %v2987, %v2989
    %v2991 = vrot.slane %v2975, %v2990
    %v2993 = vunpack.c.l.s4 1966171168
    %v2994 = vunpack.c.0.s8 %v2993
    %v2995 = vlaneseq
    %v2996 = vshrl.u32 %v2995, 7
    %v2997 = vsub.s32 %v2994, %v2996
    %v2998 = vrot.slane %v2976, %v2997
    %v3000 = vunpack.c.l.s4 1966171168
    %v3001 = vunpack.c.0.s8 %v3000
    %v3002 = vlaneseq
    %v3003 = vshrl.u32 %v3002, 7
    %v3004 = vsub.s32 %v3001, %v3003
    %v3005 = vrot.slane %v2977, %v3004
    %v3006 = vcombine.high %v2984, %v2984
    %v3007 = vcombine.high %v2991, %v2991
    %v3008 = vcombine.high %v2998, %v2998
    %v3009 = vcombine.high %v3005, %v3005
    %v3010 = vcombine.high %v2263, %v2263
    %v3012 = vunpack.c.l.s4 1966171168
    %v3013 = vunpack.c.0.s8 %v3012
    %v3014 = vlaneseq
    %v3015 = vshrl.u32 %v3014, 7
    %v3016 = vsub.s32 %v3013, %v3015
    %v3017 = vrot.slane %v2263, %v3016
    %v3019 = vunpack.c.l.s4 1966171168
    %v3020 = vunpack.c.0.s8 %v3019
    %v3021 = vlaneseq
    %v3022 = vshrl.u32 %v3021, 7
    %v3023 = vsub.s32 %v3020, %v3022
    %v3024 = vrot.slane %v3010, %v3023
    %v3025 = vcombine.high %v3017, %v3017
    %v3026 = vcombine.high %v3024, %v3024
    %v3028 = vunpack.c.l.s4 1966171168
    %v3029 = vunpack.c.0.s8 %v3028
    %v3030 = vlaneseq
    %v3031 = vshrl.u32 %v3030, 7
    %v3032 = vsub.s32 %v3029, %v3031
    %v3033 = vrot.slane %v3017, %v3032
    %v3035 = vunpack.c.l.s4 1966171168
    %v3036 = vunpack.c.0.s8 %v3035
    %v3037 = vlaneseq
    %v3038 = vshrl.u32 %v3037, 7
    %v3039 = vsub.s32 %v3036, %v3038
    %v3040 = vrot.slane %v3024, %v3039
    %v3042 = vunpack.c.l.s4 1966171168
    %v3043 = vunpack.c.0.s8 %v3042
    %v3044 = vlaneseq
    %v3045 = vshrl.u32 %v3044, 7
    %v3046 = vsub.s32 %v3043, %v3045
    %v3047 = vrot.slane %v3025, %v3046
    %v3049 = vunpack.c.l.s4 1966171168
    %v3050 = vunpack.c.0.s8 %v3049
    %v3051 = vlaneseq
    %v3052 = vshrl.u32 %v3051, 7
    %v3053 = vsub.s32 %v3050, %v3052
    %v3054 = vrot.slane %v3026, %v3053
    %v3055 = vcombine.high %v3033, %v3033
    %v3056 = vcombine.high %v3040, %v3040
    %v3057 = vcombine.high %v3047, %v3047
    %v3058 = vcombine.high %v3054, %v3054
    %v3059 = vlaneseq
    %v3060 = vshrl.u32 %v3059, 7
    %v3061 = vsub.s32 0, %v3060
    %v3062 = vrot.slane %v2690, %v3061
    %v3063 = vlaneseq
    %v3064 = vshrl.u32 %v3063, 7
    %v3065 = vsub.s32 0, %v3064
    %v3066 = vrot.slane %v2704, %v3065
    %v3067 = vlaneseq
    %v3068 = vshrl.u32 %v3067, 7
    %v3069 = vsub.s32 0, %v3068
    %v3070 = vrot.slane %v2712, %v3069
    %v3071 = vlaneseq
    %v3072 = vshrl.u32 %v3071, 7
    %v3073 = vsub.s32 0, %v3072
    %v3074 = vrot.slane %v2714, %v3073
    %v3075 = vlaneseq
    %v3076 = vshrl.u32 %v3075, 7
    %v3077 = vsub.s32 0, %v3076
    %v3078 = vrot.slane %v2697, %v3077
    %v3079 = vlaneseq
    %v3080 = vshrl.u32 %v3079, 7
    %v3081 = vsub.s32 0, %v3080
    %v3082 = vrot.slane %v2711, %v3081
    %v3083 = vlaneseq
    %v3084 = vshrl.u32 %v3083, 7
    %v3085 = vsub.s32 0, %v3084
    %v3086 = vrot.slane %v2713, %v3085
    %v3087 = vlaneseq
    %v3088 = vshrl.u32 %v3087, 7
    %v3089 = vsub.s32 0, %v3088
    %v3090 = vrot.slane %v2715, %v3089
    %v3091 = vlaneseq
    %v3092 = vshrl.u32 %v3091, 7
    %v3093 = vsub.s32 0, %v3092
    %v3094 = vrot.slane %v2739, %v3093
    %v3095 = vlaneseq
    %v3096 = vshrl.u32 %v3095, 7
    %v3097 = vsub.s32 0, %v3096
    %v3098 = vrot.slane %v2753, %v3097
    %v3099 = vlaneseq
    %v3100 = vshrl.u32 %v3099, 7
    %v3101 = vsub.s32 0, %v3100
    %v3102 = vrot.slane %v2761, %v3101
    %v3103 = vlaneseq
    %v3104 = vshrl.u32 %v3103, 7
    %v3105 = vsub.s32 0, %v3104
    %v3106 = vrot.slane %v2763, %v3105
    %v3107 = vlaneseq
    %v3108 = vshrl.u32 %v3107, 7
    %v3109 = vsub.s32 0, %v3108
    %v3110 = vrot.slane %v2746, %v3109
    %v3111 = vlaneseq
    %v3112 = vshrl.u32 %v3111, 7
    %v3113 = vsub.s32 0, %v3112
    %v3114 = vrot.slane %v2760, %v3113
    %v3115 = vlaneseq
    %v3116 = vshrl.u32 %v3115, 7
    %v3117 = vsub.s32 0, %v3116
    %v3118 = vrot.slane %v2762, %v3117
    %v3119 = vlaneseq
    %v3120 = vshrl.u32 %v3119, 7
    %v3121 = vsub.s32 0, %v3120
    %v3122 = vrot.slane %v2764, %v3121
    %v3123 = vlaneseq
    %v3124 = vshrl.u32 %v3123, 7
    %v3125 = vsub.s32 0, %v3124
    %v3126 = vrot.slane %v2788, %v3125
    %v3127 = vlaneseq
    %v3128 = vshrl.u32 %v3127, 7
    %v3129 = vsub.s32 0, %v3128
    %v3130 = vrot.slane %v2802, %v3129
    %v3131 = vlaneseq
    %v3132 = vshrl.u32 %v3131, 7
    %v3133 = vsub.s32 0, %v3132
    %v3134 = vrot.slane %v2810, %v3133
    %v3135 = vlaneseq
    %v3136 = vshrl.u32 %v3135, 7
    %v3137 = vsub.s32 0, %v3136
    %v3138 = vrot.slane %v2812, %v3137
    %v3139 = vlaneseq
    %v3140 = vshrl.u32 %v3139, 7
    %v3141 = vsub.s32 0, %v3140
    %v3142 = vrot.slane %v2795, %v3141
    %v3143 = vlaneseq
    %v3144 = vshrl.u32 %v3143, 7
    %v3145 = vsub.s32 0, %v3144
    %v3146 = vrot.slane %v2809, %v3145
    %v3147 = vlaneseq
    %v3148 = vshrl.u32 %v3147, 7
    %v3149 = vsub.s32 0, %v3148
    %v3150 = vrot.slane %v2811, %v3149
    %v3151 = vlaneseq
    %v3152 = vshrl.u32 %v3151, 7
    %v3153 = vsub.s32 0, %v3152
    %v3154 = vrot.slane %v2813, %v3153
    %v3155 = vlaneseq
    %v3156 = vshrl.u32 %v3155, 7
    %v3157 = vsub.s32 0, %v3156
    %v3158 = vrot.slane %v2837, %v3157
    %v3159 = vlaneseq
    %v3160 = vshrl.u32 %v3159, 7
    %v3161 = vsub.s32 0, %v3160
    %v3162 = vrot.slane %v2851, %v3161
    %v3163 = vlaneseq
    %v3164 = vshrl.u32 %v3163, 7
    %v3165 = vsub.s32 0, %v3164
    %v3166 = vrot.slane %v2859, %v3165
    %v3167 = vlaneseq
    %v3168 = vshrl.u32 %v3167, 7
    %v3169 = vsub.s32 0, %v3168
    %v3170 = vrot.slane %v2861, %v3169
    %v3171 = vlaneseq
    %v3172 = vshrl.u32 %v3171, 7
    %v3173 = vsub.s32 0, %v3172
    %v3174 = vrot.slane %v2844, %v3173
    %v3175 = vlaneseq
    %v3176 = vshrl.u32 %v3175, 7
    %v3177 = vsub.s32 0, %v3176
    %v3178 = vrot.slane %v2858, %v3177
    %v3179 = vlaneseq
    %v3180 = vshrl.u32 %v3179, 7
    %v3181 = vsub.s32 0, %v3180
    %v3182 = vrot.slane %v2860, %v3181
    %v3183 = vlaneseq
    %v3184 = vshrl.u32 %v3183, 7
    %v3185 = vsub.s32 0, %v3184
    %v3186 = vrot.slane %v2862, %v3185
    %v3187 = vlaneseq
    %v3188 = vshrl.u32 %v3187, 7
    %v3189 = vsub.s32 0, %v3188
    %v3190 = vrot.slane %v2886, %v3189
    %v3191 = vlaneseq
    %v3192 = vshrl.u32 %v3191, 7
    %v3193 = vsub.s32 0, %v3192
    %v3194 = vrot.slane %v2900, %v3193
    %v3195 = vlaneseq
    %v3196 = vshrl.u32 %v3195, 7
    %v3197 = vsub.s32 0, %v3196
    %v3198 = vrot.slane %v2908, %v3197
    %v3199 = vlaneseq
    %v3200 = vshrl.u32 %v3199, 7
    %v3201 = vsub.s32 0, %v3200
    %v3202 = vrot.slane %v2910, %v3201
    %v3203 = vlaneseq
    %v3204 = vshrl.u32 %v3203, 7
    %v3205 = vsub.s32 0, %v3204
    %v3206 = vrot.slane %v2893, %v3205
    %v3207 = vlaneseq
    %v3208 = vshrl.u32 %v3207, 7
    %v3209 = vsub.s32 0, %v3208
    %v3210 = vrot.slane %v2907, %v3209
    %v3211 = vlaneseq
    %v3212 = vshrl.u32 %v3211, 7
    %v3213 = vsub.s32 0, %v3212
    %v3214 = vrot.slane %v2909, %v3213
    %v3215 = vlaneseq
    %v3216 = vshrl.u32 %v3215, 7
    %v3217 = vsub.s32 0, %v3216
    %v3218 = vrot.slane %v2911, %v3217
    %v3219 = vlaneseq
    %v3220 = vshrl.u32 %v3219, 7
    %v3221 = vsub.s32 0, %v3220
    %v3222 = vrot.slane %v2935, %v3221
    %v3223 = vlaneseq
    %v3224 = vshrl.u32 %v3223, 7
    %v3225 = vsub.s32 0, %v3224
    %v3226 = vrot.slane %v2949, %v3225
    %v3227 = vlaneseq
    %v3228 = vshrl.u32 %v3227, 7
    %v3229 = vsub.s32 0, %v3228
    %v3230 = vrot.slane %v2957, %v3229
    %v3231 = vlaneseq
    %v3232 = vshrl.u32 %v3231, 7
    %v3233 = vsub.s32 0, %v3232
    %v3234 = vrot.slane %v2959, %v3233
    %v3235 = vlaneseq
    %v3236 = vshrl.u32 %v3235, 7
    %v3237 = vsub.s32 0, %v3236
    %v3238 = vrot.slane %v2942, %v3237
    %v3239 = vlaneseq
    %v3240 = vshrl.u32 %v3239, 7
    %v3241 = vsub.s32 0, %v3240
    %v3242 = vrot.slane %v2956, %v3241
    %v3243 = vlaneseq
    %v3244 = vshrl.u32 %v3243, 7
    %v3245 = vsub.s32 0, %v3244
    %v3246 = vrot.slane %v2958, %v3245
    %v3247 = vlaneseq
    %v3248 = vshrl.u32 %v3247, 7
    %v3249 = vsub.s32 0, %v3248
    %v3250 = vrot.slane %v2960, %v3249
    %v3251 = vlaneseq
    %v3252 = vshrl.u32 %v3251, 7
    %v3253 = vsub.s32 0, %v3252
    %v3254 = vrot.slane %v2984, %v3253
    %v3255 = vlaneseq
    %v3256 = vshrl.u32 %v3255, 7
    %v3257 = vsub.s32 0, %v3256
    %v3258 = vrot.slane %v2998, %v3257
    %v3259 = vlaneseq
    %v3260 = vshrl.u32 %v3259, 7
    %v3261 = vsub.s32 0, %v3260
    %v3262 = vrot.slane %v3006, %v3261
    %v3263 = vlaneseq
    %v3264 = vshrl.u32 %v3263, 7
    %v3265 = vsub.s32 0, %v3264
    %v3266 = vrot.slane %v3008, %v3265
    %v3267 = vlaneseq
    %v3268 = vshrl.u32 %v3267, 7
    %v3269 = vsub.s32 0, %v3268
    %v3270 = vrot.slane %v2991, %v3269
    %v3271 = vlaneseq
    %v3272 = vshrl.u32 %v3271, 7
    %v3273 = vsub.s32 0, %v3272
    %v3274 = vrot.slane %v3005, %v3273
    %v3275 = vlaneseq
    %v3276 = vshrl.u32 %v3275, 7
    %v3277 = vsub.s32 0, %v3276
    %v3278 = vrot.slane %v3007, %v3277
    %v3279 = vlaneseq
    %v3280 = vshrl.u32 %v3279, 7
    %v3281 = vsub.s32 0, %v3280
    %v3282 = vrot.slane %v3009, %v3281
    %v3283 = vlaneseq
    %v3284 = vshrl.u32 %v3283, 7
    %v3285 = vsub.s32 0, %v3284
    %v3286 = vrot.slane %v3033, %v3285
    %v3287 = vlaneseq
    %v3288 = vshrl.u32 %v3287, 7
    %v3289 = vsub.s32 0, %v3288
    %v3290 = vrot.slane %v3047, %v3289
    %v3291 = vlaneseq
    %v3292 = vshrl.u32 %v3291, 7
    %v3293 = vsub.s32 0, %v3292
    %v3294 = vrot.slane %v3055, %v3293
    %v3295 = vlaneseq
    %v3296 = vshrl.u32 %v3295, 7
    %v3297 = vsub.s32 0, %v3296
    %v3298 = vrot.slane %v3057, %v3297
    %v3299 = vlaneseq
    %v3300 = vshrl.u32 %v3299, 7
    %v3301 = vsub.s32 0, %v3300
    %v3302 = vrot.slane %v3040, %v3301
    %v3303 = vlaneseq
    %v3304 = vshrl.u32 %v3303, 7
    %v3305 = vsub.s32 0, %v3304
    %v3306 = vrot.slane %v3054, %v3305
    %v3307 = vlaneseq
    %v3308 = vshrl.u32 %v3307, 7
    %v3309 = vsub.s32 0, %v3308
    %v3310 = vrot.slane %v3056, %v3309
    %v3311 = vlaneseq
    %v3312 = vshrl.u32 %v3311, 7
    %v3313 = vsub.s32 0, %v3312
    %v3314 = vrot.slane %v3058, %v3313
    %v3379 = vadd.f32 %v3062, %v2629
    %v3380 = vadd.f32 %v3062, %v2632
    %v3381 = vadd.f32 %v3066, %v2629
    %v3382 = vadd.f32 %v3066, %v2632
    %v3383 = vadd.f32 %v3070, %v2629
    %v3384 = vadd.f32 %v3070, %v2632
    %v3385 = vadd.f32 %v3074, %v2629
    %v3386 = vadd.f32 %v3074, %v2632
    %v3387 = vadd.f32 %v3078, %v2629
    %v3388 = vadd.f32 %v3078, %v2632
    %v3389 = vadd.f32 %v3082, %v2629
    %v3390 = vadd.f32 %v3082, %v2632
    %v3391 = vadd.f32 %v3086, %v2629
    %v3392 = vadd.f32 %v3086, %v2632
    %v3393 = vadd.f32 %v3090, %v2629
    %v3394 = vadd.f32 %v3090, %v2632
    %v3395 = vadd.f32 %v3094, %v2629
    %v3396 = vadd.f32 %v3094, %v2632
    %v3397 = vadd.f32 %v3098, %v2629
    %v3398 = vadd.f32 %v3098, %v2632
    %v3399 = vadd.f32 %v3102, %v2629
    %v3400 = vadd.f32 %v3102, %v2632
    %v3401 = vadd.f32 %v3106, %v2629
    %v3402 = vadd.f32 %v3106, %v2632
    %v3403 = vadd.f32 %v3110, %v2629
    %v3404 = vadd.f32 %v3110, %v2632
    %v3405 = vadd.f32 %v3114, %v2629
    %v3406 = vadd.f32 %v3114, %v2632
    %v3407 = vadd.f32 %v3118, %v2629
    %v3408 = vadd.f32 %v3118, %v2632
    %v3409 = vadd.f32 %v3122, %v2629
    %v3410 = vadd.f32 %v3122, %v2632
    %v3411 = vadd.f32 %v3126, %v2637
    %v3412 = vadd.f32 %v3126, %v2640
    %v3413 = vadd.f32 %v3130, %v2637
    %v3414 = vadd.f32 %v3130, %v2640
    %v3415 = vadd.f32 %v3134, %v2637
    %v3416 = vadd.f32 %v3134, %v2640
    %v3417 = vadd.f32 %v3138, %v2637
    %v3418 = vadd.f32 %v3138, %v2640
    %v3419 = vadd.f32 %v3142, %v2637
    %v3420 = vadd.f32 %v3142, %v2640
    %v3421 = vadd.f32 %v3146, %v2637
    %v3422 = vadd.f32 %v3146, %v2640
    %v3423 = vadd.f32 %v3150, %v2637
    %v3424 = vadd.f32 %v3150, %v2640
    %v3425 = vadd.f32 %v3154, %v2637
    %v3426 = vadd.f32 %v3154, %v2640
    %v3427 = vadd.f32 %v3158, %v2637
    %v3428 = vadd.f32 %v3158, %v2640
    %v3429 = vadd.f32 %v3162, %v2637
    %v3430 = vadd.f32 %v3162, %v2640
    %v3431 = vadd.f32 %v3166, %v2637
    %v3432 = vadd.f32 %v3166, %v2640
    %v3433 = vadd.f32 %v3170, %v2637
    %v3434 = vadd.f32 %v3170, %v2640
    %v3435 = vadd.f32 %v3174, %v2637
    %v3436 = vadd.f32 %v3174, %v2640
    %v3437 = vadd.f32 %v3178, %v2637
    %v3438 = vadd.f32 %v3178, %v2640
    %v3439 = vadd.f32 %v3182, %v2637
    %v3440 = vadd.f32 %v3182, %v2640
    %v3441 = vadd.f32 %v3186, %v2637
    %v3442 = vadd.f32 %v3186, %v2640
    %v3443 = vadd.f32 %v3190, %v2645
    %v3444 = vadd.f32 %v3190, %v2648
    %v3445 = vadd.f32 %v3194, %v2645
    %v3446 = vadd.f32 %v3194, %v2648
    %v3447 = vadd.f32 %v3198, %v2645
    %v3448 = vadd.f32 %v3198, %v2648
    %v3449 = vadd.f32 %v3202, %v2645
    %v3450 = vadd.f32 %v3202, %v2648
    %v3451 = vadd.f32 %v3206, %v2645
    %v3452 = vadd.f32 %v3206, %v2648
    %v3453 = vadd.f32 %v3210, %v2645
    %v3454 = vadd.f32 %v3210, %v2648
    %v3455 = vadd.f32 %v3214, %v2645
    %v3456 = vadd.f32 %v3214, %v2648
    %v3457 = vadd.f32 %v3218, %v2645
    %v3458 = vadd.f32 %v3218, %v2648
    %v3459 = vadd.f32 %v3222, %v2645
    %v3460 = vadd.f32 %v3222, %v2648
    %v3461 = vadd.f32 %v3226, %v2645
    %v3462 = vadd.f32 %v3226, %v2648
    %v3463 = vadd.f32 %v3230, %v2645
    %v3464 = vadd.f32 %v3230, %v2648
    %v3465 = vadd.f32 %v3234, %v2645
    %v3466 = vadd.f32 %v3234, %v2648
    %v3467 = vadd.f32 %v3238, %v2645
    %v3468 = vadd.f32 %v3238, %v2648
    %v3469 = vadd.f32 %v3242, %v2645
    %v3470 = vadd.f32 %v3242, %v2648
    %v3471 = vadd.f32 %v3246, %v2645
    %v3472 = vadd.f32 %v3246, %v2648
    %v3473 = vadd.f32 %v3250, %v2645
    %v3474 = vadd.f32 %v3250, %v2648
    %v3475 = vadd.f32 %v3254, %v2653
    %v3476 = vadd.f32 %v3254, %v2656
    %v3477 = vadd.f32 %v3258, %v2653
    %v3478 = vadd.f32 %v3258, %v2656
    %v3479 = vadd.f32 %v3262, %v2653
    %v3480 = vadd.f32 %v3262, %v2656
    %v3481 = vadd.f32 %v3266, %v2653
    %v3482 = vadd.f32 %v3266, %v2656
    %v3483 = vadd.f32 %v3270, %v2653
    %v3484 = vadd.f32 %v3270, %v2656
    %v3485 = vadd.f32 %v3274, %v2653
    %v3486 = vadd.f32 %v3274, %v2656
    %v3487 = vadd.f32 %v3278, %v2653
    %v3488 = vadd.f32 %v3278, %v2656
    %v3489 = vadd.f32 %v3282, %v2653
    %v3490 = vadd.f32 %v3282, %v2656
    %v3491 = vadd.f32 %v3286, %v2653
    %v3492 = vadd.f32 %v3286, %v2656
    %v3493 = vadd.f32 %v3290, %v2653
    %v3494 = vadd.f32 %v3290, %v2656
    %v3495 = vadd.f32 %v3294, %v2653
    %v3496 = vadd.f32 %v3294, %v2656
    %v3497 = vadd.f32 %v3298, %v2653
    %v3498 = vadd.f32 %v3298, %v2656
    %v3499 = vadd.f32 %v3302, %v2653
    %v3500 = vadd.f32 %v3302, %v2656
    %v3501 = vadd.f32 %v3306, %v2653
    %v3502 = vadd.f32 %v3306, %v2656
    %v3503 = vadd.f32 %v3310, %v2653
    %v3504 = vadd.f32 %v3310, %v2656
    %v3505 = vadd.f32 %v3314, %v2653
    %v3506 = vadd.f32 %v3314, %v2656
    %vm3507 = vcmp.gt.f32.partialorder %v3379, 0.0
    %vm3508 = vcmp.gt.f32.partialorder %v3380, 0.0
    %vm3509 = vcmp.gt.f32.partialorder %v3381, 0.0
    %vm3510 = vcmp.gt.f32.partialorder %v3382, 0.0
    %vm3511 = vcmp.gt.f32.partialorder %v3383, 0.0
    %vm3512 = vcmp.gt.f32.partialorder %v3384, 0.0
    %vm3513 = vcmp.gt.f32.partialorder %v3385, 0.0
    %vm3514 = vcmp.gt.f32.partialorder %v3386, 0.0
    %vm3515 = vcmp.gt.f32.partialorder %v3387, 0.0
    %vm3516 = vcmp.gt.f32.partialorder %v3388, 0.0
    %vm3517 = vcmp.gt.f32.partialorder %v3389, 0.0
    %vm3518 = vcmp.gt.f32.partialorder %v3390, 0.0
    %vm3519 = vcmp.gt.f32.partialorder %v3391, 0.0
    %vm3520 = vcmp.gt.f32.partialorder %v3392, 0.0
    %vm3521 = vcmp.gt.f32.partialorder %v3393, 0.0
    %vm3522 = vcmp.gt.f32.partialorder %v3394, 0.0
    %vm3523 = vcmp.gt.f32.partialorder %v3395, 0.0
    %vm3524 = vcmp.gt.f32.partialorder %v3396, 0.0
    %vm3525 = vcmp.gt.f32.partialorder %v3397, 0.0
    %vm3526 = vcmp.gt.f32.partialorder %v3398, 0.0
    %vm3527 = vcmp.gt.f32.partialorder %v3399, 0.0
    %vm3528 = vcmp.gt.f32.partialorder %v3400, 0.0
    %vm3529 = vcmp.gt.f32.partialorder %v3401, 0.0
    %vm3530 = vcmp.gt.f32.partialorder %v3402, 0.0
    %vm3531 = vcmp.gt.f32.partialorder %v3403, 0.0
    %vm3532 = vcmp.gt.f32.partialorder %v3404, 0.0
    %vm3533 = vcmp.gt.f32.partialorder %v3405, 0.0
    %vm3534 = vcmp.gt.f32.partialorder %v3406, 0.0
    %vm3535 = vcmp.gt.f32.partialorder %v3407, 0.0
    %vm3536 = vcmp.gt.f32.partialorder %v3408, 0.0
    %vm3537 = vcmp.gt.f32.partialorder %v3409, 0.0
    %vm3538 = vcmp.gt.f32.partialorder %v3410, 0.0
    %vm3539 = vcmp.gt.f32.partialorder %v3411, 0.0
    %vm3540 = vcmp.gt.f32.partialorder %v3412, 0.0
    %vm3541 = vcmp.gt.f32.partialorder %v3413, 0.0
    %vm3542 = vcmp.gt.f32.partialorder %v3414, 0.0
    %vm3543 = vcmp.gt.f32.partialorder %v3415, 0.0
    %vm3544 = vcmp.gt.f32.partialorder %v3416, 0.0
    %vm3545 = vcmp.gt.f32.partialorder %v3417, 0.0
    %vm3546 = vcmp.gt.f32.partialorder %v3418, 0.0
    %vm3547 = vcmp.gt.f32.partialorder %v3419, 0.0
    %vm3548 = vcmp.gt.f32.partialorder %v3420, 0.0
    %vm3549 = vcmp.gt.f32.partialorder %v3421, 0.0
    %vm3550 = vcmp.gt.f32.partialorder %v3422, 0.0
    %vm3551 = vcmp.gt.f32.partialorder %v3423, 0.0
    %vm3552 = vcmp.gt.f32.partialorder %v3424, 0.0
    %vm3553 = vcmp.gt.f32.partialorder %v3425, 0.0
    %vm3554 = vcmp.gt.f32.partialorder %v3426, 0.0
    %vm3555 = vcmp.gt.f32.partialorder %v3427, 0.0
    %vm3556 = vcmp.gt.f32.partialorder %v3428, 0.0
    %vm3557 = vcmp.gt.f32.partialorder %v3429, 0.0
    %vm3558 = vcmp.gt.f32.partialorder %v3430, 0.0
    %vm3559 = vcmp.gt.f32.partialorder %v3431, 0.0
    %vm3560 = vcmp.gt.f32.partialorder %v3432, 0.0
    %vm3561 = vcmp.gt.f32.partialorder %v3433, 0.0
    %vm3562 = vcmp.gt.f32.partialorder %v3434, 0.0
    %vm3563 = vcmp.gt.f32.partialorder %v3435, 0.0
    %vm3564 = vcmp.gt.f32.partialorder %v3436, 0.0
    %vm3565 = vcmp.gt.f32.partialorder %v3437, 0.0
    %vm3566 = vcmp.gt.f32.partialorder %v3438, 0.0
    %vm3567 = vcmp.gt.f32.partialorder %v3439, 0.0
    %vm3568 = vcmp.gt.f32.partialorder %v3440, 0.0
    %vm3569 = vcmp.gt.f32.partialorder %v3441, 0.0
    %vm3570 = vcmp.gt.f32.partialorder %v3442, 0.0
    %vm3571 = vcmp.gt.f32.partialorder %v3443, 0.0
    %vm3572 = vcmp.gt.f32.partialorder %v3444, 0.0
    %vm3573 = vcmp.gt.f32.partialorder %v3445, 0.0
    %vm3574 = vcmp.gt.f32.partialorder %v3446, 0.0
    %vm3575 = vcmp.gt.f32.partialorder %v3447, 0.0
    %vm3576 = vcmp.gt.f32.partialorder %v3448, 0.0
    %vm3577 = vcmp.gt.f32.partialorder %v3449, 0.0
    %vm3578 = vcmp.gt.f32.partialorder %v3450, 0.0
    %vm3579 = vcmp.gt.f32.partialorder %v3451, 0.0
    %vm3580 = vcmp.gt.f32.partialorder %v3452, 0.0
    %vm3581 = vcmp.gt.f32.partialorder %v3453, 0.0
    %vm3582 = vcmp.gt.f32.partialorder %v3454, 0.0
    %vm3583 = vcmp.gt.f32.partialorder %v3455, 0.0
    %vm3584 = vcmp.gt.f32.partialorder %v3456, 0.0
    %vm3585 = vcmp.gt.f32.partialorder %v3457, 0.0
    %vm3586 = vcmp.gt.f32.partialorder %v3458, 0.0
    %vm3587 = vcmp.gt.f32.partialorder %v3459, 0.0
    %vm3588 = vcmp.gt.f32.partialorder %v3460, 0.0
    %vm3589 = vcmp.gt.f32.partialorder %v3461, 0.0
    %vm3590 = vcmp.gt.f32.partialorder %v3462, 0.0
    %vm3591 = vcmp.gt.f32.partialorder %v3463, 0.0
    %vm3592 = vcmp.gt.f32.partialorder %v3464, 0.0
    %vm3593 = vcmp.gt.f32.partialorder %v3465, 0.0
    %vm3594 = vcmp.gt.f32.partialorder %v3466, 0.0
    %vm3595 = vcmp.gt.f32.partialorder %v3467, 0.0
    %vm3596 = vcmp.gt.f32.partialorder %v3468, 0.0
    %vm3597 = vcmp.gt.f32.partialorder %v3469, 0.0
    %vm3598 = vcmp.gt.f32.partialorder %v3470, 0.0
    %vm3599 = vcmp.gt.f32.partialorder %v3471, 0.0
    %vm3600 = vcmp.gt.f32.partialorder %v3472, 0.0
    %vm3601 = vcmp.gt.f32.partialorder %v3473, 0.0
    %vm3602 = vcmp.gt.f32.partialorder %v3474, 0.0
    %vm3603 = vcmp.gt.f32.partialorder %v3475, 0.0
    %vm3604 = vcmp.gt.f32.partialorder %v3476, 0.0
    %vm3605 = vcmp.gt.f32.partialorder %v3477, 0.0
    %vm3606 = vcmp.gt.f32.partialorder %v3478, 0.0
    %vm3607 = vcmp.gt.f32.partialorder %v3479, 0.0
    %vm3608 = vcmp.gt.f32.partialorder %v3480, 0.0
    %vm3609 = vcmp.gt.f32.partialorder %v3481, 0.0
    %vm3610 = vcmp.gt.f32.partialorder %v3482, 0.0
    %vm3611 = vcmp.gt.f32.partialorder %v3483, 0.0
    %vm3612 = vcmp.gt.f32.partialorder %v3484, 0.0
    %vm3613 = vcmp.gt.f32.partialorder %v3485, 0.0
    %vm3614 = vcmp.gt.f32.partialorder %v3486, 0.0
    %vm3615 = vcmp.gt.f32.partialorder %v3487, 0.0
    %vm3616 = vcmp.gt.f32.partialorder %v3488, 0.0
    %vm3617 = vcmp.gt.f32.partialorder %v3489, 0.0
    %vm3618 = vcmp.gt.f32.partialorder %v3490, 0.0
    %vm3619 = vcmp.gt.f32.partialorder %v3491, 0.0
    %vm3620 = vcmp.gt.f32.partialorder %v3492, 0.0
    %vm3621 = vcmp.gt.f32.partialorder %v3493, 0.0
    %vm3622 = vcmp.gt.f32.partialorder %v3494, 0.0
    %vm3623 = vcmp.gt.f32.partialorder %v3495, 0.0
    %vm3624 = vcmp.gt.f32.partialorder %v3496, 0.0
    %vm3625 = vcmp.gt.f32.partialorder %v3497, 0.0
    %vm3626 = vcmp.gt.f32.partialorder %v3498, 0.0
    %vm3627 = vcmp.gt.f32.partialorder %v3499, 0.0
    %vm3628 = vcmp.gt.f32.partialorder %v3500, 0.0
    %vm3629 = vcmp.gt.f32.partialorder %v3501, 0.0
    %vm3630 = vcmp.gt.f32.partialorder %v3502, 0.0
    %vm3631 = vcmp.gt.f32.partialorder %v3503, 0.0
    %vm3632 = vcmp.gt.f32.partialorder %v3504, 0.0
    %vm3633 = vcmp.gt.f32.partialorder %v3505, 0.0
    %vm3634 = vcmp.gt.f32.partialorder %v3506, 0.0
    %v3635 = vmul.f32 %v3379, 0.33
    %v3636 = vmul.f32 %v3380, 0.33
    %v3637 = vmul.f32 %v3381, 0.33
    %v3638 = vmul.f32 %v3382, 0.33
    %v3639 = vmul.f32 %v3383, 0.33
    %v3640 = vmul.f32 %v3384, 0.33
    %v3641 = vmul.f32 %v3385, 0.33
    %v3642 = vmul.f32 %v3386, 0.33
    %v3643 = vmul.f32 %v3387, 0.33
    %v3644 = vmul.f32 %v3388, 0.33
    %v3645 = vmul.f32 %v3389, 0.33
    %v3646 = vmul.f32 %v3390, 0.33
    %v3647 = vmul.f32 %v3391, 0.33
    %v3648 = vmul.f32 %v3392, 0.33
    %v3649 = vmul.f32 %v3393, 0.33
    %v3650 = vmul.f32 %v3394, 0.33
    %v3651 = vmul.f32 %v3395, 0.33
    %v3652 = vmul.f32 %v3396, 0.33
    %v3653 = vmul.f32 %v3397, 0.33
    %v3654 = vmul.f32 %v3398, 0.33
    %v3655 = vmul.f32 %v3399, 0.33
    %v3656 = vmul.f32 %v3400, 0.33
    %v3657 = vmul.f32 %v3401, 0.33
    %v3658 = vmul.f32 %v3402, 0.33
    %v3659 = vmul.f32 %v3403, 0.33
    %v3660 = vmul.f32 %v3404, 0.33
    %v3661 = vmul.f32 %v3405, 0.33
    %v3662 = vmul.f32 %v3406, 0.33
    %v3663 = vmul.f32 %v3407, 0.33
    %v3664 = vmul.f32 %v3408, 0.33
    %v3665 = vmul.f32 %v3409, 0.33
    %v3666 = vmul.f32 %v3410, 0.33
    %v3667 = vmul.f32 %v3411, 0.33
    %v3668 = vmul.f32 %v3412, 0.33
    %v3669 = vmul.f32 %v3413, 0.33
    %v3670 = vmul.f32 %v3414, 0.33
    %v3671 = vmul.f32 %v3415, 0.33
    %v3672 = vmul.f32 %v3416, 0.33
    %v3673 = vmul.f32 %v3417, 0.33
    %v3674 = vmul.f32 %v3418, 0.33
    %v3675 = vmul.f32 %v3419, 0.33
    %v3676 = vmul.f32 %v3420, 0.33
    %v3677 = vmul.f32 %v3421, 0.33
    %v3678 = vmul.f32 %v3422, 0.33
    %v3679 = vmul.f32 %v3423, 0.33
    %v3680 = vmul.f32 %v3424, 0.33
    %v3681 = vmul.f32 %v3425, 0.33
    %v3682 = vmul.f32 %v3426, 0.33
    %v3683 = vmul.f32 %v3427, 0.33
    %v3684 = vmul.f32 %v3428, 0.33
    %v3685 = vmul.f32 %v3429, 0.33
    %v3686 = vmul.f32 %v3430, 0.33
    %v3687 = vmul.f32 %v3431, 0.33
    %v3688 = vmul.f32 %v3432, 0.33
    %v3689 = vmul.f32 %v3433, 0.33
    %v3690 = vmul.f32 %v3434, 0.33
    %v3691 = vmul.f32 %v3435, 0.33
    %v3692 = vmul.f32 %v3436, 0.33
    %v3693 = vmul.f32 %v3437, 0.33
    %v3694 = vmul.f32 %v3438, 0.33
    %v3695 = vmul.f32 %v3439, 0.33
    %v3696 = vmul.f32 %v3440, 0.33
    %v3697 = vmul.f32 %v3441, 0.33
    %v3698 = vmul.f32 %v3442, 0.33
    %v3699 = vmul.f32 %v3443, 0.33
    %v3700 = vmul.f32 %v3444, 0.33
    %v3701 = vmul.f32 %v3445, 0.33
    %v3702 = vmul.f32 %v3446, 0.33
    %v3703 = vmul.f32 %v3447, 0.33
    %v3704 = vmul.f32 %v3448, 0.33
    %v3705 = vmul.f32 %v3449, 0.33
    %v3706 = vmul.f32 %v3450, 0.33
    %v3707 = vmul.f32 %v3451, 0.33
    %v3708 = vmul.f32 %v3452, 0.33
    %v3709 = vmul.f32 %v3453, 0.33
    %v3710 = vmul.f32 %v3454, 0.33
    %v3711 = vmul.f32 %v3455, 0.33
    %v3712 = vmul.f32 %v3456, 0.33
    %v3713 = vmul.f32 %v3457, 0.33
    %v3714 = vmul.f32 %v3458, 0.33
    %v3715 = vmul.f32 %v3459, 0.33
    %v3716 = vmul.f32 %v3460, 0.33
    %v3717 = vmul.f32 %v3461, 0.33
    %v3718 = vmul.f32 %v3462, 0.33
    %v3719 = vmul.f32 %v3463, 0.33
    %v3720 = vmul.f32 %v3464, 0.33
    %v3721 = vmul.f32 %v3465, 0.33
    %v3722 = vmul.f32 %v3466, 0.33
    %v3723 = vmul.f32 %v3467, 0.33
    %v3724 = vmul.f32 %v3468, 0.33
    %v3725 = vmul.f32 %v3469, 0.33
    %v3726 = vmul.f32 %v3470, 0.33
    %v3727 = vmul.f32 %v3471, 0.33
    %v3728 = vmul.f32 %v3472, 0.33
    %v3729 = vmul.f32 %v3473, 0.33
    %v3730 = vmul.f32 %v3474, 0.33
    %v3731 = vmul.f32 %v3475, 0.33
    %v3732 = vmul.f32 %v3476, 0.33
    %v3733 = vmul.f32 %v3477, 0.33
    %v3734 = vmul.f32 %v3478, 0.33
    %v3735 = vmul.f32 %v3479, 0.33
    %v3736 = vmul.f32 %v3480, 0.33
    %v3737 = vmul.f32 %v3481, 0.33
    %v3738 = vmul.f32 %v3482, 0.33
    %v3739 = vmul.f32 %v3483, 0.33
    %v3740 = vmul.f32 %v3484, 0.33
    %v3741 = vmul.f32 %v3485, 0.33
    %v3742 = vmul.f32 %v3486, 0.33
    %v3743 = vmul.f32 %v3487, 0.33
    %v3744 = vmul.f32 %v3488, 0.33
    %v3745 = vmul.f32 %v3489, 0.33
    %v3746 = vmul.f32 %v3490, 0.33
    %v3747 = vmul.f32 %v3491, 0.33
    %v3748 = vmul.f32 %v3492, 0.33
    %v3749 = vmul.f32 %v3493, 0.33
    %v3750 = vmul.f32 %v3494, 0.33
    %v3751 = vmul.f32 %v3495, 0.33
    %v3752 = vmul.f32 %v3496, 0.33
    %v3753 = vmul.f32 %v3497, 0.33
    %v3754 = vmul.f32 %v3498, 0.33
    %v3755 = vmul.f32 %v3499, 0.33
    %v3756 = vmul.f32 %v3500, 0.33
    %v3757 = vmul.f32 %v3501, 0.33
    %v3758 = vmul.f32 %v3502, 0.33
    %v3759 = vmul.f32 %v3503, 0.33
    %v3760 = vmul.f32 %v3504, 0.33
    %v3761 = vmul.f32 %v3505, 0.33
    %v3762 = vmul.f32 %v3506, 0.33
    %v3763 = vsel %vm3507, %v3379, %v3635
    %v3764 = vsel %vm3508, %v3380, %v3636
    %v3765 = vsel %vm3509, %v3381, %v3637
    %v3766 = vsel %vm3510, %v3382, %v3638
    %v3767 = vsel %vm3511, %v3383, %v3639
    %v3768 = vsel %vm3512, %v3384, %v3640
    %v3769 = vsel %vm3513, %v3385, %v3641
    %v3770 = vsel %vm3514, %v3386, %v3642
    %v3771 = vsel %vm3515, %v3387, %v3643
    %v3772 = vsel %vm3516, %v3388, %v3644
    %v3773 = vsel %vm3517, %v3389, %v3645
    %v3774 = vsel %vm3518, %v3390, %v3646
    %v3775 = vsel %vm3519, %v3391, %v3647
    %v3776 = vsel %vm3520, %v3392, %v3648
    %v3777 = vsel %vm3521, %v3393, %v3649
    %v3778 = vsel %vm3522, %v3394, %v3650
    %v3779 = vsel %vm3523, %v3395, %v3651
    %v3780 = vsel %vm3524, %v3396, %v3652
    %v3781 = vsel %vm3525, %v3397, %v3653
    %v3782 = vsel %vm3526, %v3398, %v3654
    %v3783 = vsel %vm3527, %v3399, %v3655
    %v3784 = vsel %vm3528, %v3400, %v3656
    %v3785 = vsel %vm3529, %v3401, %v3657
    %v3786 = vsel %vm3530, %v3402, %v3658
    %v3787 = vsel %vm3531, %v3403, %v3659
    %v3788 = vsel %vm3532, %v3404, %v3660
    %v3789 = vsel %vm3533, %v3405, %v3661
    %v3790 = vsel %vm3534, %v3406, %v3662
    %v3791 = vsel %vm3535, %v3407, %v3663
    %v3792 = vsel %vm3536, %v3408, %v3664
    %v3793 = vsel %vm3537, %v3409, %v3665
    %v3794 = vsel %vm3538, %v3410, %v3666
    %v3795 = vsel %vm3539, %v3411, %v3667
    %v3796 = vsel %vm3540, %v3412, %v3668
    %v3797 = vsel %vm3541, %v3413, %v3669
    %v3798 = vsel %vm3542, %v3414, %v3670
    %v3799 = vsel %vm3543, %v3415, %v3671
    %v3800 = vsel %vm3544, %v3416, %v3672
    %v3801 = vsel %vm3545, %v3417, %v3673
    %v3802 = vsel %vm3546, %v3418, %v3674
    %v3803 = vsel %vm3547, %v3419, %v3675
    %v3804 = vsel %vm3548, %v3420, %v3676
    %v3805 = vsel %vm3549, %v3421, %v3677
    %v3806 = vsel %vm3550, %v3422, %v3678
    %v3807 = vsel %vm3551, %v3423, %v3679
    %v3808 = vsel %vm3552, %v3424, %v3680
    %v3809 = vsel %vm3553, %v3425, %v3681
    %v3810 = vsel %vm3554, %v3426, %v3682
    %v3811 = vsel %vm3555, %v3427, %v3683
    %v3812 = vsel %vm3556, %v3428, %v3684
    %v3813 = vsel %vm3557, %v3429, %v3685
    %v3814 = vsel %vm3558, %v3430, %v3686
    %v3815 = vsel %vm3559, %v3431, %v3687
    %v3816 = vsel %vm3560, %v3432, %v3688
    %v3817 = vsel %vm3561, %v3433, %v3689
    %v3818 = vsel %vm3562, %v3434, %v3690
    %v3819 = vsel %vm3563, %v3435, %v3691
    %v3820 = vsel %vm3564, %v3436, %v3692
    %v3821 = vsel %vm3565, %v3437, %v3693
    %v3822 = vsel %vm3566, %v3438, %v3694
    %v3823 = vsel %vm3567, %v3439, %v3695
    %v3824 = vsel %vm3568, %v3440, %v3696
    %v3825 = vsel %vm3569, %v3441, %v3697
    %v3826 = vsel %vm3570, %v3442, %v3698
    %v3827 = vsel %vm3571, %v3443, %v3699
    %v3828 = vsel %vm3572, %v3444, %v3700
    %v3829 = vsel %vm3573, %v3445, %v3701
    %v3830 = vsel %vm3574, %v3446, %v3702
    %v3831 = vsel %vm3575, %v3447, %v3703
    %v3832 = vsel %vm3576, %v3448, %v3704
    %v3833 = vsel %vm3577, %v3449, %v3705
    %v3834 = vsel %vm3578, %v3450, %v3706
    %v3835 = vsel %vm3579, %v3451, %v3707
    %v3836 = vsel %vm3580, %v3452, %v3708
    %v3837 = vsel %vm3581, %v3453, %v3709
    %v3838 = vsel %vm3582, %v3454, %v3710
    %v3839 = vsel %vm3583, %v3455, %v3711
    %v3840 = vsel %vm3584, %v3456, %v3712
    %v3841 = vsel %vm3585, %v3457, %v3713
    %v3842 = vsel %vm3586, %v3458, %v3714
    %v3843 = vsel %vm3587, %v3459, %v3715
    %v3844 = vsel %vm3588, %v3460, %v3716
    %v3845 = vsel %vm3589, %v3461, %v3717
    %v3846 = vsel %vm3590, %v3462, %v3718
    %v3847 = vsel %vm3591, %v3463, %v3719
    %v3848 = vsel %vm3592, %v3464, %v3720
    %v3849 = vsel %vm3593, %v3465, %v3721
    %v3850 = vsel %vm3594, %v3466, %v3722
    %v3851 = vsel %vm3595, %v3467, %v3723
    %v3852 = vsel %vm3596, %v3468, %v3724
    %v3853 = vsel %vm3597, %v3469, %v3725
    %v3854 = vsel %vm3598, %v3470, %v3726
    %v3855 = vsel %vm3599, %v3471, %v3727
    %v3856 = vsel %vm3600, %v3472, %v3728
    %v3857 = vsel %vm3601, %v3473, %v3729
    %v3858 = vsel %vm3602, %v3474, %v3730
    %v3859 = vsel %vm3603, %v3475, %v3731
    %v3860 = vsel %vm3604, %v3476, %v3732
    %v3861 = vsel %vm3605, %v3477, %v3733
    %v3862 = vsel %vm3606, %v3478, %v3734
    %v3863 = vsel %vm3607, %v3479, %v3735
    %v3864 = vsel %vm3608, %v3480, %v3736
    %v3865 = vsel %vm3609, %v3481, %v3737
    %v3866 = vsel %vm3610, %v3482, %v3738
    %v3867 = vsel %vm3611, %v3483, %v3739
    %v3868 = vsel %vm3612, %v3484, %v3740
    %v3869 = vsel %vm3613, %v3485, %v3741
    %v3870 = vsel %vm3614, %v3486, %v3742
    %v3871 = vsel %vm3615, %v3487, %v3743
    %v3872 = vsel %vm3616, %v3488, %v3744
    %v3873 = vsel %vm3617, %v3489, %v3745
    %v3874 = vsel %vm3618, %v3490, %v3746
    %v3875 = vsel %vm3619, %v3491, %v3747
    %v3876 = vsel %vm3620, %v3492, %v3748
    %v3877 = vsel %vm3621, %v3493, %v3749
    %v3878 = vsel %vm3622, %v3494, %v3750
    %v3879 = vsel %vm3623, %v3495, %v3751
    %v3880 = vsel %vm3624, %v3496, %v3752
    %v3881 = vsel %vm3625, %v3497, %v3753
    %v3882 = vsel %vm3626, %v3498, %v3754
    %v3883 = vsel %vm3627, %v3499, %v3755
    %v3884 = vsel %vm3628, %v3500, %v3756
    %v3885 = vsel %vm3629, %v3501, %v3757
    %v3886 = vsel %vm3630, %v3502, %v3758
    %v3887 = vsel %vm3631, %v3503, %v3759
    %v3888 = vsel %vm3632, %v3504, %v3760
    %v3889 = vsel %vm3633, %v3505, %v3761
    %v3890 = vsel %vm3634, %v3506, %v3762
    %v3891 = vld [vmem:[%s15] sm:$0xff]
    %v3892 = vld [vmem:[%s15 + $0x8] sm:$0xff]
    %v3893 = vmul.f32 %v3763, %v3891
    %v3894 = vmul.f32 %v3764, %v3892
    %v3895 = vmul.f32 %v3765, %v3891
    %v3896 = vmul.f32 %v3766, %v3892
    %v3897 = vmul.f32 %v3767, %v3891
    %v3898 = vmul.f32 %v3768, %v3892
    %v3899 = vmul.f32 %v3769, %v3891
    %v3900 = vmul.f32 %v3770, %v3892
    %v3901 = vmul.f32 %v3771, %v3891
    %v3902 = vmul.f32 %v3772, %v3892
    %v3903 = vmul.f32 %v3773, %v3891
    %v3904 = vmul.f32 %v3774, %v3892
    %v3905 = vmul.f32 %v3775, %v3891
    %v3906 = vmul.f32 %v3776, %v3892
    %v3907 = vmul.f32 %v3777, %v3891
    %v3908 = vmul.f32 %v3778, %v3892
    %v3909 = vmul.f32 %v3779, %v3891
    %v3910 = vmul.f32 %v3780, %v3892
    %v3911 = vmul.f32 %v3781, %v3891
    %v3912 = vmul.f32 %v3782, %v3892
    %v3913 = vmul.f32 %v3783, %v3891
    %v3914 = vmul.f32 %v3784, %v3892
    %v3915 = vmul.f32 %v3785, %v3891
    %v3916 = vmul.f32 %v3786, %v3892
    %v3917 = vmul.f32 %v3787, %v3891
    %v3918 = vmul.f32 %v3788, %v3892
    %v3919 = vmul.f32 %v3789, %v3891
    %v3920 = vmul.f32 %v3790, %v3892
    %v3921 = vmul.f32 %v3791, %v3891
    %v3922 = vmul.f32 %v3792, %v3892
    %v3923 = vmul.f32 %v3793, %v3891
    %v3924 = vmul.f32 %v3794, %v3892
    %v3925 = vmul.f32 %v3795, %v3891
    %v3926 = vmul.f32 %v3796, %v3892
    %v3927 = vmul.f32 %v3797, %v3891
    %v3928 = vmul.f32 %v3798, %v3892
    %v3929 = vmul.f32 %v3799, %v3891
    %v3930 = vmul.f32 %v3800, %v3892
    %v3931 = vmul.f32 %v3801, %v3891
    %v3932 = vmul.f32 %v3802, %v3892
    %v3933 = vmul.f32 %v3803, %v3891
    %v3934 = vmul.f32 %v3804, %v3892
    %v3935 = vmul.f32 %v3805, %v3891
    %v3936 = vmul.f32 %v3806, %v3892
    %v3937 = vmul.f32 %v3807, %v3891
    %v3938 = vmul.f32 %v3808, %v3892
    %v3939 = vmul.f32 %v3809, %v3891
    %v3940 = vmul.f32 %v3810, %v3892
    %v3941 = vmul.f32 %v3811, %v3891
    %v3942 = vmul.f32 %v3812, %v3892
    %v3943 = vmul.f32 %v3813, %v3891
    %v3944 = vmul.f32 %v3814, %v3892
    %v3945 = vmul.f32 %v3815, %v3891
    %v3946 = vmul.f32 %v3816, %v3892
    %v3947 = vmul.f32 %v3817, %v3891
    %v3948 = vmul.f32 %v3818, %v3892
    %v3949 = vmul.f32 %v3819, %v3891
    %v3950 = vmul.f32 %v3820, %v3892
    %v3951 = vmul.f32 %v3821, %v3891
    %v3952 = vmul.f32 %v3822, %v3892
    %v3953 = vmul.f32 %v3823, %v3891
    %v3954 = vmul.f32 %v3824, %v3892
    %v3955 = vmul.f32 %v3825, %v3891
    %v3956 = vmul.f32 %v3826, %v3892
    %v3957 = vmul.f32 %v3827, %v3891
    %v3958 = vmul.f32 %v3828, %v3892
    %v3959 = vmul.f32 %v3829, %v3891
    %v3960 = vmul.f32 %v3830, %v3892
    %v3961 = vmul.f32 %v3831, %v3891
    %v3962 = vmul.f32 %v3832, %v3892
    %v3963 = vmul.f32 %v3833, %v3891
    %v3964 = vmul.f32 %v3834, %v3892
    %v3965 = vmul.f32 %v3835, %v3891
    %v3966 = vmul.f32 %v3836, %v3892
    %v3967 = vmul.f32 %v3837, %v3891
    %v3968 = vmul.f32 %v3838, %v3892
    %v3969 = vmul.f32 %v3839, %v3891
    %v3970 = vmul.f32 %v3840, %v3892
    %v3971 = vmul.f32 %v3841, %v3891
    %v3972 = vmul.f32 %v3842, %v3892
    %v3973 = vmul.f32 %v3843, %v3891
    %v3974 = vmul.f32 %v3844, %v3892
    %v3975 = vmul.f32 %v3845, %v3891
    %v3976 = vmul.f32 %v3846, %v3892
    %v3977 = vmul.f32 %v3847, %v3891
    %v3978 = vmul.f32 %v3848, %v3892
    %v3979 = vmul.f32 %v3849, %v3891
    %v3980 = vmul.f32 %v3850, %v3892
    %v3981 = vmul.f32 %v3851, %v3891
    %v3982 = vmul.f32 %v3852, %v3892
    %v3983 = vmul.f32 %v3853, %v3891
    %v3984 = vmul.f32 %v3854, %v3892
    %v3985 = vmul.f32 %v3855, %v3891
    %v3986 = vmul.f32 %v3856, %v3892
    %v3987 = vmul.f32 %v3857, %v3891
    %v3988 = vmul.f32 %v3858, %v3892
    %v3989 = vmul.f32 %v3859, %v3891
    %v3990 = vmul.f32 %v3860, %v3892
    %v3991 = vmul.f32 %v3861, %v3891
    %v3992 = vmul.f32 %v3862, %v3892
    %v3993 = vmul.f32 %v3863, %v3891
    %v3994 = vmul.f32 %v3864, %v3892
    %v3995 = vmul.f32 %v3865, %v3891
    %v3996 = vmul.f32 %v3866, %v3892
    %v3997 = vmul.f32 %v3867, %v3891
    %v3998 = vmul.f32 %v3868, %v3892
    %v3999 = vmul.f32 %v3869, %v3891
    %v4000 = vmul.f32 %v3870, %v3892
    %v4001 = vmul.f32 %v3871, %v3891
    %v4002 = vmul.f32 %v3872, %v3892
    %v4003 = vmul.f32 %v3873, %v3891
    %v4004 = vmul.f32 %v3874, %v3892
    %v4005 = vmul.f32 %v3875, %v3891
    %v4006 = vmul.f32 %v3876, %v3892
    %v4007 = vmul.f32 %v3877, %v3891
    %v4008 = vmul.f32 %v3878, %v3892
    %v4009 = vmul.f32 %v3879, %v3891
    %v4010 = vmul.f32 %v3880, %v3892
    %v4011 = vmul.f32 %v3881, %v3891
    %v4012 = vmul.f32 %v3882, %v3892
    %v4013 = vmul.f32 %v3883, %v3891
    %v4014 = vmul.f32 %v3884, %v3892
    %v4015 = vmul.f32 %v3885, %v3891
    %v4016 = vmul.f32 %v3886, %v3892
    %v4017 = vmul.f32 %v3887, %v3891
    %v4018 = vmul.f32 %v3888, %v3892
    %v4019 = vmul.f32 %v3889, %v3891
    %v4020 = vmul.f32 %v3890, %v3892
    %vm4021 = vcmask 523264
    %v4022 = vsel %vm4021, %v3893, 0.0
    %4023 = vadd.xlane.f32.xlu0 %v4022
    %v4024 = vpop.xlane.xlu0 %4023
    %v4025 = vsel %vm4021, %v3894, 0.0
    %4026 = vadd.xlane.f32.xlu0 %v4025
    %v4027 = vpop.xlane.xlu0 %4026
    %v4028 = vsel %vm4021, %v3895, 0.0
    %4029 = vadd.xlane.f32.xlu0 %v4028
    %v4030 = vpop.xlane.xlu0 %4029
    %v4031 = vsel %vm4021, %v3896, 0.0
    %4032 = vadd.xlane.f32.xlu0 %v4031
    %v4033 = vpop.xlane.xlu0 %4032
    %v4034 = vsel %vm4021, %v3897, 0.0
    %4035 = vadd.xlane.f32.xlu0 %v4034
    %v4036 = vpop.xlane.xlu0 %4035
    %v4037 = vsel %vm4021, %v3898, 0.0
    %4038 = vadd.xlane.f32.xlu0 %v4037
    %v4039 = vpop.xlane.xlu0 %4038
    %v4040 = vsel %vm4021, %v3899, 0.0
    %4041 = vadd.xlane.f32.xlu0 %v4040
    %v4042 = vpop.xlane.xlu0 %4041
    %v4043 = vsel %vm4021, %v3900, 0.0
    %4044 = vadd.xlane.f32.xlu0 %v4043
    %v4045 = vpop.xlane.xlu0 %4044
    %v4046 = vsel %vm4021, %v3901, 0.0
    %4047 = vadd.xlane.f32.xlu0 %v4046
    %v4048 = vpop.xlane.xlu0 %4047
    %v4049 = vsel %vm4021, %v3902, 0.0
    %4050 = vadd.xlane.f32.xlu0 %v4049
    %v4051 = vpop.xlane.xlu0 %4050
    %v4052 = vsel %vm4021, %v3903, 0.0
    %4053 = vadd.xlane.f32.xlu0 %v4052
    %v4054 = vpop.xlane.xlu0 %4053
    %v4055 = vsel %vm4021, %v3904, 0.0
    %4056 = vadd.xlane.f32.xlu0 %v4055
    %v4057 = vpop.xlane.xlu0 %4056
    %v4058 = vsel %vm4021, %v3905, 0.0
    %4059 = vadd.xlane.f32.xlu0 %v4058
    %v4060 = vpop.xlane.xlu0 %4059
    %v4061 = vsel %vm4021, %v3906, 0.0
    %4062 = vadd.xlane.f32.xlu0 %v4061
    %v4063 = vpop.xlane.xlu0 %4062
    %v4064 = vsel %vm4021, %v3907, 0.0
    %4065 = vadd.xlane.f32.xlu0 %v4064
    %v4066 = vpop.xlane.xlu0 %4065
    %v4067 = vsel %vm4021, %v3908, 0.0
    %4068 = vadd.xlane.f32.xlu0 %v4067
    %v4069 = vpop.xlane.xlu0 %4068
    %v4070 = vsel %vm4021, %v3909, 0.0
    %4071 = vadd.xlane.f32.xlu0 %v4070
    %v4072 = vpop.xlane.xlu0 %4071
    %v4073 = vsel %vm4021, %v3910, 0.0
    %4074 = vadd.xlane.f32.xlu0 %v4073
    %v4075 = vpop.xlane.xlu0 %4074
    %v4076 = vsel %vm4021, %v3911, 0.0
    %4077 = vadd.xlane.f32.xlu0 %v4076
    %v4078 = vpop.xlane.xlu0 %4077
    %v4079 = vsel %vm4021, %v3912, 0.0
    %4080 = vadd.xlane.f32.xlu0 %v4079
    %v4081 = vpop.xlane.xlu0 %4080
    %v4082 = vsel %vm4021, %v3913, 0.0
    %4083 = vadd.xlane.f32.xlu0 %v4082
    %v4084 = vpop.xlane.xlu0 %4083
    %v4085 = vsel %vm4021, %v3914, 0.0
    %4086 = vadd.xlane.f32.xlu0 %v4085
    %v4087 = vpop.xlane.xlu0 %4086
    %v4088 = vsel %vm4021, %v3915, 0.0
    %4089 = vadd.xlane.f32.xlu0 %v4088
    %v4090 = vpop.xlane.xlu0 %4089
    %v4091 = vsel %vm4021, %v3916, 0.0
    %4092 = vadd.xlane.f32.xlu0 %v4091
    %v4093 = vpop.xlane.xlu0 %4092
    %v4094 = vsel %vm4021, %v3917, 0.0
    %4095 = vadd.xlane.f32.xlu0 %v4094
    %v4096 = vpop.xlane.xlu0 %4095
    %v4097 = vsel %vm4021, %v3918, 0.0
    %4098 = vadd.xlane.f32.xlu0 %v4097
    %v4099 = vpop.xlane.xlu0 %4098
    %v4100 = vsel %vm4021, %v3919, 0.0
    %4101 = vadd.xlane.f32.xlu0 %v4100
    %v4102 = vpop.xlane.xlu0 %4101
    %v4103 = vsel %vm4021, %v3920, 0.0
    %4104 = vadd.xlane.f32.xlu0 %v4103
    %v4105 = vpop.xlane.xlu0 %4104
    %v4106 = vsel %vm4021, %v3921, 0.0
    %4107 = vadd.xlane.f32.xlu0 %v4106
    %v4108 = vpop.xlane.xlu0 %4107
    %v4109 = vsel %vm4021, %v3922, 0.0
    %4110 = vadd.xlane.f32.xlu0 %v4109
    %v4111 = vpop.xlane.xlu0 %4110
    %v4112 = vsel %vm4021, %v3923, 0.0
    %4113 = vadd.xlane.f32.xlu0 %v4112
    %v4114 = vpop.xlane.xlu0 %4113
    %v4115 = vsel %vm4021, %v3924, 0.0
    %4116 = vadd.xlane.f32.xlu0 %v4115
    %v4117 = vpop.xlane.xlu0 %4116
    %v4118 = vsel %vm4021, %v3925, 0.0
    %4119 = vadd.xlane.f32.xlu0 %v4118
    %v4120 = vpop.xlane.xlu0 %4119
    %v4121 = vsel %vm4021, %v3926, 0.0
    %4122 = vadd.xlane.f32.xlu0 %v4121
    %v4123 = vpop.xlane.xlu0 %4122
    %v4124 = vsel %vm4021, %v3927, 0.0
    %4125 = vadd.xlane.f32.xlu0 %v4124
    %v4126 = vpop.xlane.xlu0 %4125
    %v4127 = vsel %vm4021, %v3928, 0.0
    %4128 = vadd.xlane.f32.xlu0 %v4127
    %v4129 = vpop.xlane.xlu0 %4128
    %v4130 = vsel %vm4021, %v3929, 0.0
    %4131 = vadd.xlane.f32.xlu0 %v4130
    %v4132 = vpop.xlane.xlu0 %4131
    %v4133 = vsel %vm4021, %v3930, 0.0
    %4134 = vadd.xlane.f32.xlu0 %v4133
    %v4135 = vpop.xlane.xlu0 %4134
    %v4136 = vsel %vm4021, %v3931, 0.0
    %4137 = vadd.xlane.f32.xlu0 %v4136
    %v4138 = vpop.xlane.xlu0 %4137
    %v4139 = vsel %vm4021, %v3932, 0.0
    %4140 = vadd.xlane.f32.xlu0 %v4139
    %v4141 = vpop.xlane.xlu0 %4140
    %v4142 = vsel %vm4021, %v3933, 0.0
    %4143 = vadd.xlane.f32.xlu0 %v4142
    %v4144 = vpop.xlane.xlu0 %4143
    %v4145 = vsel %vm4021, %v3934, 0.0
    %4146 = vadd.xlane.f32.xlu0 %v4145
    %v4147 = vpop.xlane.xlu0 %4146
    %v4148 = vsel %vm4021, %v3935, 0.0
    %4149 = vadd.xlane.f32.xlu0 %v4148
    %v4150 = vpop.xlane.xlu0 %4149
    %v4151 = vsel %vm4021, %v3936, 0.0
    %4152 = vadd.xlane.f32.xlu0 %v4151
    %v4153 = vpop.xlane.xlu0 %4152
    %v4154 = vsel %vm4021, %v3937, 0.0
    %4155 = vadd.xlane.f32.xlu0 %v4154
    %v4156 = vpop.xlane.xlu0 %4155
    %v4157 = vsel %vm4021, %v3938, 0.0
    %4158 = vadd.xlane.f32.xlu0 %v4157
    %v4159 = vpop.xlane.xlu0 %4158
    %v4160 = vsel %vm4021, %v3939, 0.0
    %4161 = vadd.xlane.f32.xlu0 %v4160
    %v4162 = vpop.xlane.xlu0 %4161
    %v4163 = vsel %vm4021, %v3940, 0.0
    %4164 = vadd.xlane.f32.xlu0 %v4163
    %v4165 = vpop.xlane.xlu0 %4164
    %v4166 = vsel %vm4021, %v3941, 0.0
    %4167 = vadd.xlane.f32.xlu0 %v4166
    %v4168 = vpop.xlane.xlu0 %4167
    %v4169 = vsel %vm4021, %v3942, 0.0
    %4170 = vadd.xlane.f32.xlu0 %v4169
    %v4171 = vpop.xlane.xlu0 %4170
    %v4172 = vsel %vm4021, %v3943, 0.0
    %4173 = vadd.xlane.f32.xlu0 %v4172
    %v4174 = vpop.xlane.xlu0 %4173
    %v4175 = vsel %vm4021, %v3944, 0.0
    %4176 = vadd.xlane.f32.xlu0 %v4175
    %v4177 = vpop.xlane.xlu0 %4176
    %v4178 = vsel %vm4021, %v3945, 0.0
    %4179 = vadd.xlane.f32.xlu0 %v4178
    %v4180 = vpop.xlane.xlu0 %4179
    %v4181 = vsel %vm4021, %v3946, 0.0
    %4182 = vadd.xlane.f32.xlu0 %v4181
    %v4183 = vpop.xlane.xlu0 %4182
    %v4184 = vsel %vm4021, %v3947, 0.0
    %4185 = vadd.xlane.f32.xlu0 %v4184
    %v4186 = vpop.xlane.xlu0 %4185
    %v4187 = vsel %vm4021, %v3948, 0.0
    %4188 = vadd.xlane.f32.xlu0 %v4187
    %v4189 = vpop.xlane.xlu0 %4188
    %v4190 = vsel %vm4021, %v3949, 0.0
    %4191 = vadd.xlane.f32.xlu0 %v4190
    %v4192 = vpop.xlane.xlu0 %4191
    %v4193 = vsel %vm4021, %v3950, 0.0
    %4194 = vadd.xlane.f32.xlu0 %v4193
    %v4195 = vpop.xlane.xlu0 %4194
    %v4196 = vsel %vm4021, %v3951, 0.0
    %4197 = vadd.xlane.f32.xlu0 %v4196
    %v4198 = vpop.xlane.xlu0 %4197
    %v4199 = vsel %vm4021, %v3952, 0.0
    %4200 = vadd.xlane.f32.xlu0 %v4199
    %v4201 = vpop.xlane.xlu0 %4200
    %v4202 = vsel %vm4021, %v3953, 0.0
    %4203 = vadd.xlane.f32.xlu0 %v4202
    %v4204 = vpop.xlane.xlu0 %4203
    %v4205 = vsel %vm4021, %v3954, 0.0
    %4206 = vadd.xlane.f32.xlu0 %v4205
    %v4207 = vpop.xlane.xlu0 %4206
    %v4208 = vsel %vm4021, %v3955, 0.0
    %4209 = vadd.xlane.f32.xlu0 %v4208
    %v4210 = vpop.xlane.xlu0 %4209
    %v4211 = vsel %vm4021, %v3956, 0.0
    %4212 = vadd.xlane.f32.xlu0 %v4211
    %v4213 = vpop.xlane.xlu0 %4212
    %v4214 = vsel %vm4021, %v3957, 0.0
    %4215 = vadd.xlane.f32.xlu0 %v4214
    %v4216 = vpop.xlane.xlu0 %4215
    %v4217 = vsel %vm4021, %v3958, 0.0
    %4218 = vadd.xlane.f32.xlu0 %v4217
    %v4219 = vpop.xlane.xlu0 %4218
    %v4220 = vsel %vm4021, %v3959, 0.0
    %4221 = vadd.xlane.f32.xlu0 %v4220
    %v4222 = vpop.xlane.xlu0 %4221
    %v4223 = vsel %vm4021, %v3960, 0.0
    %4224 = vadd.xlane.f32.xlu0 %v4223
    %v4225 = vpop.xlane.xlu0 %4224
    %v4226 = vsel %vm4021, %v3961, 0.0
    %4227 = vadd.xlane.f32.xlu0 %v4226
    %v4228 = vpop.xlane.xlu0 %4227
    %v4229 = vsel %vm4021, %v3962, 0.0
    %4230 = vadd.xlane.f32.xlu0 %v4229
    %v4231 = vpop.xlane.xlu0 %4230
    %v4232 = vsel %vm4021, %v3963, 0.0
    %4233 = vadd.xlane.f32.xlu0 %v4232
    %v4234 = vpop.xlane.xlu0 %4233
    %v4235 = vsel %vm4021, %v3964, 0.0
    %4236 = vadd.xlane.f32.xlu0 %v4235
    %v4237 = vpop.xlane.xlu0 %4236
    %v4238 = vsel %vm4021, %v3965, 0.0
    %4239 = vadd.xlane.f32.xlu0 %v4238
    %v4240 = vpop.xlane.xlu0 %4239
    %v4241 = vsel %vm4021, %v3966, 0.0
    %4242 = vadd.xlane.f32.xlu0 %v4241
    %v4243 = vpop.xlane.xlu0 %4242
    %v4244 = vsel %vm4021, %v3967, 0.0
    %4245 = vadd.xlane.f32.xlu0 %v4244
    %v4246 = vpop.xlane.xlu0 %4245
    %v4247 = vsel %vm4021, %v3968, 0.0
    %4248 = vadd.xlane.f32.xlu0 %v4247
    %v4249 = vpop.xlane.xlu0 %4248
    %v4250 = vsel %vm4021, %v3969, 0.0
    %4251 = vadd.xlane.f32.xlu0 %v4250
    %v4252 = vpop.xlane.xlu0 %4251
    %v4253 = vsel %vm4021, %v3970, 0.0
    %4254 = vadd.xlane.f32.xlu0 %v4253
    %v4255 = vpop.xlane.xlu0 %4254
    %v4256 = vsel %vm4021, %v3971, 0.0
    %4257 = vadd.xlane.f32.xlu0 %v4256
    %v4258 = vpop.xlane.xlu0 %4257
    %v4259 = vsel %vm4021, %v3972, 0.0
    %4260 = vadd.xlane.f32.xlu0 %v4259
    %v4261 = vpop.xlane.xlu0 %4260
    %v4262 = vsel %vm4021, %v3973, 0.0
    %4263 = vadd.xlane.f32.xlu0 %v4262
    %v4264 = vpop.xlane.xlu0 %4263
    %v4265 = vsel %vm4021, %v3974, 0.0
    %4266 = vadd.xlane.f32.xlu0 %v4265
    %v4267 = vpop.xlane.xlu0 %4266
    %v4268 = vsel %vm4021, %v3975, 0.0
    %4269 = vadd.xlane.f32.xlu0 %v4268
    %v4270 = vpop.xlane.xlu0 %4269
    %v4271 = vsel %vm4021, %v3976, 0.0
    %4272 = vadd.xlane.f32.xlu0 %v4271
    %v4273 = vpop.xlane.xlu0 %4272
    %v4274 = vsel %vm4021, %v3977, 0.0
    %4275 = vadd.xlane.f32.xlu0 %v4274
    %v4276 = vpop.xlane.xlu0 %4275
    %v4277 = vsel %vm4021, %v3978, 0.0
    %4278 = vadd.xlane.f32.xlu0 %v4277
    %v4279 = vpop.xlane.xlu0 %4278
    %v4280 = vsel %vm4021, %v3979, 0.0
    %4281 = vadd.xlane.f32.xlu0 %v4280
    %v4282 = vpop.xlane.xlu0 %4281
    %v4283 = vsel %vm4021, %v3980, 0.0
    %4284 = vadd.xlane.f32.xlu0 %v4283
    %v4285 = vpop.xlane.xlu0 %4284
    %v4286 = vsel %vm4021, %v3981, 0.0
    %4287 = vadd.xlane.f32.xlu0 %v4286
    %v4288 = vpop.xlane.xlu0 %4287
    %v4289 = vsel %vm4021, %v3982, 0.0
    %4290 = vadd.xlane.f32.xlu0 %v4289
    %v4291 = vpop.xlane.xlu0 %4290
    %v4292 = vsel %vm4021, %v3983, 0.0
    %4293 = vadd.xlane.f32.xlu0 %v4292
    %v4294 = vpop.xlane.xlu0 %4293
    %v4295 = vsel %vm4021, %v3984, 0.0
    %4296 = vadd.xlane.f32.xlu0 %v4295
    %v4297 = vpop.xlane.xlu0 %4296
    %v4298 = vsel %vm4021, %v3985, 0.0
    %4299 = vadd.xlane.f32.xlu0 %v4298
    %v4300 = vpop.xlane.xlu0 %4299
    %v4301 = vsel %vm4021, %v3986, 0.0
    %4302 = vadd.xlane.f32.xlu0 %v4301
    %v4303 = vpop.xlane.xlu0 %4302
    %v4304 = vsel %vm4021, %v3987, 0.0
    %4305 = vadd.xlane.f32.xlu0 %v4304
    %v4306 = vpop.xlane.xlu0 %4305
    %v4307 = vsel %vm4021, %v3988, 0.0
    %4308 = vadd.xlane.f32.xlu0 %v4307
    %v4309 = vpop.xlane.xlu0 %4308
    %v4310 = vsel %vm4021, %v3989, 0.0
    %4311 = vadd.xlane.f32.xlu0 %v4310
    %v4312 = vpop.xlane.xlu0 %4311
    %v4313 = vsel %vm4021, %v3990, 0.0
    %4314 = vadd.xlane.f32.xlu0 %v4313
    %v4315 = vpop.xlane.xlu0 %4314
    %v4316 = vsel %vm4021, %v3991, 0.0
    %4317 = vadd.xlane.f32.xlu0 %v4316
    %v4318 = vpop.xlane.xlu0 %4317
    %v4319 = vsel %vm4021, %v3992, 0.0
    %4320 = vadd.xlane.f32.xlu0 %v4319
    %v4321 = vpop.xlane.xlu0 %4320
    %v4322 = vsel %vm4021, %v3993, 0.0
    %4323 = vadd.xlane.f32.xlu0 %v4322
    %v4324 = vpop.xlane.xlu0 %4323
    %v4325 = vsel %vm4021, %v3994, 0.0
    %4326 = vadd.xlane.f32.xlu0 %v4325
    %v4327 = vpop.xlane.xlu0 %4326
    %v4328 = vsel %vm4021, %v3995, 0.0
    %4329 = vadd.xlane.f32.xlu0 %v4328
    %v4330 = vpop.xlane.xlu0 %4329
    %v4331 = vsel %vm4021, %v3996, 0.0
    %4332 = vadd.xlane.f32.xlu0 %v4331
    %v4333 = vpop.xlane.xlu0 %4332
    %v4334 = vsel %vm4021, %v3997, 0.0
    %4335 = vadd.xlane.f32.xlu0 %v4334
    %v4336 = vpop.xlane.xlu0 %4335
    %v4337 = vsel %vm4021, %v3998, 0.0
    %4338 = vadd.xlane.f32.xlu0 %v4337
    %v4339 = vpop.xlane.xlu0 %4338
    %v4340 = vsel %vm4021, %v3999, 0.0
    %4341 = vadd.xlane.f32.xlu0 %v4340
    %v4342 = vpop.xlane.xlu0 %4341
    %v4343 = vsel %vm4021, %v4000, 0.0
    %4344 = vadd.xlane.f32.xlu0 %v4343
    %v4345 = vpop.xlane.xlu0 %4344
    %v4346 = vsel %vm4021, %v4001, 0.0
    %4347 = vadd.xlane.f32.xlu0 %v4346
    %v4348 = vpop.xlane.xlu0 %4347
    %v4349 = vsel %vm4021, %v4002, 0.0
    %4350 = vadd.xlane.f32.xlu0 %v4349
    %v4351 = vpop.xlane.xlu0 %4350
    %v4352 = vsel %vm4021, %v4003, 0.0
    %4353 = vadd.xlane.f32.xlu0 %v4352
    %v4354 = vpop.xlane.xlu0 %4353
    %v4355 = vsel %vm4021, %v4004, 0.0
    %4356 = vadd.xlane.f32.xlu0 %v4355
    %v4357 = vpop.xlane.xlu0 %4356
    %v4358 = vsel %vm4021, %v4005, 0.0
    %4359 = vadd.xlane.f32.xlu0 %v4358
    %v4360 = vpop.xlane.xlu0 %4359
    %v4361 = vsel %vm4021, %v4006, 0.0
    %4362 = vadd.xlane.f32.xlu0 %v4361
    %v4363 = vpop.xlane.xlu0 %4362
    %v4364 = vsel %vm4021, %v4007, 0.0
    %4365 = vadd.xlane.f32.xlu0 %v4364
    %v4366 = vpop.xlane.xlu0 %4365
    %v4367 = vsel %vm4021, %v4008, 0.0
    %4368 = vadd.xlane.f32.xlu0 %v4367
    %v4369 = vpop.xlane.xlu0 %4368
    %v4370 = vsel %vm4021, %v4009, 0.0
    %4371 = vadd.xlane.f32.xlu0 %v4370
    %v4372 = vpop.xlane.xlu0 %4371
    %v4373 = vsel %vm4021, %v4010, 0.0
    %4374 = vadd.xlane.f32.xlu0 %v4373
    %v4375 = vpop.xlane.xlu0 %4374
    %v4376 = vsel %vm4021, %v4011, 0.0
    %4377 = vadd.xlane.f32.xlu0 %v4376
    %v4378 = vpop.xlane.xlu0 %4377
    %v4379 = vsel %vm4021, %v4012, 0.0
    %4380 = vadd.xlane.f32.xlu0 %v4379
    %v4381 = vpop.xlane.xlu0 %4380
    %v4382 = vsel %vm4021, %v4013, 0.0
    %4383 = vadd.xlane.f32.xlu0 %v4382
    %v4384 = vpop.xlane.xlu0 %4383
    %v4385 = vsel %vm4021, %v4014, 0.0
    %4386 = vadd.xlane.f32.xlu0 %v4385
    %v4387 = vpop.xlane.xlu0 %4386
    %v4388 = vsel %vm4021, %v4015, 0.0
    %4389 = vadd.xlane.f32.xlu0 %v4388
    %v4390 = vpop.xlane.xlu0 %4389
    %v4391 = vsel %vm4021, %v4016, 0.0
    %4392 = vadd.xlane.f32.xlu0 %v4391
    %v4393 = vpop.xlane.xlu0 %4392
    %v4394 = vsel %vm4021, %v4017, 0.0
    %4395 = vadd.xlane.f32.xlu0 %v4394
    %v4396 = vpop.xlane.xlu0 %4395
    %v4397 = vsel %vm4021, %v4018, 0.0
    %4398 = vadd.xlane.f32.xlu0 %v4397
    %v4399 = vpop.xlane.xlu0 %4398
    %v4400 = vsel %vm4021, %v4019, 0.0
    %4401 = vadd.xlane.f32.xlu0 %v4400
    %v4402 = vpop.xlane.xlu0 %4401
    %v4403 = vsel %vm4021, %v4020, 0.0
    %4404 = vadd.xlane.f32.xlu0 %v4403
    %v4405 = vpop.xlane.xlu0 %4404
    %v4534 = vlaneseq
    %v4535 = vand.u32 %v4534, 127
    %v4536 = vlaneseq
    %v4537 = vshrl.u32 %v4536, 7
    %v4538 = vsub.s32 %v4535, %v4537
    %v4539 = vrot.slane %v4024, %v4538
    %v4540 = vadd.s32 %v4535, 4294967288
    %v4541 = vlaneseq
    %v4542 = vshrl.u32 %v4541, 7
    %v4543 = vsub.s32 %v4540, %v4542
    %v4544 = vrot.slane %v4027, %v4543
    %vm4545 = vcmask 130112
    %v4546 = vsel %vm4545, %v4544, %v4539
    %v4547 = vlaneseq
    %v4548 = vshrl.u32 %v4547, 7
    %v4549 = vsub.s32 %v4535, %v4548
    %v4550 = vrot.slane %v4030, %v4549
    %v4551 = vlaneseq
    %v4552 = vshrl.u32 %v4551, 7
    %v4553 = vsub.s32 %v4540, %v4552
    %v4554 = vrot.slane %v4033, %v4553
    %v4555 = vsel %vm4545, %v4554, %v4550
    %v4556 = vlaneseq
    %v4557 = vshrl.u32 %v4556, 7
    %v4558 = vsub.s32 %v4535, %v4557
    %v4559 = vrot.slane %v4036, %v4558
    %v4560 = vlaneseq
    %v4561 = vshrl.u32 %v4560, 7
    %v4562 = vsub.s32 %v4540, %v4561
    %v4563 = vrot.slane %v4039, %v4562
    %v4564 = vsel %vm4545, %v4563, %v4559
    %v4565 = vlaneseq
    %v4566 = vshrl.u32 %v4565, 7
    %v4567 = vsub.s32 %v4535, %v4566
    %v4568 = vrot.slane %v4042, %v4567
    %v4569 = vlaneseq
    %v4570 = vshrl.u32 %v4569, 7
    %v4571 = vsub.s32 %v4540, %v4570
    %v4572 = vrot.slane %v4045, %v4571
    %v4573 = vsel %vm4545, %v4572, %v4568
    %v4574 = vlaneseq
    %v4575 = vshrl.u32 %v4574, 7
    %v4576 = vsub.s32 %v4535, %v4575
    %v4577 = vrot.slane %v4048, %v4576
    %v4578 = vlaneseq
    %v4579 = vshrl.u32 %v4578, 7
    %v4580 = vsub.s32 %v4540, %v4579
    %v4581 = vrot.slane %v4051, %v4580
    %v4582 = vsel %vm4545, %v4581, %v4577
    %v4583 = vlaneseq
    %v4584 = vshrl.u32 %v4583, 7
    %v4585 = vsub.s32 %v4535, %v4584
    %v4586 = vrot.slane %v4054, %v4585
    %v4587 = vlaneseq
    %v4588 = vshrl.u32 %v4587, 7
    %v4589 = vsub.s32 %v4540, %v4588
    %v4590 = vrot.slane %v4057, %v4589
    %v4591 = vsel %vm4545, %v4590, %v4586
    %v4592 = vlaneseq
    %v4593 = vshrl.u32 %v4592, 7
    %v4594 = vsub.s32 %v4535, %v4593
    %v4595 = vrot.slane %v4060, %v4594
    %v4596 = vlaneseq
    %v4597 = vshrl.u32 %v4596, 7
    %v4598 = vsub.s32 %v4540, %v4597
    %v4599 = vrot.slane %v4063, %v4598
    %v4600 = vsel %vm4545, %v4599, %v4595
    %v4601 = vlaneseq
    %v4602 = vshrl.u32 %v4601, 7
    %v4603 = vsub.s32 %v4535, %v4602
    %v4604 = vrot.slane %v4066, %v4603
    %v4605 = vlaneseq
    %v4606 = vshrl.u32 %v4605, 7
    %v4607 = vsub.s32 %v4540, %v4606
    %v4608 = vrot.slane %v4069, %v4607
    %v4609 = vsel %vm4545, %v4608, %v4604
    %v4610 = vlaneseq
    %v4611 = vshrl.u32 %v4610, 7
    %v4612 = vsub.s32 %v4535, %v4611
    %v4613 = vrot.slane %v4072, %v4612
    %v4614 = vlaneseq
    %v4615 = vshrl.u32 %v4614, 7
    %v4616 = vsub.s32 %v4540, %v4615
    %v4617 = vrot.slane %v4075, %v4616
    %v4618 = vsel %vm4545, %v4617, %v4613
    %v4619 = vlaneseq
    %v4620 = vshrl.u32 %v4619, 7
    %v4621 = vsub.s32 %v4535, %v4620
    %v4622 = vrot.slane %v4078, %v4621
    %v4623 = vlaneseq
    %v4624 = vshrl.u32 %v4623, 7
    %v4625 = vsub.s32 %v4540, %v4624
    %v4626 = vrot.slane %v4081, %v4625
    %v4627 = vsel %vm4545, %v4626, %v4622
    %v4628 = vlaneseq
    %v4629 = vshrl.u32 %v4628, 7
    %v4630 = vsub.s32 %v4535, %v4629
    %v4631 = vrot.slane %v4084, %v4630
    %v4632 = vlaneseq
    %v4633 = vshrl.u32 %v4632, 7
    %v4634 = vsub.s32 %v4540, %v4633
    %v4635 = vrot.slane %v4087, %v4634
    %v4636 = vsel %vm4545, %v4635, %v4631
    %v4637 = vlaneseq
    %v4638 = vshrl.u32 %v4637, 7
    %v4639 = vsub.s32 %v4535, %v4638
    %v4640 = vrot.slane %v4090, %v4639
    %v4641 = vlaneseq
    %v4642 = vshrl.u32 %v4641, 7
    %v4643 = vsub.s32 %v4540, %v4642
    %v4644 = vrot.slane %v4093, %v4643
    %v4645 = vsel %vm4545, %v4644, %v4640
    %v4646 = vlaneseq
    %v4647 = vshrl.u32 %v4646, 7
    %v4648 = vsub.s32 %v4535, %v4647
    %v4649 = vrot.slane %v4096, %v4648
    %v4650 = vlaneseq
    %v4651 = vshrl.u32 %v4650, 7
    %v4652 = vsub.s32 %v4540, %v4651
    %v4653 = vrot.slane %v4099, %v4652
    %v4654 = vsel %vm4545, %v4653, %v4649
    %v4655 = vlaneseq
    %v4656 = vshrl.u32 %v4655, 7
    %v4657 = vsub.s32 %v4535, %v4656
    %v4658 = vrot.slane %v4102, %v4657
    %v4659 = vlaneseq
    %v4660 = vshrl.u32 %v4659, 7
    %v4661 = vsub.s32 %v4540, %v4660
    %v4662 = vrot.slane %v4105, %v4661
    %v4663 = vsel %vm4545, %v4662, %v4658
    %v4664 = vlaneseq
    %v4665 = vshrl.u32 %v4664, 7
    %v4666 = vsub.s32 %v4535, %v4665
    %v4667 = vrot.slane %v4108, %v4666
    %v4668 = vlaneseq
    %v4669 = vshrl.u32 %v4668, 7
    %v4670 = vsub.s32 %v4540, %v4669
    %v4671 = vrot.slane %v4111, %v4670
    %v4672 = vsel %vm4545, %v4671, %v4667
    %v4673 = vlaneseq
    %v4674 = vshrl.u32 %v4673, 7
    %v4675 = vsub.s32 %v4535, %v4674
    %v4676 = vrot.slane %v4114, %v4675
    %v4677 = vlaneseq
    %v4678 = vshrl.u32 %v4677, 7
    %v4679 = vsub.s32 %v4540, %v4678
    %v4680 = vrot.slane %v4117, %v4679
    %v4681 = vsel %vm4545, %v4680, %v4676
    %v4682 = vlaneseq
    %v4683 = vshrl.u32 %v4682, 7
    %v4684 = vsub.s32 %v4535, %v4683
    %v4685 = vrot.slane %v4120, %v4684
    %v4686 = vlaneseq
    %v4687 = vshrl.u32 %v4686, 7
    %v4688 = vsub.s32 %v4540, %v4687
    %v4689 = vrot.slane %v4123, %v4688
    %v4690 = vsel %vm4545, %v4689, %v4685
    %v4691 = vlaneseq
    %v4692 = vshrl.u32 %v4691, 7
    %v4693 = vsub.s32 %v4535, %v4692
    %v4694 = vrot.slane %v4126, %v4693
    %v4695 = vlaneseq
    %v4696 = vshrl.u32 %v4695, 7
    %v4697 = vsub.s32 %v4540, %v4696
    %v4698 = vrot.slane %v4129, %v4697
    %v4699 = vsel %vm4545, %v4698, %v4694
    %v4700 = vlaneseq
    %v4701 = vshrl.u32 %v4700, 7
    %v4702 = vsub.s32 %v4535, %v4701
    %v4703 = vrot.slane %v4132, %v4702
    %v4704 = vlaneseq
    %v4705 = vshrl.u32 %v4704, 7
    %v4706 = vsub.s32 %v4540, %v4705
    %v4707 = vrot.slane %v4135, %v4706
    %v4708 = vsel %vm4545, %v4707, %v4703
    %v4709 = vlaneseq
    %v4710 = vshrl.u32 %v4709, 7
    %v4711 = vsub.s32 %v4535, %v4710
    %v4712 = vrot.slane %v4138, %v4711
    %v4713 = vlaneseq
    %v4714 = vshrl.u32 %v4713, 7
    %v4715 = vsub.s32 %v4540, %v4714
    %v4716 = vrot.slane %v4141, %v4715
    %v4717 = vsel %vm4545, %v4716, %v4712
    %v4718 = vlaneseq
    %v4719 = vshrl.u32 %v4718, 7
    %v4720 = vsub.s32 %v4535, %v4719
    %v4721 = vrot.slane %v4144, %v4720
    %v4722 = vlaneseq
    %v4723 = vshrl.u32 %v4722, 7
    %v4724 = vsub.s32 %v4540, %v4723
    %v4725 = vrot.slane %v4147, %v4724
    %v4726 = vsel %vm4545, %v4725, %v4721
    %v4727 = vlaneseq
    %v4728 = vshrl.u32 %v4727, 7
    %v4729 = vsub.s32 %v4535, %v4728
    %v4730 = vrot.slane %v4150, %v4729
    %v4731 = vlaneseq
    %v4732 = vshrl.u32 %v4731, 7
    %v4733 = vsub.s32 %v4540, %v4732
    %v4734 = vrot.slane %v4153, %v4733
    %v4735 = vsel %vm4545, %v4734, %v4730
    %v4736 = vlaneseq
    %v4737 = vshrl.u32 %v4736, 7
    %v4738 = vsub.s32 %v4535, %v4737
    %v4739 = vrot.slane %v4156, %v4738
    %v4740 = vlaneseq
    %v4741 = vshrl.u32 %v4740, 7
    %v4742 = vsub.s32 %v4540, %v4741
    %v4743 = vrot.slane %v4159, %v4742
    %v4744 = vsel %vm4545, %v4743, %v4739
    %v4745 = vlaneseq
    %v4746 = vshrl.u32 %v4745, 7
    %v4747 = vsub.s32 %v4535, %v4746
    %v4748 = vrot.slane %v4162, %v4747
    %v4749 = vlaneseq
    %v4750 = vshrl.u32 %v4749, 7
    %v4751 = vsub.s32 %v4540, %v4750
    %v4752 = vrot.slane %v4165, %v4751
    %v4753 = vsel %vm4545, %v4752, %v4748
    %v4754 = vlaneseq
    %v4755 = vshrl.u32 %v4754, 7
    %v4756 = vsub.s32 %v4535, %v4755
    %v4757 = vrot.slane %v4168, %v4756
    %v4758 = vlaneseq
    %v4759 = vshrl.u32 %v4758, 7
    %v4760 = vsub.s32 %v4540, %v4759
    %v4761 = vrot.slane %v4171, %v4760
    %v4762 = vsel %vm4545, %v4761, %v4757
    %v4763 = vlaneseq
    %v4764 = vshrl.u32 %v4763, 7
    %v4765 = vsub.s32 %v4535, %v4764
    %v4766 = vrot.slane %v4174, %v4765
    %v4767 = vlaneseq
    %v4768 = vshrl.u32 %v4767, 7
    %v4769 = vsub.s32 %v4540, %v4768
    %v4770 = vrot.slane %v4177, %v4769
    %v4771 = vsel %vm4545, %v4770, %v4766
    %v4772 = vlaneseq
    %v4773 = vshrl.u32 %v4772, 7
    %v4774 = vsub.s32 %v4535, %v4773
    %v4775 = vrot.slane %v4180, %v4774
    %v4776 = vlaneseq
    %v4777 = vshrl.u32 %v4776, 7
    %v4778 = vsub.s32 %v4540, %v4777
    %v4779 = vrot.slane %v4183, %v4778
    %v4780 = vsel %vm4545, %v4779, %v4775
    %v4781 = vlaneseq
    %v4782 = vshrl.u32 %v4781, 7
    %v4783 = vsub.s32 %v4535, %v4782
    %v4784 = vrot.slane %v4186, %v4783
    %v4785 = vlaneseq
    %v4786 = vshrl.u32 %v4785, 7
    %v4787 = vsub.s32 %v4540, %v4786
    %v4788 = vrot.slane %v4189, %v4787
    %v4789 = vsel %vm4545, %v4788, %v4784
    %v4790 = vlaneseq
    %v4791 = vshrl.u32 %v4790, 7
    %v4792 = vsub.s32 %v4535, %v4791
    %v4793 = vrot.slane %v4192, %v4792
    %v4794 = vlaneseq
    %v4795 = vshrl.u32 %v4794, 7
    %v4796 = vsub.s32 %v4540, %v4795
    %v4797 = vrot.slane %v4195, %v4796
    %v4798 = vsel %vm4545, %v4797, %v4793
    %v4799 = vlaneseq
    %v4800 = vshrl.u32 %v4799, 7
    %v4801 = vsub.s32 %v4535, %v4800
    %v4802 = vrot.slane %v4198, %v4801
    %v4803 = vlaneseq
    %v4804 = vshrl.u32 %v4803, 7
    %v4805 = vsub.s32 %v4540, %v4804
    %v4806 = vrot.slane %v4201, %v4805
    %v4807 = vsel %vm4545, %v4806, %v4802
    %v4808 = vlaneseq
    %v4809 = vshrl.u32 %v4808, 7
    %v4810 = vsub.s32 %v4535, %v4809
    %v4811 = vrot.slane %v4204, %v4810
    %v4812 = vlaneseq
    %v4813 = vshrl.u32 %v4812, 7
    %v4814 = vsub.s32 %v4540, %v4813
    %v4815 = vrot.slane %v4207, %v4814
    %v4816 = vsel %vm4545, %v4815, %v4811
    %v4817 = vlaneseq
    %v4818 = vshrl.u32 %v4817, 7
    %v4819 = vsub.s32 %v4535, %v4818
    %v4820 = vrot.slane %v4210, %v4819
    %v4821 = vlaneseq
    %v4822 = vshrl.u32 %v4821, 7
    %v4823 = vsub.s32 %v4540, %v4822
    %v4824 = vrot.slane %v4213, %v4823
    %v4825 = vsel %vm4545, %v4824, %v4820
    %v4826 = vlaneseq
    %v4827 = vshrl.u32 %v4826, 7
    %v4828 = vsub.s32 %v4535, %v4827
    %v4829 = vrot.slane %v4216, %v4828
    %v4830 = vlaneseq
    %v4831 = vshrl.u32 %v4830, 7
    %v4832 = vsub.s32 %v4540, %v4831
    %v4833 = vrot.slane %v4219, %v4832
    %v4834 = vsel %vm4545, %v4833, %v4829
    %v4835 = vlaneseq
    %v4836 = vshrl.u32 %v4835, 7
    %v4837 = vsub.s32 %v4535, %v4836
    %v4838 = vrot.slane %v4222, %v4837
    %v4839 = vlaneseq
    %v4840 = vshrl.u32 %v4839, 7
    %v4841 = vsub.s32 %v4540, %v4840
    %v4842 = vrot.slane %v4225, %v4841
    %v4843 = vsel %vm4545, %v4842, %v4838
    %v4844 = vlaneseq
    %v4845 = vshrl.u32 %v4844, 7
    %v4846 = vsub.s32 %v4535, %v4845
    %v4847 = vrot.slane %v4228, %v4846
    %v4848 = vlaneseq
    %v4849 = vshrl.u32 %v4848, 7
    %v4850 = vsub.s32 %v4540, %v4849
    %v4851 = vrot.slane %v4231, %v4850
    %v4852 = vsel %vm4545, %v4851, %v4847
    %v4853 = vlaneseq
    %v4854 = vshrl.u32 %v4853, 7
    %v4855 = vsub.s32 %v4535, %v4854
    %v4856 = vrot.slane %v4234, %v4855
    %v4857 = vlaneseq
    %v4858 = vshrl.u32 %v4857, 7
    %v4859 = vsub.s32 %v4540, %v4858
    %v4860 = vrot.slane %v4237, %v4859
    %v4861 = vsel %vm4545, %v4860, %v4856
    %v4862 = vlaneseq
    %v4863 = vshrl.u32 %v4862, 7
    %v4864 = vsub.s32 %v4535, %v4863
    %v4865 = vrot.slane %v4240, %v4864
    %v4866 = vlaneseq
    %v4867 = vshrl.u32 %v4866, 7
    %v4868 = vsub.s32 %v4540, %v4867
    %v4869 = vrot.slane %v4243, %v4868
    %v4870 = vsel %vm4545, %v4869, %v4865
    %v4871 = vlaneseq
    %v4872 = vshrl.u32 %v4871, 7
    %v4873 = vsub.s32 %v4535, %v4872
    %v4874 = vrot.slane %v4246, %v4873
    %v4875 = vlaneseq
    %v4876 = vshrl.u32 %v4875, 7
    %v4877 = vsub.s32 %v4540, %v4876
    %v4878 = vrot.slane %v4249, %v4877
    %v4879 = vsel %vm4545, %v4878, %v4874
    %v4880 = vlaneseq
    %v4881 = vshrl.u32 %v4880, 7
    %v4882 = vsub.s32 %v4535, %v4881
    %v4883 = vrot.slane %v4252, %v4882
    %v4884 = vlaneseq
    %v4885 = vshrl.u32 %v4884, 7
    %v4886 = vsub.s32 %v4540, %v4885
    %v4887 = vrot.slane %v4255, %v4886
    %v4888 = vsel %vm4545, %v4887, %v4883
    %v4889 = vlaneseq
    %v4890 = vshrl.u32 %v4889, 7
    %v4891 = vsub.s32 %v4535, %v4890
    %v4892 = vrot.slane %v4258, %v4891
    %v4893 = vlaneseq
    %v4894 = vshrl.u32 %v4893, 7
    %v4895 = vsub.s32 %v4540, %v4894
    %v4896 = vrot.slane %v4261, %v4895
    %v4897 = vsel %vm4545, %v4896, %v4892
    %v4898 = vlaneseq
    %v4899 = vshrl.u32 %v4898, 7
    %v4900 = vsub.s32 %v4535, %v4899
    %v4901 = vrot.slane %v4264, %v4900
    %v4902 = vlaneseq
    %v4903 = vshrl.u32 %v4902, 7
    %v4904 = vsub.s32 %v4540, %v4903
    %v4905 = vrot.slane %v4267, %v4904
    %v4906 = vsel %vm4545, %v4905, %v4901
    %v4907 = vlaneseq
    %v4908 = vshrl.u32 %v4907, 7
    %v4909 = vsub.s32 %v4535, %v4908
    %v4910 = vrot.slane %v4270, %v4909
    %v4911 = vlaneseq
    %v4912 = vshrl.u32 %v4911, 7
    %v4913 = vsub.s32 %v4540, %v4912
    %v4914 = vrot.slane %v4273, %v4913
    %v4915 = vsel %vm4545, %v4914, %v4910
    %v4916 = vlaneseq
    %v4917 = vshrl.u32 %v4916, 7
    %v4918 = vsub.s32 %v4535, %v4917
    %v4919 = vrot.slane %v4276, %v4918
    %v4920 = vlaneseq
    %v4921 = vshrl.u32 %v4920, 7
    %v4922 = vsub.s32 %v4540, %v4921
    %v4923 = vrot.slane %v4279, %v4922
    %v4924 = vsel %vm4545, %v4923, %v4919
    %v4925 = vlaneseq
    %v4926 = vshrl.u32 %v4925, 7
    %v4927 = vsub.s32 %v4535, %v4926
    %v4928 = vrot.slane %v4282, %v4927
    %v4929 = vlaneseq
    %v4930 = vshrl.u32 %v4929, 7
    %v4931 = vsub.s32 %v4540, %v4930
    %v4932 = vrot.slane %v4285, %v4931
    %v4933 = vsel %vm4545, %v4932, %v4928
    %v4934 = vlaneseq
    %v4935 = vshrl.u32 %v4934, 7
    %v4936 = vsub.s32 %v4535, %v4935
    %v4937 = vrot.slane %v4288, %v4936
    %v4938 = vlaneseq
    %v4939 = vshrl.u32 %v4938, 7
    %v4940 = vsub.s32 %v4540, %v4939
    %v4941 = vrot.slane %v4291, %v4940
    %v4942 = vsel %vm4545, %v4941, %v4937
    %v4943 = vlaneseq
    %v4944 = vshrl.u32 %v4943, 7
    %v4945 = vsub.s32 %v4535, %v4944
    %v4946 = vrot.slane %v4294, %v4945
    %v4947 = vlaneseq
    %v4948 = vshrl.u32 %v4947, 7
    %v4949 = vsub.s32 %v4540, %v4948
    %v4950 = vrot.slane %v4297, %v4949
    %v4951 = vsel %vm4545, %v4950, %v4946
    %v4952 = vlaneseq
    %v4953 = vshrl.u32 %v4952, 7
    %v4954 = vsub.s32 %v4535, %v4953
    %v4955 = vrot.slane %v4300, %v4954
    %v4956 = vlaneseq
    %v4957 = vshrl.u32 %v4956, 7
    %v4958 = vsub.s32 %v4540, %v4957
    %v4959 = vrot.slane %v4303, %v4958
    %v4960 = vsel %vm4545, %v4959, %v4955
    %v4961 = vlaneseq
    %v4962 = vshrl.u32 %v4961, 7
    %v4963 = vsub.s32 %v4535, %v4962
    %v4964 = vrot.slane %v4306, %v4963
    %v4965 = vlaneseq
    %v4966 = vshrl.u32 %v4965, 7
    %v4967 = vsub.s32 %v4540, %v4966
    %v4968 = vrot.slane %v4309, %v4967
    %v4969 = vsel %vm4545, %v4968, %v4964
    %v4970 = vlaneseq
    %v4971 = vshrl.u32 %v4970, 7
    %v4972 = vsub.s32 %v4535, %v4971
    %v4973 = vrot.slane %v4312, %v4972
    %v4974 = vlaneseq
    %v4975 = vshrl.u32 %v4974, 7
    %v4976 = vsub.s32 %v4540, %v4975
    %v4977 = vrot.slane %v4315, %v4976
    %v4978 = vsel %vm4545, %v4977, %v4973
    %v4979 = vlaneseq
    %v4980 = vshrl.u32 %v4979, 7
    %v4981 = vsub.s32 %v4535, %v4980
    %v4982 = vrot.slane %v4318, %v4981
    %v4983 = vlaneseq
    %v4984 = vshrl.u32 %v4983, 7
    %v4985 = vsub.s32 %v4540, %v4984
    %v4986 = vrot.slane %v4321, %v4985
    %v4987 = vsel %vm4545, %v4986, %v4982
    %v4988 = vlaneseq
    %v4989 = vshrl.u32 %v4988, 7
    %v4990 = vsub.s32 %v4535, %v4989
    %v4991 = vrot.slane %v4324, %v4990
    %v4992 = vlaneseq
    %v4993 = vshrl.u32 %v4992, 7
    %v4994 = vsub.s32 %v4540, %v4993
    %v4995 = vrot.slane %v4327, %v4994
    %v4996 = vsel %vm4545, %v4995, %v4991
    %v4997 = vlaneseq
    %v4998 = vshrl.u32 %v4997, 7
    %v4999 = vsub.s32 %v4535, %v4998
    %v5000 = vrot.slane %v4330, %v4999
    %v5001 = vlaneseq
    %v5002 = vshrl.u32 %v5001, 7
    %v5003 = vsub.s32 %v4540, %v5002
    %v5004 = vrot.slane %v4333, %v5003
    %v5005 = vsel %vm4545, %v5004, %v5000
    %v5006 = vlaneseq
    %v5007 = vshrl.u32 %v5006, 7
    %v5008 = vsub.s32 %v4535, %v5007
    %v5009 = vrot.slane %v4336, %v5008
    %v5010 = vlaneseq
    %v5011 = vshrl.u32 %v5010, 7
    %v5012 = vsub.s32 %v4540, %v5011
    %v5013 = vrot.slane %v4339, %v5012
    %v5014 = vsel %vm4545, %v5013, %v5009
    %v5015 = vlaneseq
    %v5016 = vshrl.u32 %v5015, 7
    %v5017 = vsub.s32 %v4535, %v5016
    %v5018 = vrot.slane %v4342, %v5017
    %v5019 = vlaneseq
    %v5020 = vshrl.u32 %v5019, 7
    %v5021 = vsub.s32 %v4540, %v5020
    %v5022 = vrot.slane %v4345, %v5021
    %v5023 = vsel %vm4545, %v5022, %v5018
    %v5024 = vlaneseq
    %v5025 = vshrl.u32 %v5024, 7
    %v5026 = vsub.s32 %v4535, %v5025
    %v5027 = vrot.slane %v4348, %v5026
    %v5028 = vlaneseq
    %v5029 = vshrl.u32 %v5028, 7
    %v5030 = vsub.s32 %v4540, %v5029
    %v5031 = vrot.slane %v4351, %v5030
    %v5032 = vsel %vm4545, %v5031, %v5027
    %v5033 = vlaneseq
    %v5034 = vshrl.u32 %v5033, 7
    %v5035 = vsub.s32 %v4535, %v5034
    %v5036 = vrot.slane %v4354, %v5035
    %v5037 = vlaneseq
    %v5038 = vshrl.u32 %v5037, 7
    %v5039 = vsub.s32 %v4540, %v5038
    %v5040 = vrot.slane %v4357, %v5039
    %v5041 = vsel %vm4545, %v5040, %v5036
    %v5042 = vlaneseq
    %v5043 = vshrl.u32 %v5042, 7
    %v5044 = vsub.s32 %v4535, %v5043
    %v5045 = vrot.slane %v4360, %v5044
    %v5046 = vlaneseq
    %v5047 = vshrl.u32 %v5046, 7
    %v5048 = vsub.s32 %v4540, %v5047
    %v5049 = vrot.slane %v4363, %v5048
    %v5050 = vsel %vm4545, %v5049, %v5045
    %v5051 = vlaneseq
    %v5052 = vshrl.u32 %v5051, 7
    %v5053 = vsub.s32 %v4535, %v5052
    %v5054 = vrot.slane %v4366, %v5053
    %v5055 = vlaneseq
    %v5056 = vshrl.u32 %v5055, 7
    %v5057 = vsub.s32 %v4540, %v5056
    %v5058 = vrot.slane %v4369, %v5057
    %v5059 = vsel %vm4545, %v5058, %v5054
    %v5060 = vlaneseq
    %v5061 = vshrl.u32 %v5060, 7
    %v5062 = vsub.s32 %v4535, %v5061
    %v5063 = vrot.slane %v4372, %v5062
    %v5064 = vlaneseq
    %v5065 = vshrl.u32 %v5064, 7
    %v5066 = vsub.s32 %v4540, %v5065
    %v5067 = vrot.slane %v4375, %v5066
    %v5068 = vsel %vm4545, %v5067, %v5063
    %v5069 = vlaneseq
    %v5070 = vshrl.u32 %v5069, 7
    %v5071 = vsub.s32 %v4535, %v5070
    %v5072 = vrot.slane %v4378, %v5071
    %v5073 = vlaneseq
    %v5074 = vshrl.u32 %v5073, 7
    %v5075 = vsub.s32 %v4540, %v5074
    %v5076 = vrot.slane %v4381, %v5075
    %v5077 = vsel %vm4545, %v5076, %v5072
    %v5078 = vlaneseq
    %v5079 = vshrl.u32 %v5078, 7
    %v5080 = vsub.s32 %v4535, %v5079
    %v5081 = vrot.slane %v4384, %v5080
    %v5082 = vlaneseq
    %v5083 = vshrl.u32 %v5082, 7
    %v5084 = vsub.s32 %v4540, %v5083
    %v5085 = vrot.slane %v4387, %v5084
    %v5086 = vsel %vm4545, %v5085, %v5081
    %v5087 = vlaneseq
    %v5088 = vshrl.u32 %v5087, 7
    %v5089 = vsub.s32 %v4535, %v5088
    %v5090 = vrot.slane %v4390, %v5089
    %v5091 = vlaneseq
    %v5092 = vshrl.u32 %v5091, 7
    %v5093 = vsub.s32 %v4540, %v5092
    %v5094 = vrot.slane %v4393, %v5093
    %v5095 = vsel %vm4545, %v5094, %v5090
    %v5096 = vlaneseq
    %v5097 = vshrl.u32 %v5096, 7
    %v5098 = vsub.s32 %v4535, %v5097
    %v5099 = vrot.slane %v4396, %v5098
    %v5100 = vlaneseq
    %v5101 = vshrl.u32 %v5100, 7
    %v5102 = vsub.s32 %v4540, %v5101
    %v5103 = vrot.slane %v4399, %v5102
    %v5104 = vsel %vm4545, %v5103, %v5099
    %v5105 = vlaneseq
    %v5106 = vshrl.u32 %v5105, 7
    %v5107 = vsub.s32 %v4535, %v5106
    %v5108 = vrot.slane %v4402, %v5107
    %v5109 = vlaneseq
    %v5110 = vshrl.u32 %v5109, 7
    %v5111 = vsub.s32 %v4540, %v5110
    %v5112 = vrot.slane %v4405, %v5111
    %v5113 = vsel %vm4545, %v5112, %v5108
    %vm5114 = vcmask 1041409
    %v5115 = vsel %vm5114, %v4555, %v4546
    %vm5116 = vcmask 1042434
    %v5117 = vsel %vm5116, %v4564, %v5115
    %vm5118 = vcmask 1043459
    %v5119 = vsel %vm5118, %v4573, %v5117
    %vm5120 = vcmask 1044484
    %v5121 = vsel %vm5120, %v4582, %v5119
    %vm5122 = vcmask 1045509
    %v5123 = vsel %vm5122, %v4591, %v5121
    %vm5124 = vcmask 1046534
    %v5125 = vsel %vm5124, %v4600, %v5123
    %vm5126 = vcmask 1047559
    %v5127 = vsel %vm5126, %v4609, %v5125
    %v5128 = vsel %vm5114, %v4627, %v4618
    %v5129 = vsel %vm5116, %v4636, %v5128
    %v5130 = vsel %vm5118, %v4645, %v5129
    %v5131 = vsel %vm5120, %v4654, %v5130
    %v5132 = vsel %vm5122, %v4663, %v5131
    %v5133 = vsel %vm5124, %v4672, %v5132
    %v5134 = vsel %vm5126, %v4681, %v5133
    %v5135 = vsel %vm5114, %v4699, %v4690
    %v5136 = vsel %vm5116, %v4708, %v5135
    %v5137 = vsel %vm5118, %v4717, %v5136
    %v5138 = vsel %vm5120, %v4726, %v5137
    %v5139 = vsel %vm5122, %v4735, %v5138
    %v5140 = vsel %vm5124, %v4744, %v5139
    %v5141 = vsel %vm5126, %v4753, %v5140
    %v5142 = vsel %vm5114, %v4771, %v4762
    %v5143 = vsel %vm5116, %v4780, %v5142
    %v5144 = vsel %vm5118, %v4789, %v5143
    %v5145 = vsel %vm5120, %v4798, %v5144
    %v5146 = vsel %vm5122, %v4807, %v5145
    %v5147 = vsel %vm5124, %v4816, %v5146
    %v5148 = vsel %vm5126, %v4825, %v5147
    %v5149 = vsel %vm5114, %v4843, %v4834
    %v5150 = vsel %vm5116, %v4852, %v5149
    %v5151 = vsel %vm5118, %v4861, %v5150
    %v5152 = vsel %vm5120, %v4870, %v5151
    %v5153 = vsel %vm5122, %v4879, %v5152
    %v5154 = vsel %vm5124, %v4888, %v5153
    %v5155 = vsel %vm5126, %v4897, %v5154
    %v5156 = vsel %vm5114, %v4915, %v4906
    %v5157 = vsel %vm5116, %v4924, %v5156
    %v5158 = vsel %vm5118, %v4933, %v5157
    %v5159 = vsel %vm5120, %v4942, %v5158
    %v5160 = vsel %vm5122, %v4951, %v5159
    %v5161 = vsel %vm5124, %v4960, %v5160
    %v5162 = vsel %vm5126, %v4969, %v5161
    %v5163 = vsel %vm5114, %v4987, %v4978
    %v5164 = vsel %vm5116, %v4996, %v5163
    %v5165 = vsel %vm5118, %v5005, %v5164
    %v5166 = vsel %vm5120, %v5014, %v5165
    %v5167 = vsel %vm5122, %v5023, %v5166
    %v5168 = vsel %vm5124, %v5032, %v5167
    %v5169 = vsel %vm5126, %v5041, %v5168
    %v5170 = vsel %vm5114, %v5059, %v5050
    %v5171 = vsel %vm5116, %v5068, %v5170
    %v5172 = vsel %vm5118, %v5077, %v5171
    %v5173 = vsel %vm5120, %v5086, %v5172
    %v5174 = vsel %vm5122, %v5095, %v5173
    %v5175 = vsel %vm5124, %v5104, %v5174
    %v5176 = vsel %vm5126, %v5113, %v5175
    %v5185 = vsel %vm272, %v5127, 0.0
    %5186 = vadd.xlane.f32.xlu0 %v5185
    %v5187 = vpop.xlane.xlu0 %5186
    %v5188 = vsel %vm272, %v5134, 0.0
    %5189 = vadd.xlane.f32.xlu0 %v5188
    %v5190 = vpop.xlane.xlu0 %5189
    %v5191 = vsel %vm272, %v5141, 0.0
    %5192 = vadd.xlane.f32.xlu0 %v5191
    %v5193 = vpop.xlane.xlu0 %5192
    %v5194 = vsel %vm272, %v5148, 0.0
    %5195 = vadd.xlane.f32.xlu0 %v5194
    %v5196 = vpop.xlane.xlu0 %5195
    %v5197 = vsel %vm272, %v5155, 0.0
    %5198 = vadd.xlane.f32.xlu0 %v5197
    %v5199 = vpop.xlane.xlu0 %5198
    %v5200 = vsel %vm272, %v5162, 0.0
    %5201 = vadd.xlane.f32.xlu0 %v5200
    %v5202 = vpop.xlane.xlu0 %5201
    %v5203 = vsel %vm272, %v5169, 0.0
    %5204 = vadd.xlane.f32.xlu0 %v5203
    %v5205 = vpop.xlane.xlu0 %5204
    %v5206 = vsel %vm272, %v5176, 0.0
    %5207 = vadd.xlane.f32.xlu0 %v5206
    %v5208 = vpop.xlane.xlu0 %5207
    %v5209 = vld [vmem:[#allocation2] sm:$0x1]
    %v5211 = vlaneseq
    %v5212 = vshrl.u32 %v5211, 7
    %v5213 = vsub.s32 0, %v5212
    %v5214 = vrot.slane %v5209, %v5213
    %v5216 = vadd.f32 %v5187, %v5214
    %v5217 = vadd.f32 %v5190, %v5214
    %v5218 = vadd.f32 %v5193, %v5214
    %v5219 = vadd.f32 %v5196, %v5214
    %v5220 = vadd.f32 %v5199, %v5214
    %v5221 = vadd.f32 %v5202, %v5214
    %v5222 = vadd.f32 %v5205, %v5214
    %v5223 = vadd.f32 %v5208, %v5214
    %vm5224 = vcmp.gt.f32.partialorder %v5216, 0.0
    %vm5225 = vcmp.gt.f32.partialorder %v5217, 0.0
    %vm5226 = vcmp.gt.f32.partialorder %v5218, 0.0
    %vm5227 = vcmp.gt.f32.partialorder %v5219, 0.0
    %vm5228 = vcmp.gt.f32.partialorder %v5220, 0.0
    %vm5229 = vcmp.gt.f32.partialorder %v5221, 0.0
    %vm5230 = vcmp.gt.f32.partialorder %v5222, 0.0
    %vm5231 = vcmp.gt.f32.partialorder %v5223, 0.0
    %v5232 = vmul.f32 %v5216, 0.33
    %v5233 = vmul.f32 %v5217, 0.33
    %v5234 = vmul.f32 %v5218, 0.33
    %v5235 = vmul.f32 %v5219, 0.33
    %v5236 = vmul.f32 %v5220, 0.33
    %v5237 = vmul.f32 %v5221, 0.33
    %v5238 = vmul.f32 %v5222, 0.33
    %v5239 = vmul.f32 %v5223, 0.33
    %v5240 = vsel %vm5224, %v5216, %v5232
    %v5241 = vsel %vm5225, %v5217, %v5233
    %v5242 = vsel %vm5226, %v5218, %v5234
    %v5243 = vsel %vm5227, %v5219, %v5235
    %v5244 = vsel %vm5228, %v5220, %v5236
    %v5245 = vsel %vm5229, %v5221, %v5237
    %v5246 = vsel %vm5230, %v5222, %v5238
    %v5247 = vsel %vm5231, %v5223, %v5239
    %v5248 = vld [vmem:[#allocation20] sm:$0xff]
    %v5249 = vld [vmem:[#allocation20 + $0x8] sm:$0xff]
    %v5250 = vld [vmem:[#allocation20 + $0x10] sm:$0xff]
    %v5251 = vld [vmem:[#allocation20 + $0x18] sm:$0xff]
    %v5252 = vld [vmem:[%s18] sm:$0x3]
    %v5254 = vlaneseq
    %v5255 = vshrl.u32 %v5254, 7
    %v5256 = vsub.s32 0, %v5255
    %v5257 = vrot.slane %v5252, %v5256
    %v5258 = vlaneseq
    %v5259 = vshrl.u32 %v5258, 7
    %v5260 = vsub.s32 1, %v5259
    %v5261 = vrot.slane %v5252, %v5260
    %5272 = vset.pattern.permute.xlu0 0
    %5273 = vperm.xlu0 %5272, %v5240
    %v5274 = vpop.permute.xlu0 %5273
    %5275 = vset.pattern.permute.xlu0 0
    %5276 = vperm.xlu0 %5275, %v5241
    %v5277 = vpop.permute.xlu0 %5276
    %5278 = vset.pattern.permute.xlu0 0
    %5279 = vperm.xlu0 %5278, %v5242
    %v5280 = vpop.permute.xlu0 %5279
    %5281 = vset.pattern.permute.xlu0 0
    %5282 = vperm.xlu0 %5281, %v5243
    %v5283 = vpop.permute.xlu0 %5282
    %5284 = vset.pattern.permute.xlu0 0
    %5285 = vperm.xlu0 %5284, %v5244
    %v5286 = vpop.permute.xlu0 %5285
    %5287 = vset.pattern.permute.xlu0 0
    %5288 = vperm.xlu0 %5287, %v5245
    %v5289 = vpop.permute.xlu0 %5288
    %5290 = vset.pattern.permute.xlu0 0
    %5291 = vperm.xlu0 %5290, %v5246
    %v5292 = vpop.permute.xlu0 %5291
    %5293 = vset.pattern.permute.xlu0 0
    %5294 = vperm.xlu0 %5293, %v5247
    %v5295 = vpop.permute.xlu0 %5294
    %v5296 = vlaneseq
    %v5297 = vshrl.u32 %v5296, 7
    %v5298 = vsub.s32 %v4535, %v5297
    %v5299 = vrot.slane %v5274, %v5298
    %v5300 = vlaneseq
    %v5301 = vshrl.u32 %v5300, 7
    %v5302 = vsub.s32 %v4540, %v5301
    %v5303 = vrot.slane %v5277, %v5302
    %v5304 = vsel %vm4545, %v5303, %v5299
    %v5305 = vlaneseq
    %v5306 = vshrl.u32 %v5305, 7
    %v5307 = vsub.s32 %v4535, %v5306
    %v5308 = vrot.slane %v5280, %v5307
    %v5309 = vlaneseq
    %v5310 = vshrl.u32 %v5309, 7
    %v5311 = vsub.s32 %v4540, %v5310
    %v5312 = vrot.slane %v5283, %v5311
    %v5313 = vsel %vm4545, %v5312, %v5308
    %v5314 = vlaneseq
    %v5315 = vshrl.u32 %v5314, 7
    %v5316 = vsub.s32 %v4535, %v5315
    %v5317 = vrot.slane %v5286, %v5316
    %v5318 = vlaneseq
    %v5319 = vshrl.u32 %v5318, 7
    %v5320 = vsub.s32 %v4540, %v5319
    %v5321 = vrot.slane %v5289, %v5320
    %v5322 = vsel %vm4545, %v5321, %v5317
    %v5323 = vlaneseq
    %v5324 = vshrl.u32 %v5323, 7
    %v5325 = vsub.s32 %v4535, %v5324
    %v5326 = vrot.slane %v5292, %v5325
    %v5327 = vlaneseq
    %v5328 = vshrl.u32 %v5327, 7
    %v5329 = vsub.s32 %v4540, %v5328
    %v5330 = vrot.slane %v5295, %v5329
    %v5331 = vsel %vm4545, %v5330, %v5326
    %v5332 = vsel %vm5114, %v5313, %v5304
    %v5333 = vsel %vm5116, %v5322, %v5332
    %v5334 = vsel %vm5118, %v5331, %v5333
    %v5335 = vsel %vm272, %v5334, 0
    %5337 = vmatprep.subr.mxu0 0.0
    %5338 = vmatpush1.msra.mxu0 0.0
    %5339 = vmatprep.subr.mxu0 0.0
    %5340 = vmatpush1.msra.mxu0 0.0
    %5341 = vmatprep.subr.mxu0 0.0
    %5342 = vmatpush1.msra.mxu0 0.0
    %5343 = vmatprep.subr.mxu0 0.0
    %5344 = vmatpush1.msra.mxu0 0.0
    %5345 = vmatprep.subr.mxu0 0.0
    %5346 = vmatpush1.msra.mxu0 0.0
    %5347 = vmatprep.subr.mxu0 0.0
    %5348 = vmatpush1.msra.mxu0 0.0
    %5349 = vmatprep.subr.mxu0 0.0
    %5350 = vmatpush1.msra.mxu0 0.0
    %5351 = vmatprep.subr.mxu0 0.0
    %5352 = vmatpush1.msra.mxu0 0.0
    %5353 = vmatprep.subr.mxu0 0.0
    %5354 = vmatpush1.msra.mxu0 0.0
    %5355 = vmatprep.subr.mxu0 0.0
    %5356 = vmatpush1.msra.mxu0 0.0
    %5357 = vmatprep.subr.mxu0 0.0
    %5358 = vmatpush1.msra.mxu0 0.0
    %5359 = vmatprep.subr.mxu0 0.0
    %5360 = vmatpush1.msra.mxu0 0.0
    %5361 = vmatprep.subr.mxu0 0.0
    %5362 = vmatpush1.msra.mxu0 0.0
    %5363 = vmatprep.subr.mxu0 0.0
    %5364 = vmatpush1.msra.mxu0 0.0
    %5365 = vmatprep.subr.mxu0 %v5251
    %5366 = vmatpush1.msra.mxu0 %v5250
    %5367 = vmatprep.subr.mxu0 %v5249
    %5368 = vmatpush1.msra.mxu0 %v5248
    %5369 = vmatprep.subr.mxu0 0.0
    %5370 = vmatpush2.msra.mxu0 0.0
    %5371 = vmatprep.subr.mxu0 0.0
    %5372 = vmatpush2.msra.mxu0 0.0
    %5373 = vmatprep.subr.mxu0 0.0
    %5374 = vmatpush2.msra.mxu0 0.0
    %5375 = vmatprep.subr.mxu0 0.0
    %5376 = vmatpush2.msra.mxu0 0.0
    %5377 = vmatprep.subr.mxu0 0.0
    %5378 = vmatpush2.msra.mxu0 0.0
    %5379 = vmatprep.subr.mxu0 0.0
    %5380 = vmatpush2.msra.mxu0 0.0
    %5381 = vmatprep.subr.mxu0 0.0
    %5382 = vmatpush2.msra.mxu0 0.0
    %5383 = vmatprep.subr.mxu0 0.0
    %5384 = vmatpush2.msra.mxu0 0.0
    %5385 = vmatprep.subr.mxu0 0.0
    %5386 = vmatpush2.msra.mxu0 0.0
    %5387 = vmatprep.subr.mxu0 0.0
    %5388 = vmatpush2.msra.mxu0 0.0
    %5389 = vmatprep.subr.mxu0 0.0
    %5390 = vmatpush2.msra.mxu0 0.0
    %5391 = vmatprep.subr.mxu0 0.0
    %5392 = vmatpush2.msra.mxu0 0.0
    %5393 = vmatprep.subr.mxu0 0.0
    %5394 = vmatpush2.msra.mxu0 0.0
    %5395 = vmatprep.subr.mxu0 0.0
    %5396 = vmatpush2.msra.mxu0 0.0
    %5397 = vmatprep.subr.mxu0 0.0
    %5398 = vmatpush2.msra.mxu0 0.0
    %5399 = vmatprep.subr.mxu0 0.0
    %5400 = vmatpush2.msra.mxu0 0.0
    %5401 = vmatprep.mubr.f32.mxu0 0.0
    %5402 = vmatmul.mubr.f32.gmra.mxu0 %v5335
    %v5403 = vpop.f32.mrf.mxu0
    %v5404 = vadd.f32 %v5257, %v5403
    %v5405 = vpop.f32.mrf.mxu0
    %v5406 = vadd.f32 %v5261, %v5405
    %5407 = vdwg.mxu0
    %vm5408 = vcmp.gt.f32.partialorder %v5404, 0.0
    %vm5409 = vcmp.gt.f32.partialorder %v5406, 0.0
    %v5410 = vmul.f32 %v5404, 0.33
    %v5411 = vmul.f32 %v5406, 0.33
    %v5412 = vsel %vm5408, %v5404, %v5410
    %v5413 = vsel %vm5409, %v5406, %v5411
    %v5414 = vld [vmem:[%s19] sm:$0xff]
    %v5415 = vld [vmem:[%s19 + $0x8] sm:$0xff]
    %v5416 = vld [vmem:[%s19 + $0x10] sm:$0xff]
    %v5417 = vld [vmem:[%s19 + $0x18] sm:$0xff]
    %v5418 = vld [vmem:[%s19 + $0x20] sm:$0xff]
    %v5419 = vld [vmem:[%s19 + $0x28] sm:$0xff]
    %v5420 = vld [vmem:[%s19 + $0x30] sm:$0xff]
    %v5421 = vld [vmem:[%s19 + $0x38] sm:$0xff]
    %v5422 = vld [vmem:[%s19 + $0x40] sm:$0xff]
    %v5423 = vld [vmem:[%s19 + $0x48] sm:$0xff]
    %v5424 = vld [vmem:[%s19 + $0x50] sm:$0xff]
    %v5425 = vld [vmem:[%s19 + $0x58] sm:$0xff]
    %v5426 = vld [vmem:[%s19 + $0x60] sm:$0xff]
    %v5427 = vld [vmem:[%s19 + $0x68] sm:$0xff]
    %v5428 = vld [vmem:[%s19 + $0x70] sm:$0xff]
    %v5429 = vld [vmem:[%s19 + $0x78] sm:$0xff]
    %v5430 = vld [vmem:[%s19 + $0x80] sm:$0xff]
    %v5431 = vld [vmem:[%s19 + $0x88] sm:$0xff]
    %v5432 = vld [vmem:[%s19 + $0x90] sm:$0xff]
    %v5433 = vld [vmem:[%s19 + $0x98] sm:$0xff]
    %v5434 = vld [vmem:[%s19 + $0xa0] sm:$0xff]
    %v5435 = vld [vmem:[%s19 + $0xa8] sm:$0xff]
    %v5436 = vld [vmem:[%s19 + $0xb0] sm:$0xff]
    %v5437 = vld [vmem:[%s19 + $0xb8] sm:$0xff]
    %v5438 = vld [vmem:[%s19 + $0xc0] sm:$0xff]
    %v5439 = vld [vmem:[%s19 + $0xc8] sm:$0xff]
    %v5440 = vld [vmem:[%s19 + $0xd0] sm:$0xff]
    %v5441 = vld [vmem:[%s19 + $0xd8] sm:$0xff]
    %v5442 = vld [vmem:[%s19 + $0xe0] sm:$0xff]
    %v5443 = vld [vmem:[%s19 + $0xe8] sm:$0xff]
    %v5444 = vld [vmem:[%s19 + $0xf0] sm:$0xff]
    %v5445 = vld [vmem:[%s19 + $0xf8] sm:$0xff]
    %v5446 = vld [vmem:[%s20] sm:$0x1]
    %v5448 = vlaneseq
    %v5449 = vshrl.u32 %v5448, 7
    %v5450 = vsub.s32 0, %v5449
    %v5451 = vrot.slane %v5446, %v5450
    %5453 = vmatprep.subr.mxu0 0.0
    %5454 = vmatpush1.msra.mxu0 %v5429
    %5455 = vmatprep.subr.mxu0 0.0
    %5456 = vmatpush1.msra.mxu0 %v5428
    %5457 = vmatprep.subr.mxu0 0.0
    %5458 = vmatpush1.msra.mxu0 %v5427
    %5459 = vmatprep.subr.mxu0 0.0
    %5460 = vmatpush1.msra.mxu0 %v5426
    %5461 = vmatprep.subr.mxu0 0.0
    %5462 = vmatpush1.msra.mxu0 %v5425
    %5463 = vmatprep.subr.mxu0 0.0
    %5464 = vmatpush1.msra.mxu0 %v5424
    %5465 = vmatprep.subr.mxu0 0.0
    %5466 = vmatpush1.msra.mxu0 %v5423
    %5467 = vmatprep.subr.mxu0 0.0
    %5468 = vmatpush1.msra.mxu0 %v5422
    %5469 = vmatprep.subr.mxu0 0.0
    %5470 = vmatpush1.msra.mxu0 %v5421
    %5471 = vmatprep.subr.mxu0 0.0
    %5472 = vmatpush1.msra.mxu0 %v5420
    %5473 = vmatprep.subr.mxu0 0.0
    %5474 = vmatpush1.msra.mxu0 %v5419
    %5475 = vmatprep.subr.mxu0 0.0
    %5476 = vmatpush1.msra.mxu0 %v5418
    %5477 = vmatprep.subr.mxu0 0.0
    %5478 = vmatpush1.msra.mxu0 %v5417
    %5479 = vmatprep.subr.mxu0 0.0
    %5480 = vmatpush1.msra.mxu0 %v5416
    %5481 = vmatprep.subr.mxu0 0.0
    %5482 = vmatpush1.msra.mxu0 %v5415
    %5483 = vmatprep.subr.mxu0 0.0
    %5484 = vmatpush1.msra.mxu0 %v5414
    %5485 = vmatprep.subr.mxu0 0.0
    %5486 = vmatpush2.msra.mxu0 %v5445
    %5487 = vmatprep.subr.mxu0 0.0
    %5488 = vmatpush2.msra.mxu0 %v5444
    %5489 = vmatprep.subr.mxu0 0.0
    %5490 = vmatpush2.msra.mxu0 %v5443
    %5491 = vmatprep.subr.mxu0 0.0
    %5492 = vmatpush2.msra.mxu0 %v5442
    %5493 = vmatprep.subr.mxu0 0.0
    %5494 = vmatpush2.msra.mxu0 %v5441
    %5495 = vmatprep.subr.mxu0 0.0
    %5496 = vmatpush2.msra.mxu0 %v5440
    %5497 = vmatprep.subr.mxu0 0.0
    %5498 = vmatpush2.msra.mxu0 %v5439
    %5499 = vmatprep.subr.mxu0 0.0
    %5500 = vmatpush2.msra.mxu0 %v5438
    %5501 = vmatprep.subr.mxu0 0.0
    %5502 = vmatpush2.msra.mxu0 %v5437
    %5503 = vmatprep.subr.mxu0 0.0
    %5504 = vmatpush2.msra.mxu0 %v5436
    %5505 = vmatprep.subr.mxu0 0.0
    %5506 = vmatpush2.msra.mxu0 %v5435
    %5507 = vmatprep.subr.mxu0 0.0
    %5508 = vmatpush2.msra.mxu0 %v5434
    %5509 = vmatprep.subr.mxu0 0.0
    %5510 = vmatpush2.msra.mxu0 %v5433
    %5511 = vmatprep.subr.mxu0 0.0
    %5512 = vmatpush2.msra.mxu0 %v5432
    %5513 = vmatprep.subr.mxu0 0.0
    %5514 = vmatpush2.msra.mxu0 %v5431
    %5515 = vmatprep.subr.mxu0 0.0
    %5516 = vmatpush2.msra.mxu0 %v5430
    %5517 = vmatprep.mubr.f32.mxu0 %v5413
    %5518 = vmatmul.mubr.f32.gmra.mxu0 %v5412
    %v5519 = vpop.f32.mrf.mxu0
    %v5520 = vadd.f32 %v5451, %v5519
    %v5521 = vpop.f32.mrf.mxu0
    %5522 = vdwg.mxu0
    %vm5523 = vcmp.gt.f32.partialorder %v5520, 0.0
    %v5524 = vmul.f32 %v5520, 0.33
    %v5525 = vsel %vm5523, %v5520, %v5524
    %v5526 = vld [vmem:[%s21] sm:$0xff]
    %v5527 = vld [vmem:[%s21 + $0x8] sm:$0xff]
    %v5528 = vld [vmem:[%s21 + $0x10] sm:$0xff]
    %v5529 = vld [vmem:[%s21 + $0x18] sm:$0xff]
    %v5530 = vld [vmem:[%s21 + $0x20] sm:$0xff]
    %v5531 = vld [vmem:[%s21 + $0x28] sm:$0xff]
    %v5532 = vld [vmem:[%s21 + $0x30] sm:$0xff]
    %v5533 = vld [vmem:[%s21 + $0x38] sm:$0xff]
    %v5534 = vld [vmem:[%s21 + $0x40] sm:$0xff]
    %v5535 = vld [vmem:[%s21 + $0x48] sm:$0xff]
    %v5536 = vld [vmem:[%s21 + $0x50] sm:$0xff]
    %v5537 = vld [vmem:[%s21 + $0x58] sm:$0xff]
    %v5538 = vld [vmem:[%s21 + $0x60] sm:$0xff]
    %v5539 = vld [vmem:[%s21 + $0x68] sm:$0xff]
    %v5540 = vld [vmem:[%s21 + $0x70] sm:$0xff]
    %v5541 = vld [vmem:[%s21 + $0x78] sm:$0xff]
    %v5542 = vld [vmem:[%s22] sm:$0x1]
    %v5544 = vlaneseq
    %v5545 = vshrl.u32 %v5544, 7
    %v5546 = vsub.s32 0, %v5545
    %v5547 = vrot.slane %v5542, %v5546
    %5549 = vmatprep.subr.mxu0 0.0
    %5550 = vmatpush1.msra.mxu0 %v5541
    %5551 = vmatprep.subr.mxu0 0.0
    %5552 = vmatpush1.msra.mxu0 %v5540
    %5553 = vmatprep.subr.mxu0 0.0
    %5554 = vmatpush1.msra.mxu0 %v5539
    %5555 = vmatprep.subr.mxu0 0.0
    %5556 = vmatpush1.msra.mxu0 %v5538
    %5557 = vmatprep.subr.mxu0 0.0
    %5558 = vmatpush1.msra.mxu0 %v5537
    %5559 = vmatprep.subr.mxu0 0.0
    %5560 = vmatpush1.msra.mxu0 %v5536
    %5561 = vmatprep.subr.mxu0 0.0
    %5562 = vmatpush1.msra.mxu0 %v5535
    %5563 = vmatprep.subr.mxu0 0.0
    %5564 = vmatpush1.msra.mxu0 %v5534
    %5565 = vmatprep.subr.mxu0 0.0
    %5566 = vmatpush1.msra.mxu0 %v5533
    %5567 = vmatprep.subr.mxu0 0.0
    %5568 = vmatpush1.msra.mxu0 %v5532
    %5569 = vmatprep.subr.mxu0 0.0
    %5570 = vmatpush1.msra.mxu0 %v5531
    %5571 = vmatprep.subr.mxu0 0.0
    %5572 = vmatpush1.msra.mxu0 %v5530
    %5573 = vmatprep.subr.mxu0 0.0
    %5574 = vmatpush1.msra.mxu0 %v5529
    %5575 = vmatprep.subr.mxu0 0.0
    %5576 = vmatpush1.msra.mxu0 %v5528
    %5577 = vmatprep.subr.mxu0 0.0
    %5578 = vmatpush1.msra.mxu0 %v5527
    %5579 = vmatprep.subr.mxu0 0.0
    %5580 = vmatpush1.msra.mxu0 %v5526
    %5581 = vmatprep.subr.mxu0 0.0
    %5582 = vmatpush2.msra.mxu0 0.0
    %5583 = vmatprep.subr.mxu0 0.0
    %5584 = vmatpush2.msra.mxu0 0.0
    %5585 = vmatprep.subr.mxu0 0.0
    %5586 = vmatpush2.msra.mxu0 0.0
    %5587 = vmatprep.subr.mxu0 0.0
    %5588 = vmatpush2.msra.mxu0 0.0
    %5589 = vmatprep.subr.mxu0 0.0
    %5590 = vmatpush2.msra.mxu0 0.0
    %5591 = vmatprep.subr.mxu0 0.0
    %5592 = vmatpush2.msra.mxu0 0.0
    %5593 = vmatprep.subr.mxu0 0.0
    %5594 = vmatpush2.msra.mxu0 0.0
    %5595 = vmatprep.subr.mxu0 0.0
    %5596 = vmatpush2.msra.mxu0 0.0
    %5597 = vmatprep.subr.mxu0 0.0
    %5598 = vmatpush2.msra.mxu0 0.0
    %5599 = vmatprep.subr.mxu0 0.0
    %5600 = vmatpush2.msra.mxu0 0.0
    %5601 = vmatprep.subr.mxu0 0.0
    %5602 = vmatpush2.msra.mxu0 0.0
    %5603 = vmatprep.subr.mxu0 0.0
    %5604 = vmatpush2.msra.mxu0 0.0
    %5605 = vmatprep.subr.mxu0 0.0
    %5606 = vmatpush2.msra.mxu0 0.0
    %5607 = vmatprep.subr.mxu0 0.0
    %5608 = vmatpush2.msra.mxu0 0.0
    %5609 = vmatprep.subr.mxu0 0.0
    %5610 = vmatpush2.msra.mxu0 0.0
    %5611 = vmatprep.subr.mxu0 0.0
    %5612 = vmatpush2.msra.mxu0 0.0
    %5613 = vmatprep.mubr.f32.mxu0 0.0
    %5614 = vmatmul.mubr.f32.gmra.mxu0 %v5525
    %v5615 = vpop.f32.mrf.mxu0
    %v5616 = vadd.f32 %v5547, %v5615
    %v5617 = vpop.f32.mrf.mxu0
    %5618 = vdwg.mxu0
    %vm5619 = vcmp.gt.f32.partialorder %v5616, 0.0
    %v5620 = vmul.f32 %v5616, 0.33
    %v5621 = vsel %vm5619, %v5616, %v5620
    %v5622 = vld [vmem:[%s23] sm:$0xff]
    %v5623 = vld [vmem:[%s23 + $0x8] sm:$0xff]
    %v5624 = vld [vmem:[%s23 + $0x10] sm:$0xff]
    %v5625 = vld [vmem:[%s23 + $0x18] sm:$0xff]
    %v5626 = vld [vmem:[%s23 + $0x20] sm:$0xff]
    %v5627 = vld [vmem:[%s23 + $0x28] sm:$0xff]
    %v5628 = vld [vmem:[%s23 + $0x30] sm:$0xff]
    %v5629 = vld [vmem:[%s23 + $0x38] sm:$0xff]
    %v5630 = vld [vmem:[%s23 + $0x40] sm:$0xff]
    %v5631 = vld [vmem:[%s23 + $0x48] sm:$0xff]
    %v5632 = vld [vmem:[%s23 + $0x50] sm:$0xff]
    %v5633 = vld [vmem:[%s23 + $0x58] sm:$0xff]
    %v5634 = vld [vmem:[%s23 + $0x60] sm:$0xff]
    %v5635 = vld [vmem:[%s23 + $0x68] sm:$0xff]
    %v5636 = vld [vmem:[%s23 + $0x70] sm:$0xff]
    %v5637 = vld [vmem:[%s23 + $0x78] sm:$0xff]
    %v5638 = vld [vmem:[%s24] sm:$0x1]
    %v5640 = vlaneseq
    %v5641 = vshrl.u32 %v5640, 7
    %v5642 = vsub.s32 0, %v5641
    %v5643 = vrot.slane %v5638, %v5642
    %5645 = vmatprep.subr.mxu0 0.0
    %5646 = vmatpush1.msra.mxu0 %v5637
    %5647 = vmatprep.subr.mxu0 0.0
    %5648 = vmatpush1.msra.mxu0 %v5636
    %5649 = vmatprep.subr.mxu0 0.0
    %5650 = vmatpush1.msra.mxu0 %v5635
    %5651 = vmatprep.subr.mxu0 0.0
    %5652 = vmatpush1.msra.mxu0 %v5634
    %5653 = vmatprep.subr.mxu0 0.0
    %5654 = vmatpush1.msra.mxu0 %v5633
    %5655 = vmatprep.subr.mxu0 0.0
    %5656 = vmatpush1.msra.mxu0 %v5632
    %5657 = vmatprep.subr.mxu0 0.0
    %5658 = vmatpush1.msra.mxu0 %v5631
    %5659 = vmatprep.subr.mxu0 0.0
    %5660 = vmatpush1.msra.mxu0 %v5630
    %5661 = vmatprep.subr.mxu0 0.0
    %5662 = vmatpush1.msra.mxu0 %v5629
    %5663 = vmatprep.subr.mxu0 0.0
    %5664 = vmatpush1.msra.mxu0 %v5628
    %5665 = vmatprep.subr.mxu0 0.0
    %5666 = vmatpush1.msra.mxu0 %v5627
    %5667 = vmatprep.subr.mxu0 0.0
    %5668 = vmatpush1.msra.mxu0 %v5626
    %5669 = vmatprep.subr.mxu0 0.0
    %5670 = vmatpush1.msra.mxu0 %v5625
    %5671 = vmatprep.subr.mxu0 0.0
    %5672 = vmatpush1.msra.mxu0 %v5624
    %5673 = vmatprep.subr.mxu0 0.0
    %5674 = vmatpush1.msra.mxu0 %v5623
    %5675 = vmatprep.subr.mxu0 0.0
    %5676 = vmatpush1.msra.mxu0 %v5622
    %5677 = vmatprep.subr.mxu0 0.0
    %5678 = vmatpush2.msra.mxu0 0.0
    %5679 = vmatprep.subr.mxu0 0.0
    %5680 = vmatpush2.msra.mxu0 0.0
    %5681 = vmatprep.subr.mxu0 0.0
    %5682 = vmatpush2.msra.mxu0 0.0
    %5683 = vmatprep.subr.mxu0 0.0
    %5684 = vmatpush2.msra.mxu0 0.0
    %5685 = vmatprep.subr.mxu0 0.0
    %5686 = vmatpush2.msra.mxu0 0.0
    %5687 = vmatprep.subr.mxu0 0.0
    %5688 = vmatpush2.msra.mxu0 0.0
    %5689 = vmatprep.subr.mxu0 0.0
    %5690 = vmatpush2.msra.mxu0 0.0
    %5691 = vmatprep.subr.mxu0 0.0
    %5692 = vmatpush2.msra.mxu0 0.0
    %5693 = vmatprep.subr.mxu0 0.0
    %5694 = vmatpush2.msra.mxu0 0.0
    %5695 = vmatprep.subr.mxu0 0.0
    %5696 = vmatpush2.msra.mxu0 0.0
    %5697 = vmatprep.subr.mxu0 0.0
    %5698 = vmatpush2.msra.mxu0 0.0
    %5699 = vmatprep.subr.mxu0 0.0
    %5700 = vmatpush2.msra.mxu0 0.0
    %5701 = vmatprep.subr.mxu0 0.0
    %5702 = vmatpush2.msra.mxu0 0.0
    %5703 = vmatprep.subr.mxu0 0.0
    %5704 = vmatpush2.msra.mxu0 0.0
    %5705 = vmatprep.subr.mxu0 0.0
    %5706 = vmatpush2.msra.mxu0 0.0
    %5707 = vmatprep.subr.mxu0 0.0
    %5708 = vmatpush2.msra.mxu0 0.0
    %5709 = vmatprep.mubr.f32.mxu0 0.0
    %5710 = vmatmul.mubr.f32.gmra.mxu0 %v5621
    %v5711 = vpop.f32.mrf.mxu0
    %v5712 = vadd.f32 %v5643, %v5711
    %v5713 = vpop.f32.mrf.mxu0
    %5714 = vdwg.mxu0
    %vm5715 = vcmp.gt.f32.partialorder %v5712, 0.0
    %v5716 = vmul.f32 %v5712, 0.33
    %v5717 = vsel %vm5715, %v5712, %v5716
    %5718 = vst [vmem:[#allocation21] sm:$0xf] %v5717
    %vm5719 = vcmp.lt.s32.totalorder %v4535, 4
    %v5720 = vsel %vm5719, %v5717, -1e+30
    %vm5721 = vcmask 1043456
    %v5722 = vsel %vm5721, %v5720, -inf
    %5723 = vmax.xlane.f32.xlu0 %v5722
    %v5724 = vpop.xlane.xlu0 %5723
    %v5725 = vsub.f32 %v5720, %v5724
    %v5726 = vmul.f32 %v5725, 1.442695
    %v5727 = vpow.pop %v5726
    %v5728 = vsel %vm5721, %v5727, 0.0
    %5729 = vadd.xlane.f32.xlu0 %v5728
    %v5730 = vpop.xlane.xlu0 %5729
    %v5731 = vlog2.pop %v5730
    %v5732 = vmul.f32 %v5731, 0.6931472
    %v5733 = vadd.f32 %v5732, %v5724
    %v5734 = vld [vmem:[#allocation8] sm:$0xf]
    %v5735 = vmul.f32 %v5717, %v5734
    %v5736 = vsel %vm5721, %v5735, 0.0
    %5737 = vadd.xlane.f32.xlu0 %v5736
    %v5738 = vpop.xlane.xlu0 %5737
    %v5739 = vsub.f32 %v5733, %v5738
    %v5740 = vsel %vm5721, %v5739, 0.0
    %v5741 = vrot.slane %v5740, 4
    %v5742 = vadd.f32 %v5740, %v5741
    %v5743 = vrot.slane %v5742, 2
    %v5744 = vadd.f32 %v5742, %v5743
    %v5745 = vrot.slane %v5744, 1
    %v5746 = vadd.f32 %v5744, %v5745
    %vm5747 = vcmask 0
    %5748 = vst.msk [vmem:[#allocation22] sm:$0x1] %vm5747, %v5746
    // Predicated region
    $region146: #{tpu_custom_call.1} parent=1 // pred_check
      _
    $region147: #{tpu_custom_call.1} parent=1 // pred_check_branch
      %5750 = sbr.rel (0) target = $region149
    $region148: #{tpu_custom_call.1} parent=1 // pred_region
      %s5752 = ssub.s32 64, 64
      %5753 = vsyncadd [#allocation5], %s5752
      %s5755 = sshll.u32 [#allocation21], 4
      %s5756 = int_to_ptr.vmem [resolvable:$true] %s5755
      %5758 = dma.vmem_to_hbm [thread:$0]  %s5756, 64, %s25, [#allocation5]
    $region149: #{tpu_custom_call.1} parent=1 // pred_fallthru
      _
    // Predicated region
    $region150: #{tpu_custom_call.1} parent=1 // pred_check
      _
    $region151: #{tpu_custom_call.1} parent=1 // pred_check_branch
      %5760 = sbr.rel (0) target = $region153
    $region152: #{tpu_custom_call.1} parent=1 // pred_region
      %s5762 = ssub.s32 16, 16
      %5763 = vsyncadd [#allocation23], %s5762
      %s5765 = sshll.u32 [#allocation22], 4
      %s5766 = int_to_ptr.vmem [resolvable:$true] %s5765
      %5768 = dma.vmem_to_hbm [thread:$0]  %s5766, 16, %s26, [#allocation23]
    $region153: #{tpu_custom_call.1} parent=1 // pred_fallthru
      _
    // Predicated region
    $region154: #{tpu_custom_call.1} parent=1 // pred_check
      _
    $region155: #{tpu_custom_call.1} parent=1 // pred_check_branch
      %5770 = sbr.rel (0) target = $region157
    $region156: #{tpu_custom_call.1} parent=1 // pred_region
      %5771 = dma.done [#allocation5], 64
    $region157: #{tpu_custom_call.1} parent=1 // pred_fallthru
      _
    // Predicated region
    $region158: #{tpu_custom_call.1} parent=1 // pred_check
      _
    $region159: #{tpu_custom_call.1} parent=1 // pred_check_branch
      %5773 = sbr.rel (0) target = $region161
    $region160: #{tpu_custom_call.1} parent=1 // pred_region
      %5774 = dma.done [#allocation23], 16
    $region161: #{tpu_custom_call.1} parent=1 // pred_fallthru
      _
    %5775 = vsyncpa [#allocation4], 1
    %5776 = vsyncpa [#allocation7], 1
    %5777 = vsyncpa [#allocation10], 1
    %5778 = vsyncpa [#allocation13], 1
    %5779 = vsyncpa [#allocation16], 1
    %5780 = vsyncpa [#allocation19], 1
    %5781 = vsyncpa [#allocation5], 1
    %5782 = vsyncpa [#allocation23], 1

</llo_original>
